<compile_context>
chip_gen: v5e
topology: v5e:2x2
jax: 0.10.0
libtpu: 0.0.40
codegen_flags: <defaults>
</compile_context>

<pallas_src>
import numpy as np

import jax
import jax.numpy as jnp
from jax import lax
from jax.experimental import pallas as pl
from jax.experimental.pallas import tpu as pltpu


# ------------------------- Pallas kernel (whole network) -------------------------

def lenet_kernel(x_ref, w1_ref, b1_ref, w2_ref, b2_ref, w3_ref, b3_ref,
                 w4_ref, b4_ref, w5_ref, b5_ref, o_ref):
    """Fused LeNet forward for one batch block of `bn` samples.

    x_ref : (32, bn, 32) bf16  zero-padded input images, layout (h, n, w).
    w1_ref: (5, 32, 256) bf16  per-kh banded conv1 weights (even/odd ow halves).
    w2_ref: (640, 256)  bf16  conv2 weights, kh taps stacked along rows.
    w3_ref: (640, 128)  bf16  fc1 weights on the (qh, qw, oc) lane layout.
    w4/w5 : (128, 128)  bf16  fc2 / fc3.  Biases are (1, 128) f32.
    o_ref : (bn, 128)   f32   logits (lanes 10..127 are zero padding).
    """
    bn = x_ref.shape[1]

    # ---- conv1 (5x5, pad=2): 5 per-kh banded matmuls; pool-w via lane halves ----
    def tap1(kh):
        lhs = x_ref[kh:kh + 28].reshape(28 * bn, 32)          # rows = (h_out, n)
        return jnp.dot(lhs, w1_ref[kh], preferred_element_type=jnp.float32)

    z1 = tap1(0)
    for kh in range(1, 5):
        z1 = z1 + tap1(kh)                                     # (28*bn, 256) f32
    # half 0 lanes pw*6+oc = conv1 pre-act at ow=2*pw; half 1 at ow=2*pw+1.
    a1 = jnp.maximum(jnp.maximum(z1[:, :128], z1[:, 128:]) + b1_ref[...], 0.0)

    # ---- pool1 over h: max of adjacent bn-row blocks -> (14*bn, 128) ----
    pooled1 = jnp.concatenate(
        [jnp.maximum(a1[(2 * ph) * bn:(2 * ph + 1) * bn, :],
                     a1[(2 * ph + 1) * bn:(2 * ph + 2) * bn, :])
         for ph in range(14)], axis=0).astype(jnp.bfloat16)    # lanes = pw*6+ic

    # ---- conv2 (5x5 valid): ONE matmul, kh taps along 128-aligned lanes ----
    lhs2 = jnp.concatenate(
        [pooled1[kh * bn:(kh + 10) * bn, :] for kh in range(5)], axis=1)
    z2 = jnp.dot(lhs2, w2_ref[...], preferred_element_type=jnp.float32)
    a2 = jnp.maximum(jnp.maximum(z2[:, :128], z2[:, 128:]) + b2_ref[...], 0.0)

    # ---- pool2 over h + flatten: qh blocks along lanes -> (bn, 640) ----
    p2 = jnp.concatenate(
        [jnp.maximum(a2[(2 * qh) * bn:(2 * qh + 1) * bn, :],
                     a2[(2 * qh + 1) * bn:(2 * qh + 2) * bn, :]).astype(jnp.bfloat16)
         for qh in range(5)], axis=1)                          # lanes = qh*128+qw*16+oc

    # ---- fc1 (single K=640 matmul) + fc2 + fc3 ----
    h = jnp.maximum(jnp.dot(p2, w3_ref[...], preferred_element_type=jnp.float32)
                    + b3_ref[...], 0.0).astype(jnp.bfloat16)
    h = jnp.maximum(jnp.dot(h, w4_ref[...], preferred_element_type=jnp.float32)
                    + b4_ref[...], 0.0).astype(jnp.bfloat16)
    o_ref[...] = (jnp.dot(h, w5_ref[...], preferred_element_type=jnp.float32)
                  + b5_ref[...])


# ------------------------- Host wrapper -------------------------

def lenet_forward(packed, x):
    """x: (N, 1, 28, 28) f32 NCHW (PyTorch layout) -> (N, 10) f32 logits."""
    n = x.shape[0]
    bn = 16 if n <= 16 else 32                  # batch block (multiple of 16)
    n_pad = -(-n // bn) * bn

    xb = x.astype(jnp.bfloat16)
    xp = jnp.pad(xb, ((0, n_pad - n), (0, 0), (2, 2), (2, 2)))  # (n_pad,1,32,32)
    x3 = jnp.transpose(xp[:, 0], (1, 0, 2))                     # (32, n_pad, 32)

    def full(shape):                       # whole-array spec, DMA'd once
        zeros = (0,) * len(shape)
        return pl.BlockSpec(shape, lambda i, z=zeros: z)

    out = pl.pallas_call(
        lenet_kernel,
        out_shape=jax.ShapeDtypeStruct((n_pad, 128), jnp.float32),
        grid=(n_pad // bn,),
        in_specs=[pl.BlockSpec((32, bn, 32), lambda i: (0, i, 0)),
                  full(packed["w1"].shape), full(packed["b1"].shape),
                  full(packed["w2"].shape), full(packed["b2"].shape),
                  full(packed["w3"].shape), full(packed["b3"].shape),
                  full(packed["w4"].shape), full(packed["b4"].shape),
                  full(packed["w5"].shape), full(packed["b5"].shape)],
        out_specs=pl.BlockSpec((bn, 128), lambda i: (i, 0)),
        compiler_params=pltpu.CompilerParams(
            dimension_semantics=("parallel",),
            vmem_limit_bytes=32 * 1024 * 1024),
    )(x3, packed["w1"], packed["b1"], packed["w2"], packed["b2"],
      packed["w3"], packed["b3"], packed["w4"], packed["b4"],
      packed["w5"], packed["b5"])
    return out[:n, :10]


# ------------------------- Parameter init / packing -------------------------

def init_params(key):
    """PyTorch-default-style init in the PyTorch layouts (OIHW / (out, in))."""
    def linear(k, out_f, in_f):
        bound = 1.0 / jnp.sqrt(jnp.float32(in_f))
        kw_, kb_ = jax.random.split(k)
        w = jax.random.uniform(kw_, (out_f, in_f), jnp.float32, -bound, bound)
        b = jax.random.uniform(kb_, (out_f,), jnp.float32, -bound, bound)
        return w, b

    def conv(k, oc, ic, kh, kw):
        bound = 1.0 / jnp.sqrt(jnp.float32(ic * kh * kw))
        kw_, kb_ = jax.random.split(k)
        w = jax.random.uniform(kw_, (oc, ic, kh, kw), jnp.float32, -bound, bound)
        b = jax.random.uniform(kb_, (oc,), jnp.float32, -bound, bound)
        return w, b

    k1, k2, k3, k4, k5 = jax.random.split(key, 5)
    w1, b1 = conv(k1, 6, 1, 5, 5)
    w2, b2 = conv(k2, 16, 6, 5, 5)
    w3, b3 = linear(k3, 120, 16 * 5 * 5)
    w4, b4 = linear(k4, 84, 120)
    w5, b5 = linear(k5, 10, 84)
    return dict(w1=w1, b1=b1, w2=w2, b2=b2, w3=w3, b3=b3,
                w4=w4, b4=b4, w5=w5, b5=b5)


def pack_params(params):
    """Build the banded / padded / bf16 weight layout used by the kernel."""
    f32 = np.float32
    w1 = np.asarray(params["w1"], f32); b1 = np.asarray(params["b1"], f32)
    w2 = np.asarray(params["w2"], f32); b2 = np.asarray(params["b2"], f32)
    w3 = np.asarray(params["w3"], f32); b3 = np.asarray(params["b3"], f32)
    w4 = np.asarray(params["w4"], f32); b4 = np.asarray(params["b4"], f32)
    w5 = np.asarray(params["w5"], f32); b5 = np.asarray(params["b5"], f32)

    # conv1: w1k[kh, w_in, half*128 + pw*6 + oc] = w1[oc, 0, kh, w_in-(2*pw+half)]
    w1k = np.zeros((5, 32, 256), f32)
    b1v = np.zeros((1, 128), f32)
    for pw in range(14):
        b1v[0, pw * 6:pw * 6 + 6] = b1
        for kh in range(5):
            for kw in range(5):
                for oc in range(6):
                    w1k[kh, 2 * pw + kw, pw * 6 + oc] = w1[oc, 0, kh, kw]
                    w1k[kh, 2 * pw + 1 + kw, 128 + pw * 6 + oc] = w1[oc, 0, kh, kw]

    # conv2: rows = kh*128 + pw*6 + ic (pool1 lane layout),
    #        cols = half*128 + qw*16 + oc  (half 0 -> ow=2qw, half 1 -> ow=2qw+1)
    w2k = np.zeros((640, 256), f32)
    b2v = np.zeros((1, 128), f32)
    for qw in range(5):
        b2v[0, qw * 16:qw * 16 + 16] = b2
        for kh in range(5):
            for kw in range(5):
                for ic in range(6):
                    for oc in range(16):
                        w2k[kh * 128 + (2 * qw + kw) * 6 + ic,
                            qw * 16 + oc] = w2[oc, ic, kh, kw]
                        w2k[kh * 128 + (2 * qw + 1 + kw) * 6 + ic,
                            128 + qw * 16 + oc] = w2[oc, ic, kh, kw]

    # fc1: kernel input lane qh*128 + qw*16 + oc  <->  torch flat oc*25 + qh*5 + qw
    w3k = np.zeros((640, 128), f32)
    for qh in range(5):
        for qw in range(5):
            for oc in range(16):
                w3k[qh * 128 + qw * 16 + oc, :120] = w3[:, oc * 25 + qh * 5 + qw]
    b3v = np.zeros((1, 128), f32); b3v[0, :120] = b3

    w4k = np.zeros((128, 128), f32); w4k[:120, :84] = w4.T
    b4v = np.zeros((1, 128), f32); b4v[0, :84] = b4
    w5k = np.zeros((128, 128), f32); w5k[:84, :10] = w5.T
    b5v = np.zeros((1, 128), f32); b5v[0, :10] = b5

    bf = jnp.bfloat16
    return dict(w1=jnp.asarray(w1k, bf), b1=jnp.asarray(b1v),
                w2=jnp.asarray(w2k, bf), b2=jnp.asarray(b2v),
                w3=jnp.asarray(w3k, bf), b3=jnp.asarray(b3v),
                w4=jnp.asarray(w4k, bf), b4=jnp.asarray(b4v),
                w5=jnp.asarray(w5k, bf), b5=jnp.asarray(b5v))


# ------------------------- Pure-JAX reference -------------------------

def lenet_reference(params, x):
    """Mirrors the kernel numerics: bf16 conv/matmul operands, f32 accumulation,
    bias / ReLU / pooling in f32."""
    bf16 = jnp.bfloat16

    def conv(x, w, b, pad):
        y = lax.conv_general_dilated(
            x.astype(bf16), w.astype(bf16), (1, 1), [(pad, pad), (pad, pad)],
            dimension_numbers=("NCHW", "OIHW", "NCHW"),
            preferred_element_type=jnp.float32)
        return jax.nn.relu(y + b.reshape(1, -1, 1, 1))

    def pool(x):
        return lax.reduce_window(x, -jnp.inf, lax.max,
                                 (1, 1, 2, 2), (1, 1, 2, 2), "VALID")

    def linear(x, w, b):
        return jnp.dot(x.astype(bf16), w.T.astype(bf16),
                       preferred_element_type=jnp.float32) + b

    x = pool(conv(x, params["w1"], params["b1"], 2))
    x = pool(conv(x, params["w2"], params["b2"], 0))
    x = x.reshape(x.shape[0], -1)
    x = jax.nn.relu(linear(x, params["w3"], params["b3"]))
    x = jax.nn.relu(linear(x, params["w4"], params["b4"]))
    return linear(x, params["w5"], params["b5"])


if __name__ == "__main__":
    key = jax.random.PRNGKey(0)
    pkey, xkey = jax.random.split(key)
    params = init_params(pkey)
    packed = pack_params(params)
    # LeNet's fc1 (16*5*5 = 400 inputs) implies 1x28x28 inputs; batch = 2.
    x = jax.random.normal(xkey, (2, 1, 28, 28), jnp.float32)

    out = jax.block_until_ready(jax.jit(lenet_forward)(packed, x))
    ref = jax.block_until_ready(jax.jit(lenet_reference)(params, x))
    assert out.shape == (2, 10), out.shape
    assert jnp.allclose(out, ref, atol=5e-3, rtol=5e-3), (
        "mismatch vs reference: max abs err "
        f"{float(jnp.max(jnp.abs(out - ref)))}")
    print("KERNEL_OK")
</pallas_src>

<mosaic_0001>
module attributes {stable_mosaic.version = 11 : i64} {
  func.func @lenet_kernel(%arg0: i32, %arg1: memref<32x16x32xbf16, #tpu.memory_space<vmem>>, %arg2: memref<5x32x256xbf16, #tpu.memory_space<vmem>>, %arg3: memref<1x128xf32, #tpu.memory_space<vmem>>, %arg4: memref<640x256xbf16, #tpu.memory_space<vmem>>, %arg5: memref<1x128xf32, #tpu.memory_space<vmem>>, %arg6: memref<640x128xbf16, #tpu.memory_space<vmem>>, %arg7: memref<1x128xf32, #tpu.memory_space<vmem>>, %arg8: memref<128x128xbf16, #tpu.memory_space<vmem>>, %arg9: memref<1x128xf32, #tpu.memory_space<vmem>>, %arg10: memref<128x128xbf16, #tpu.memory_space<vmem>>, %arg11: memref<1x128xf32, #tpu.memory_space<vmem>>, %arg12: memref<16x128xf32, #tpu.memory_space<vmem>>) attributes {dimension_semantics = [#tpu.dimension_semantics<parallel>], iteration_bounds = array<i64: 1>, scalar_prefetch = 0 : i64, scratch_operands = 0 : i64, tpu.core_type = #tpu.core_type<tc>, window_params = [{transform_indices = @transform_0, window_bounds = array<i64: 32, 16, 32>}, {pipeline_mode = #tpu.pipeline_mode<synchronous>, transform_indices = @transform_1, window_bounds = array<i64: 5, 32, 256>}, {pipeline_mode = #tpu.pipeline_mode<synchronous>, transform_indices = @transform_2, window_bounds = array<i64: 1, 128>}, {pipeline_mode = #tpu.pipeline_mode<synchronous>, transform_indices = @transform_3, window_bounds = array<i64: 640, 256>}, {pipeline_mode = #tpu.pipeline_mode<synchronous>, transform_indices = @transform_4, window_bounds = array<i64: 1, 128>}, {pipeline_mode = #tpu.pipeline_mode<synchronous>, transform_indices = @transform_5, window_bounds = array<i64: 640, 128>}, {pipeline_mode = #tpu.pipeline_mode<synchronous>, transform_indices = @transform_6, window_bounds = array<i64: 1, 128>}, {pipeline_mode = #tpu.pipeline_mode<synchronous>, transform_indices = @transform_7, window_bounds = array<i64: 128, 128>}, {pipeline_mode = #tpu.pipeline_mode<synchronous>, transform_indices = @transform_8, window_bounds = array<i64: 1, 128>}, {pipeline_mode = #tpu.pipeline_mode<synchronous>, transform_indices = @transform_9, window_bounds = array<i64: 128, 128>}, {pipeline_mode = #tpu.pipeline_mode<synchronous>, transform_indices = @transform_10, window_bounds = array<i64: 1, 128>}, {transform_indices = @transform_11, window_bounds = array<i64: 16, 128>}]} {
    %c0 = arith.constant 0 : index
    %c0_0 = arith.constant 0 : index
    %c0_1 = arith.constant 0 : index
    %0 = vector.load %arg1[%c0, %c0_0, %c0_1] : memref<32x16x32xbf16, #tpu.memory_space<vmem>>, vector<28x16x32xbf16>
    %1 = vector.shape_cast %0 : vector<28x16x32xbf16> to vector<448x32xbf16>
    %c0_2 = arith.constant 0 : index
    %c0_3 = arith.constant 0 : index
    %c0_4 = arith.constant 0 : index
    %2 = vector.load %arg2[%c0_2, %c0_3, %c0_4] : memref<5x32x256xbf16, #tpu.memory_space<vmem>>, vector<1x32x256xbf16>
    %3 = vector.shape_cast %2 : vector<1x32x256xbf16> to vector<32x256xbf16>
    %cst = arith.constant dense<0.000000e+00> : vector<448x256xf32>
    %4 = tpu.matmul %1, %3, %cst {dimension_numbers = #tpu.dot_dimension_numbers<[1], [0], [0], [1], [0, 0, 1, 1], [], []>} : vector<448x32xbf16>, vector<32x256xbf16>, vector<448x256xf32> -> vector<448x256xf32>
    %c1 = arith.constant 1 : index
    %c0_5 = arith.constant 0 : index
    %c0_6 = arith.constant 0 : index
    %5 = vector.load %arg1[%c1, %c0_5, %c0_6] : memref<32x16x32xbf16, #tpu.memory_space<vmem>>, vector<28x16x32xbf16>
    %6 = vector.shape_cast %5 : vector<28x16x32xbf16> to vector<448x32xbf16>
    %c1_7 = arith.constant 1 : index
    %c0_8 = arith.constant 0 : index
    %c0_9 = arith.constant 0 : index
    %7 = vector.load %arg2[%c1_7, %c0_8, %c0_9] : memref<5x32x256xbf16, #tpu.memory_space<vmem>>, vector<1x32x256xbf16>
    %8 = vector.shape_cast %7 : vector<1x32x256xbf16> to vector<32x256xbf16>
    %cst_10 = arith.constant dense<0.000000e+00> : vector<448x256xf32>
    %9 = tpu.matmul %6, %8, %cst_10 {dimension_numbers = #tpu.dot_dimension_numbers<[1], [0], [0], [1], [0, 0, 1, 1], [], []>} : vector<448x32xbf16>, vector<32x256xbf16>, vector<448x256xf32> -> vector<448x256xf32>
    %10 = arith.addf %4, %9 : vector<448x256xf32>
    %c2 = arith.constant 2 : index
    %c0_11 = arith.constant 0 : index
    %c0_12 = arith.constant 0 : index
    %11 = vector.load %arg1[%c2, %c0_11, %c0_12] : memref<32x16x32xbf16, #tpu.memory_space<vmem>>, vector<28x16x32xbf16>
    %12 = vector.shape_cast %11 : vector<28x16x32xbf16> to vector<448x32xbf16>
    %c2_13 = arith.constant 2 : index
    %c0_14 = arith.constant 0 : index
    %c0_15 = arith.constant 0 : index
    %13 = vector.load %arg2[%c2_13, %c0_14, %c0_15] : memref<5x32x256xbf16, #tpu.memory_space<vmem>>, vector<1x32x256xbf16>
    %14 = vector.shape_cast %13 : vector<1x32x256xbf16> to vector<32x256xbf16>
    %cst_16 = arith.constant dense<0.000000e+00> : vector<448x256xf32>
    %15 = tpu.matmul %12, %14, %cst_16 {dimension_numbers = #tpu.dot_dimension_numbers<[1], [0], [0], [1], [0, 0, 1, 1], [], []>} : vector<448x32xbf16>, vector<32x256xbf16>, vector<448x256xf32> -> vector<448x256xf32>
    %16 = arith.addf %10, %15 : vector<448x256xf32>
    %c3 = arith.constant 3 : index
    %c0_17 = arith.constant 0 : index
    %c0_18 = arith.constant 0 : index
    %17 = vector.load %arg1[%c3, %c0_17, %c0_18] : memref<32x16x32xbf16, #tpu.memory_space<vmem>>, vector<28x16x32xbf16>
    %18 = vector.shape_cast %17 : vector<28x16x32xbf16> to vector<448x32xbf16>
    %c3_19 = arith.constant 3 : index
    %c0_20 = arith.constant 0 : index
    %c0_21 = arith.constant 0 : index
    %19 = vector.load %arg2[%c3_19, %c0_20, %c0_21] : memref<5x32x256xbf16, #tpu.memory_space<vmem>>, vector<1x32x256xbf16>
    %20 = vector.shape_cast %19 : vector<1x32x256xbf16> to vector<32x256xbf16>
    %cst_22 = arith.constant dense<0.000000e+00> : vector<448x256xf32>
    %21 = tpu.matmul %18, %20, %cst_22 {dimension_numbers = #tpu.dot_dimension_numbers<[1], [0], [0], [1], [0, 0, 1, 1], [], []>} : vector<448x32xbf16>, vector<32x256xbf16>, vector<448x256xf32> -> vector<448x256xf32>
    %22 = arith.addf %16, %21 : vector<448x256xf32>
    %c4 = arith.constant 4 : index
    %c0_23 = arith.constant 0 : index
    %c0_24 = arith.constant 0 : index
    %23 = vector.load %arg1[%c4, %c0_23, %c0_24] : memref<32x16x32xbf16, #tpu.memory_space<vmem>>, vector<28x16x32xbf16>
    %24 = vector.shape_cast %23 : vector<28x16x32xbf16> to vector<448x32xbf16>
    %c4_25 = arith.constant 4 : index
    %c0_26 = arith.constant 0 : index
    %c0_27 = arith.constant 0 : index
    %25 = vector.load %arg2[%c4_25, %c0_26, %c0_27] : memref<5x32x256xbf16, #tpu.memory_space<vmem>>, vector<1x32x256xbf16>
    %26 = vector.shape_cast %25 : vector<1x32x256xbf16> to vector<32x256xbf16>
    %cst_28 = arith.constant dense<0.000000e+00> : vector<448x256xf32>
    %27 = tpu.matmul %24, %26, %cst_28 {dimension_numbers = #tpu.dot_dimension_numbers<[1], [0], [0], [1], [0, 0, 1, 1], [], []>} : vector<448x32xbf16>, vector<32x256xbf16>, vector<448x256xf32> -> vector<448x256xf32>
    %28 = arith.addf %22, %27 : vector<448x256xf32>
    %29 = vector.extract_strided_slice %28 {offsets = [0, 0], sizes = [448, 128], strides = [1, 1]} : vector<448x256xf32> to vector<448x128xf32>
    %30 = vector.extract_strided_slice %28 {offsets = [0, 128], sizes = [448, 128], strides = [1, 1]} : vector<448x256xf32> to vector<448x128xf32>
    %31 = arith.maximumf %29, %30 : vector<448x128xf32>
    %c0_29 = arith.constant 0 : index
    %c0_30 = arith.constant 0 : index
    %32 = vector.load %arg3[%c0_29, %c0_30] : memref<1x128xf32, #tpu.memory_space<vmem>>, vector<1x128xf32>
    %33 = vector.broadcast %32 : vector<1x128xf32> to vector<448x128xf32>
    %34 = arith.addf %31, %33 : vector<448x128xf32>
    %cst_31 = arith.constant 0.000000e+00 : f32
    %35 = vector.broadcast %cst_31 : f32 to vector<448x128xf32>
    %36 = arith.maximumf %34, %35 : vector<448x128xf32>
    %37 = vector.extract_strided_slice %36 {offsets = [0, 0], sizes = [16, 128], strides = [1, 1]} : vector<448x128xf32> to vector<16x128xf32>
    %38 = vector.extract_strided_slice %36 {offsets = [16, 0], sizes = [16, 128], strides = [1, 1]} : vector<448x128xf32> to vector<16x128xf32>
    %39 = arith.maximumf %37, %38 : vector<16x128xf32>
    %40 = vector.extract_strided_slice %36 {offsets = [32, 0], sizes = [16, 128], strides = [1, 1]} : vector<448x128xf32> to vector<16x128xf32>
    %41 = vector.extract_strided_slice %36 {offsets = [48, 0], sizes = [16, 128], strides = [1, 1]} : vector<448x128xf32> to vector<16x128xf32>
    %42 = arith.maximumf %40, %41 : vector<16x128xf32>
    %43 = vector.extract_strided_slice %36 {offsets = [64, 0], sizes = [16, 128], strides = [1, 1]} : vector<448x128xf32> to vector<16x128xf32>
    %44 = vector.extract_strided_slice %36 {offsets = [80, 0], sizes = [16, 128], strides = [1, 1]} : vector<448x128xf32> to vector<16x128xf32>
    %45 = arith.maximumf %43, %44 : vector<16x128xf32>
    %46 = vector.extract_strided_slice %36 {offsets = [96, 0], sizes = [16, 128], strides = [1, 1]} : vector<448x128xf32> to vector<16x128xf32>
    %47 = vector.extract_strided_slice %36 {offsets = [112, 0], sizes = [16, 128], strides = [1, 1]} : vector<448x128xf32> to vector<16x128xf32>
    %48 = arith.maximumf %46, %47 : vector<16x128xf32>
    %49 = vector.extract_strided_slice %36 {offsets = [128, 0], sizes = [16, 128], strides = [1, 1]} : vector<448x128xf32> to vector<16x128xf32>
    %50 = vector.extract_strided_slice %36 {offsets = [144, 0], sizes = [16, 128], strides = [1, 1]} : vector<448x128xf32> to vector<16x128xf32>
    %51 = arith.maximumf %49, %50 : vector<16x128xf32>
    %52 = vector.extract_strided_slice %36 {offsets = [160, 0], sizes = [16, 128], strides = [1, 1]} : vector<448x128xf32> to vector<16x128xf32>
    %53 = vector.extract_strided_slice %36 {offsets = [176, 0], sizes = [16, 128], strides = [1, 1]} : vector<448x128xf32> to vector<16x128xf32>
    %54 = arith.maximumf %52, %53 : vector<16x128xf32>
    %55 = vector.extract_strided_slice %36 {offsets = [192, 0], sizes = [16, 128], strides = [1, 1]} : vector<448x128xf32> to vector<16x128xf32>
    %56 = vector.extract_strided_slice %36 {offsets = [208, 0], sizes = [16, 128], strides = [1, 1]} : vector<448x128xf32> to vector<16x128xf32>
    %57 = arith.maximumf %55, %56 : vector<16x128xf32>
    %58 = vector.extract_strided_slice %36 {offsets = [224, 0], sizes = [16, 128], strides = [1, 1]} : vector<448x128xf32> to vector<16x128xf32>
    %59 = vector.extract_strided_slice %36 {offsets = [240, 0], sizes = [16, 128], strides = [1, 1]} : vector<448x128xf32> to vector<16x128xf32>
    %60 = arith.maximumf %58, %59 : vector<16x128xf32>
    %61 = vector.extract_strided_slice %36 {offsets = [256, 0], sizes = [16, 128], strides = [1, 1]} : vector<448x128xf32> to vector<16x128xf32>
    %62 = vector.extract_strided_slice %36 {offsets = [272, 0], sizes = [16, 128], strides = [1, 1]} : vector<448x128xf32> to vector<16x128xf32>
    %63 = arith.maximumf %61, %62 : vector<16x128xf32>
    %64 = vector.extract_strided_slice %36 {offsets = [288, 0], sizes = [16, 128], strides = [1, 1]} : vector<448x128xf32> to vector<16x128xf32>
    %65 = vector.extract_strided_slice %36 {offsets = [304, 0], sizes = [16, 128], strides = [1, 1]} : vector<448x128xf32> to vector<16x128xf32>
    %66 = arith.maximumf %64, %65 : vector<16x128xf32>
    %67 = vector.extract_strided_slice %36 {offsets = [320, 0], sizes = [16, 128], strides = [1, 1]} : vector<448x128xf32> to vector<16x128xf32>
    %68 = vector.extract_strided_slice %36 {offsets = [336, 0], sizes = [16, 128], strides = [1, 1]} : vector<448x128xf32> to vector<16x128xf32>
    %69 = arith.maximumf %67, %68 : vector<16x128xf32>
    %70 = vector.extract_strided_slice %36 {offsets = [352, 0], sizes = [16, 128], strides = [1, 1]} : vector<448x128xf32> to vector<16x128xf32>
    %71 = vector.extract_strided_slice %36 {offsets = [368, 0], sizes = [16, 128], strides = [1, 1]} : vector<448x128xf32> to vector<16x128xf32>
    %72 = arith.maximumf %70, %71 : vector<16x128xf32>
    %73 = vector.extract_strided_slice %36 {offsets = [384, 0], sizes = [16, 128], strides = [1, 1]} : vector<448x128xf32> to vector<16x128xf32>
    %74 = vector.extract_strided_slice %36 {offsets = [400, 0], sizes = [16, 128], strides = [1, 1]} : vector<448x128xf32> to vector<16x128xf32>
    %75 = arith.maximumf %73, %74 : vector<16x128xf32>
    %76 = vector.extract_strided_slice %36 {offsets = [416, 0], sizes = [16, 128], strides = [1, 1]} : vector<448x128xf32> to vector<16x128xf32>
    %77 = vector.extract_strided_slice %36 {offsets = [432, 0], sizes = [16, 128], strides = [1, 1]} : vector<448x128xf32> to vector<16x128xf32>
    %78 = arith.maximumf %76, %77 : vector<16x128xf32>
    %79 = tpu.concatenate %39, %42, %45, %48, %51, %54, %57, %60, %63, %66, %69, %72, %75, %78 in 0 : vector<16x128xf32>, vector<16x128xf32>, vector<16x128xf32>, vector<16x128xf32>, vector<16x128xf32>, vector<16x128xf32>, vector<16x128xf32>, vector<16x128xf32>, vector<16x128xf32>, vector<16x128xf32>, vector<16x128xf32>, vector<16x128xf32>, vector<16x128xf32>, vector<16x128xf32> -> vector<224x128xf32>
    %80 = arith.truncf %79 : vector<224x128xf32> to vector<224x128xbf16>
    %81 = vector.extract_strided_slice %80 {offsets = [0, 0], sizes = [160, 128], strides = [1, 1]} : vector<224x128xbf16> to vector<160x128xbf16>
    %82 = vector.extract_strided_slice %80 {offsets = [16, 0], sizes = [160, 128], strides = [1, 1]} : vector<224x128xbf16> to vector<160x128xbf16>
    %83 = vector.extract_strided_slice %80 {offsets = [32, 0], sizes = [160, 128], strides = [1, 1]} : vector<224x128xbf16> to vector<160x128xbf16>
    %84 = vector.extract_strided_slice %80 {offsets = [48, 0], sizes = [160, 128], strides = [1, 1]} : vector<224x128xbf16> to vector<160x128xbf16>
    %85 = vector.extract_strided_slice %80 {offsets = [64, 0], sizes = [160, 128], strides = [1, 1]} : vector<224x128xbf16> to vector<160x128xbf16>
    %86 = tpu.concatenate %81, %82, %83, %84, %85 in 1 : vector<160x128xbf16>, vector<160x128xbf16>, vector<160x128xbf16>, vector<160x128xbf16>, vector<160x128xbf16> -> vector<160x640xbf16>
    %c0_32 = arith.constant 0 : index
    %c0_33 = arith.constant 0 : index
    %87 = vector.load %arg4[%c0_32, %c0_33] : memref<640x256xbf16, #tpu.memory_space<vmem>>, vector<640x256xbf16>
    %cst_34 = arith.constant dense<0.000000e+00> : vector<160x256xf32>
    %88 = tpu.matmul %86, %87, %cst_34 {dimension_numbers = #tpu.dot_dimension_numbers<[1], [0], [0], [1], [0, 0, 1, 1], [], []>} : vector<160x640xbf16>, vector<640x256xbf16>, vector<160x256xf32> -> vector<160x256xf32>
    %89 = vector.extract_strided_slice %88 {offsets = [0, 0], sizes = [160, 128], strides = [1, 1]} : vector<160x256xf32> to vector<160x128xf32>
    %90 = vector.extract_strided_slice %88 {offsets = [0, 128], sizes = [160, 128], strides = [1, 1]} : vector<160x256xf32> to vector<160x128xf32>
    %91 = arith.maximumf %89, %90 : vector<160x128xf32>
    %c0_35 = arith.constant 0 : index
    %c0_36 = arith.constant 0 : index
    %92 = vector.load %arg5[%c0_35, %c0_36] : memref<1x128xf32, #tpu.memory_space<vmem>>, vector<1x128xf32>
    %93 = vector.broadcast %92 : vector<1x128xf32> to vector<160x128xf32>
    %94 = arith.addf %91, %93 : vector<160x128xf32>
    %cst_37 = arith.constant 0.000000e+00 : f32
    %95 = vector.broadcast %cst_37 : f32 to vector<160x128xf32>
    %96 = arith.maximumf %94, %95 : vector<160x128xf32>
    %97 = vector.extract_strided_slice %96 {offsets = [0, 0], sizes = [16, 128], strides = [1, 1]} : vector<160x128xf32> to vector<16x128xf32>
    %98 = vector.extract_strided_slice %96 {offsets = [16, 0], sizes = [16, 128], strides = [1, 1]} : vector<160x128xf32> to vector<16x128xf32>
    %99 = arith.maximumf %97, %98 : vector<16x128xf32>
    %100 = arith.truncf %99 : vector<16x128xf32> to vector<16x128xbf16>
    %101 = vector.extract_strided_slice %96 {offsets = [32, 0], sizes = [16, 128], strides = [1, 1]} : vector<160x128xf32> to vector<16x128xf32>
    %102 = vector.extract_strided_slice %96 {offsets = [48, 0], sizes = [16, 128], strides = [1, 1]} : vector<160x128xf32> to vector<16x128xf32>
    %103 = arith.maximumf %101, %102 : vector<16x128xf32>
    %104 = arith.truncf %103 : vector<16x128xf32> to vector<16x128xbf16>
    %105 = vector.extract_strided_slice %96 {offsets = [64, 0], sizes = [16, 128], strides = [1, 1]} : vector<160x128xf32> to vector<16x128xf32>
    %106 = vector.extract_strided_slice %96 {offsets = [80, 0], sizes = [16, 128], strides = [1, 1]} : vector<160x128xf32> to vector<16x128xf32>
    %107 = arith.maximumf %105, %106 : vector<16x128xf32>
    %108 = arith.truncf %107 : vector<16x128xf32> to vector<16x128xbf16>
    %109 = vector.extract_strided_slice %96 {offsets = [96, 0], sizes = [16, 128], strides = [1, 1]} : vector<160x128xf32> to vector<16x128xf32>
    %110 = vector.extract_strided_slice %96 {offsets = [112, 0], sizes = [16, 128], strides = [1, 1]} : vector<160x128xf32> to vector<16x128xf32>
    %111 = arith.maximumf %109, %110 : vector<16x128xf32>
    %112 = arith.truncf %111 : vector<16x128xf32> to vector<16x128xbf16>
    %113 = vector.extract_strided_slice %96 {offsets = [128, 0], sizes = [16, 128], strides = [1, 1]} : vector<160x128xf32> to vector<16x128xf32>
    %114 = vector.extract_strided_slice %96 {offsets = [144, 0], sizes = [16, 128], strides = [1, 1]} : vector<160x128xf32> to vector<16x128xf32>
    %115 = arith.maximumf %113, %114 : vector<16x128xf32>
    %116 = arith.truncf %115 : vector<16x128xf32> to vector<16x128xbf16>
    %117 = tpu.concatenate %100, %104, %108, %112, %116 in 1 : vector<16x128xbf16>, vector<16x128xbf16>, vector<16x128xbf16>, vector<16x128xbf16>, vector<16x128xbf16> -> vector<16x640xbf16>
    %c0_38 = arith.constant 0 : index
    %c0_39 = arith.constant 0 : index
    %118 = vector.load %arg6[%c0_38, %c0_39] : memref<640x128xbf16, #tpu.memory_space<vmem>>, vector<640x128xbf16>
    %cst_40 = arith.constant dense<0.000000e+00> : vector<16x128xf32>
    %119 = tpu.matmul %117, %118, %cst_40 {dimension_numbers = #tpu.dot_dimension_numbers<[1], [0], [0], [1], [0, 0, 1, 1], [], []>} : vector<16x640xbf16>, vector<640x128xbf16>, vector<16x128xf32> -> vector<16x128xf32>
    %c0_41 = arith.constant 0 : index
    %c0_42 = arith.constant 0 : index
    %120 = vector.load %arg7[%c0_41, %c0_42] : memref<1x128xf32, #tpu.memory_space<vmem>>, vector<1x128xf32>
    %121 = vector.broadcast %120 : vector<1x128xf32> to vector<16x128xf32>
    %122 = arith.addf %119, %121 : vector<16x128xf32>
    %cst_43 = arith.constant 0.000000e+00 : f32
    %123 = vector.broadcast %cst_43 : f32 to vector<16x128xf32>
    %124 = arith.maximumf %122, %123 : vector<16x128xf32>
    %125 = arith.truncf %124 : vector<16x128xf32> to vector<16x128xbf16>
    %c0_44 = arith.constant 0 : index
    %c0_45 = arith.constant 0 : index
    %126 = vector.load %arg8[%c0_44, %c0_45] : memref<128x128xbf16, #tpu.memory_space<vmem>>, vector<128x128xbf16>
    %cst_46 = arith.constant dense<0.000000e+00> : vector<16x128xf32>
    %127 = tpu.matmul %125, %126, %cst_46 {dimension_numbers = #tpu.dot_dimension_numbers<[1], [0], [0], [1], [0, 0, 1, 1], [], []>} : vector<16x128xbf16>, vector<128x128xbf16>, vector<16x128xf32> -> vector<16x128xf32>
    %c0_47 = arith.constant 0 : index
    %c0_48 = arith.constant 0 : index
    %128 = vector.load %arg9[%c0_47, %c0_48] : memref<1x128xf32, #tpu.memory_space<vmem>>, vector<1x128xf32>
    %129 = vector.broadcast %128 : vector<1x128xf32> to vector<16x128xf32>
    %130 = arith.addf %127, %129 : vector<16x128xf32>
    %cst_49 = arith.constant 0.000000e+00 : f32
    %131 = vector.broadcast %cst_49 : f32 to vector<16x128xf32>
    %132 = arith.maximumf %130, %131 : vector<16x128xf32>
    %133 = arith.truncf %132 : vector<16x128xf32> to vector<16x128xbf16>
    %c0_50 = arith.constant 0 : index
    %c0_51 = arith.constant 0 : index
    %134 = vector.load %arg10[%c0_50, %c0_51] : memref<128x128xbf16, #tpu.memory_space<vmem>>, vector<128x128xbf16>
    %cst_52 = arith.constant dense<0.000000e+00> : vector<16x128xf32>
    %135 = tpu.matmul %133, %134, %cst_52 {dimension_numbers = #tpu.dot_dimension_numbers<[1], [0], [0], [1], [0, 0, 1, 1], [], []>} : vector<16x128xbf16>, vector<128x128xbf16>, vector<16x128xf32> -> vector<16x128xf32>
    %c0_53 = arith.constant 0 : index
    %c0_54 = arith.constant 0 : index
    %136 = vector.load %arg11[%c0_53, %c0_54] : memref<1x128xf32, #tpu.memory_space<vmem>>, vector<1x128xf32>
    %137 = vector.broadcast %136 : vector<1x128xf32> to vector<16x128xf32>
    %138 = arith.addf %135, %137 : vector<16x128xf32>
    %c0_55 = arith.constant 0 : index
    %c0_56 = arith.constant 0 : index
    %139 = vector.load %arg12[%c0_55, %c0_56] : memref<16x128xf32, #tpu.memory_space<vmem>>, vector<16x128xf32>
    tpu.vector_store %arg12[%c0_55, %c0_56], %138 {strides = array<i32>} : memref<16x128xf32, #tpu.memory_space<vmem>>, vector<16x128xf32>,
    return
  }
  func.func @transform_0(%arg0: i32) -> (i32, i32, i32) {
    %c0_i32 = arith.constant 0 : i32
    %c0_i32_0 = arith.constant 0 : i32
    %c0_i32_1 = arith.constant 0 : i32
    return %c0_i32, %arg0, %c0_i32_0 : i32, i32, i32
  }
  func.func @transform_1(%arg0: i32) -> (i32, i32, i32) {
    %c0_i32 = arith.constant 0 : i32
    %c0_i32_0 = arith.constant 0 : i32
    %c0_i32_1 = arith.constant 0 : i32
    %c0_i32_2 = arith.constant 0 : i32
    return %c0_i32, %c0_i32_0, %c0_i32_1 : i32, i32, i32
  }
  func.func @transform_2(%arg0: i32) -> (i32, i32) {
    %c0_i32 = arith.constant 0 : i32
    %c0_i32_0 = arith.constant 0 : i32
    %c0_i32_1 = arith.constant 0 : i32
    return %c0_i32, %c0_i32_0 : i32, i32
  }
  func.func @transform_3(%arg0: i32) -> (i32, i32) {
    %c0_i32 = arith.constant 0 : i32
    %c0_i32_0 = arith.constant 0 : i32
    %c0_i32_1 = arith.constant 0 : i32
    return %c0_i32, %c0_i32_0 : i32, i32
  }
  func.func @transform_4(%arg0: i32) -> (i32, i32) {
    %c0_i32 = arith.constant 0 : i32
    %c0_i32_0 = arith.constant 0 : i32
    %c0_i32_1 = arith.constant 0 : i32
    return %c0_i32, %c0_i32_0 : i32, i32
  }
  func.func @transform_5(%arg0: i32) -> (i32, i32) {
    %c0_i32 = arith.constant 0 : i32
    %c0_i32_0 = arith.constant 0 : i32
    %c0_i32_1 = arith.constant 0 : i32
    return %c0_i32, %c0_i32_0 : i32, i32
  }
  func.func @transform_6(%arg0: i32) -> (i32, i32) {
    %c0_i32 = arith.constant 0 : i32
    %c0_i32_0 = arith.constant 0 : i32
    %c0_i32_1 = arith.constant 0 : i32
    return %c0_i32, %c0_i32_0 : i32, i32
  }
  func.func @transform_7(%arg0: i32) -> (i32, i32) {
    %c0_i32 = arith.constant 0 : i32
    %c0_i32_0 = arith.constant 0 : i32
    %c0_i32_1 = arith.constant 0 : i32
    return %c0_i32, %c0_i32_0 : i32, i32
  }
  func.func @transform_8(%arg0: i32) -> (i32, i32) {
    %c0_i32 = arith.constant 0 : i32
    %c0_i32_0 = arith.constant 0 : i32
    %c0_i32_1 = arith.constant 0 : i32
    return %c0_i32, %c0_i32_0 : i32, i32
  }
  func.func @transform_9(%arg0: i32) -> (i32, i32) {
    %c0_i32 = arith.constant 0 : i32
    %c0_i32_0 = arith.constant 0 : i32
    %c0_i32_1 = arith.constant 0 : i32
    return %c0_i32, %c0_i32_0 : i32, i32
  }
  func.func @transform_10(%arg0: i32) -> (i32, i32) {
    %c0_i32 = arith.constant 0 : i32
    %c0_i32_0 = arith.constant 0 : i32
    %c0_i32_1 = arith.constant 0 : i32
    return %c0_i32, %c0_i32_0 : i32, i32
  }
  func.func @transform_11(%arg0: i32) -> (i32, i32) {
    %c0_i32 = arith.constant 0 : i32
    %c0_i32_0 = arith.constant 0 : i32
    return %arg0, %c0_i32 : i32, i32
  }
}

</mosaic_0001>

<llo_original>
// kernel: lenet_forward.1
$region0: #{lenet_forward.1}
  #allocation0 [shape = 'u32[]', space=smem, size = 0x4, offset = 0x4, fixed_abs, tag = 'smem constant byte address 0x4 - core index']
  #allocation1 [shape = 'u32[72,128]{1,0:T(1,128)}', space=vmem, size = 0x9000, scoped, tag = 'internal scratch']
  %s0 = inlined_call_operand.vmem [shape: bf16[32,16,32], index: 0, kind: input, shape index: {}]
  %s1 = inlined_call_operand.hbm [shape: bf16[5,32,256], index: 1, kind: input, shape index: {}]
  %s2 = inlined_call_operand.vmem [shape: f32[1,128], index: 2, kind: input, shape index: {}]
  %s3 = inlined_call_operand.hbm [shape: bf16[640,256], index: 3, kind: input, shape index: {}]
  %s4 = inlined_call_operand.vmem [shape: f32[1,128], index: 4, kind: input, shape index: {}]
  %s5 = inlined_call_operand.vmem [shape: bf16[640,128], index: 5, kind: input, shape index: {}]
  %s6 = inlined_call_operand.vmem [shape: f32[1,128], index: 6, kind: input, shape index: {}]
  %s7 = inlined_call_operand.hbm [shape: bf16[128,128], index: 7, kind: input, shape index: {}]
  %s8 = inlined_call_operand.vmem [shape: f32[1,128], index: 8, kind: input, shape index: {}]
  %s9 = inlined_call_operand.hbm [shape: bf16[128,128], index: 9, kind: input, shape index: {}]
  %s10 = inlined_call_operand.vmem [shape: f32[1,128], index: 10, kind: input, shape index: {}]
  %s11 = inlined_call_operand.vmem [shape: f32[16,128], index: 11, kind: output, shape index: {}]
  %s12 = sld [smem:[#allocation0]]
  $region70: #{lenet_forward.1} parent=0
    _
  %s14 = ssub.s32 1, %s12
  %s15 = scalar_select 0, %s14, %s12
  $region1: #{lenet_forward.1} parent=0
    #allocation2 [shape = 'u8[81920]{0}', space=vmem, size = 0x14000, scoped, tag = 'input window, operand 1, single buffered']
    #allocation3 [shape = 's32[1]{0}', space=sflag, size = 0x4, scoped, tag = 'scoped memory for lenet_forward.1']
    #allocation4 [shape = 'u8[327680]{0}', space=vmem, size = 0x50000, scoped, tag = 'input window, operand 3, single buffered']
    #allocation5 [shape = 's32[1]{0}', space=sflag, size = 0x4, scoped, tag = 'scoped memory for lenet_forward.1']
    #allocation6 [shape = 'u8[32768]{0}', space=vmem, size = 0x8000, scoped, tag = 'input window, operand 7, single buffered']
    #allocation7 [shape = 'u8[32768]{0}', space=vmem, size = 0x8000, scoped, tag = 'input window, operand 9, single buffered']
    #allocation8 [shape = 's32[1]{0}', space=sflag, size = 0x4, scoped, tag = 'scoped memory for lenet_forward.1']
    %16 = vsyncpa [#allocation3], 0
    %17 = vsyncpa [#allocation5], 0
    %18 = vsyncpa [#allocation8], 0
    // Predicated region
    $region2: #{lenet_forward.1} parent=1 // pred_check
      _
    $region3: #{lenet_forward.1} parent=1 // pred_check_branch
      %20 = sbr.rel (0) target = $region5
    $region4: #{lenet_forward.1} parent=1 // pred_region
      _
    $region5: #{lenet_forward.1} parent=1 // pred_fallthru
      _
    // Predicated region
    $region6: #{lenet_forward.1} parent=1 // pred_check
      _
    $region7: #{lenet_forward.1} parent=1 // pred_check_branch
      %22 = sbr.rel (0) target = $region9
    $region8: #{lenet_forward.1} parent=1 // pred_region
      %24 = vsyncadd [#allocation3], 0
      %s25 = sshll.u32 %s1, 4
      %s26 = int_to_ptr.hbm [resolvable:$true] %s25
      %s27 = sshll.u32 [#allocation2], 4
      %s28 = int_to_ptr.vmem [resolvable:$true] %s27
      %33 = dma.hbm_to_vmem [thread:$0]  %s26, 2560, %s28, [#allocation3], 128, 128, 8
    $region9: #{lenet_forward.1} parent=1 // pred_fallthru
      _
    // Predicated region
    $region10: #{lenet_forward.1} parent=1 // pred_check
      _
    $region11: #{lenet_forward.1} parent=1 // pred_check_branch
      %35 = sbr.rel (0) target = $region13
    $region12: #{lenet_forward.1} parent=1 // pred_region
      _
    $region13: #{lenet_forward.1} parent=1 // pred_fallthru
      _
    // Predicated region
    $region14: #{lenet_forward.1} parent=1 // pred_check
      _
    $region15: #{lenet_forward.1} parent=1 // pred_check_branch
      %37 = sbr.rel (0) target = $region17
    $region16: #{lenet_forward.1} parent=1 // pred_region
      %39 = vsyncadd [#allocation5], 0
      %s40 = sshll.u32 %s3, 4
      %s41 = int_to_ptr.hbm [resolvable:$true] %s40
      %s42 = sshll.u32 [#allocation4], 4
      %s43 = int_to_ptr.vmem [resolvable:$true] %s42
      %48 = dma.hbm_to_vmem [thread:$0]  %s41, 10240, %s43, [#allocation5], 128, 128, 8
    $region17: #{lenet_forward.1} parent=1 // pred_fallthru
      _
    // Predicated region
    $region18: #{lenet_forward.1} parent=1 // pred_check
      _
    $region19: #{lenet_forward.1} parent=1 // pred_check_branch
      %50 = sbr.rel (0) target = $region21
    $region20: #{lenet_forward.1} parent=1 // pred_region
      _
    $region21: #{lenet_forward.1} parent=1 // pred_fallthru
      _
    // Predicated region
    $region22: #{lenet_forward.1} parent=1 // pred_check
      _
    $region23: #{lenet_forward.1} parent=1 // pred_check_branch
      %52 = sbr.rel (0) target = $region25
    $region24: #{lenet_forward.1} parent=1 // pred_region
      _
    $region25: #{lenet_forward.1} parent=1 // pred_fallthru
      _
    // Predicated region
    $region26: #{lenet_forward.1} parent=1 // pred_check
      _
    $region27: #{lenet_forward.1} parent=1 // pred_check_branch
      %54 = sbr.rel (0) target = $region29
    $region28: #{lenet_forward.1} parent=1 // pred_region
      _
    $region29: #{lenet_forward.1} parent=1 // pred_fallthru
      _
    // Predicated region
    $region30: #{lenet_forward.1} parent=1 // pred_check
      _
    $region31: #{lenet_forward.1} parent=1 // pred_check_branch
      %56 = sbr.rel (0) target = $region33
    $region32: #{lenet_forward.1} parent=1 // pred_region
      %58 = vsyncadd [#allocation5], 0
      %s59 = sshll.u32 %s7, 4
      %s60 = int_to_ptr.hbm [resolvable:$true] %s59
      %s61 = sshll.u32 [#allocation6], 4
      %s62 = int_to_ptr.vmem [resolvable:$true] %s61
      %67 = dma.hbm_to_vmem [thread:$0]  %s60, 1024, %s62, [#allocation5], 64, 64, 4
    $region33: #{lenet_forward.1} parent=1 // pred_fallthru
      _
    // Predicated region
    $region34: #{lenet_forward.1} parent=1 // pred_check
      _
    $region35: #{lenet_forward.1} parent=1 // pred_check_branch
      %69 = sbr.rel (0) target = $region37
    $region36: #{lenet_forward.1} parent=1 // pred_region
      _
    $region37: #{lenet_forward.1} parent=1 // pred_fallthru
      _
    // Predicated region
    $region38: #{lenet_forward.1} parent=1 // pred_check
      _
    $region39: #{lenet_forward.1} parent=1 // pred_check_branch
      %71 = sbr.rel (0) target = $region41
    $region40: #{lenet_forward.1} parent=1 // pred_region
      %73 = vsyncadd [#allocation8], 0
      %s74 = sshll.u32 %s9, 4
      %s75 = int_to_ptr.hbm [resolvable:$true] %s74
      %s76 = sshll.u32 [#allocation7], 4
      %s77 = int_to_ptr.vmem [resolvable:$true] %s76
      %82 = dma.hbm_to_vmem [thread:$0]  %s75, 1024, %s77, [#allocation8], 64, 64, 4
    $region41: #{lenet_forward.1} parent=1 // pred_fallthru
      _
    // Predicated region
    $region42: #{lenet_forward.1} parent=1 // pred_check
      _
    $region43: #{lenet_forward.1} parent=1 // pred_check_branch
      %84 = sbr.rel (0) target = $region45
    $region44: #{lenet_forward.1} parent=1 // pred_region
      _
    $region45: #{lenet_forward.1} parent=1 // pred_fallthru
      _
    // Predicated region
    $region46: #{lenet_forward.1} parent=1 // pred_check
      _
    $region47: #{lenet_forward.1} parent=1 // pred_check_branch
      %86 = sbr.rel (0) target = $region49
    $region48: #{lenet_forward.1} parent=1 // pred_region
      %88 = dma.done [#allocation3], 2560
    $region49: #{lenet_forward.1} parent=1 // pred_fallthru
      _
    // Predicated region
    $region50: #{lenet_forward.1} parent=1 // pred_check
      _
    $region51: #{lenet_forward.1} parent=1 // pred_check_branch
      %90 = sbr.rel (0) target = $region53
    $region52: #{lenet_forward.1} parent=1 // pred_region
      %92 = dma.done [#allocation5], 10240
    $region53: #{lenet_forward.1} parent=1 // pred_fallthru
      _
    // Predicated region
    $region54: #{lenet_forward.1} parent=1 // pred_check
      _
    $region55: #{lenet_forward.1} parent=1 // pred_check_branch
      %94 = sbr.rel (0) target = $region57
    $region56: #{lenet_forward.1} parent=1 // pred_region
      %96 = dma.done [#allocation5], 1024
    $region57: #{lenet_forward.1} parent=1 // pred_fallthru
      _
    // Predicated region
    $region58: #{lenet_forward.1} parent=1 // pred_check
      _
    $region59: #{lenet_forward.1} parent=1 // pred_check_branch
      %98 = sbr.rel (0) target = $region61
    $region60: #{lenet_forward.1} parent=1 // pred_region
      %100 = dma.done [#allocation8], 1024
    $region61: #{lenet_forward.1} parent=1 // pred_fallthru
      _
    %v102 = vld [vmem:[%s0] sm:$0xf]
    %v103 = vld [vmem:[%s0 + $0x4] sm:$0xf]
    %v104 = vld [vmem:[%s0 + $0x8] sm:$0xf]
    %v105 = vld [vmem:[%s0 + $0xc] sm:$0xf]
    %v106 = vld [vmem:[%s0 + $0x10] sm:$0xf]
    %v107 = vld [vmem:[%s0 + $0x14] sm:$0xf]
    %v108 = vld [vmem:[%s0 + $0x18] sm:$0xf]
    %v109 = vld [vmem:[%s0 + $0x1c] sm:$0xf]
    %v110 = vld [vmem:[%s0 + $0x20] sm:$0xf]
    %v111 = vld [vmem:[%s0 + $0x24] sm:$0xf]
    %v112 = vld [vmem:[%s0 + $0x28] sm:$0xf]
    %v113 = vld [vmem:[%s0 + $0x2c] sm:$0xf]
    %v114 = vld [vmem:[%s0 + $0x30] sm:$0xf]
    %v115 = vld [vmem:[%s0 + $0x34] sm:$0xf]
    %v116 = vld [vmem:[%s0 + $0x38] sm:$0xf]
    %v117 = vld [vmem:[%s0 + $0x3c] sm:$0xf]
    %v118 = vld [vmem:[%s0 + $0x40] sm:$0xf]
    %v119 = vld [vmem:[%s0 + $0x44] sm:$0xf]
    %v120 = vld [vmem:[%s0 + $0x48] sm:$0xf]
    %v121 = vld [vmem:[%s0 + $0x4c] sm:$0xf]
    %v122 = vld [vmem:[%s0 + $0x50] sm:$0xf]
    %v123 = vld [vmem:[%s0 + $0x54] sm:$0xf]
    %v124 = vld [vmem:[%s0 + $0x58] sm:$0xf]
    %v125 = vld [vmem:[%s0 + $0x5c] sm:$0xf]
    %v126 = vld [vmem:[%s0 + $0x60] sm:$0xf]
    %v127 = vld [vmem:[%s0 + $0x64] sm:$0xf]
    %v128 = vld [vmem:[%s0 + $0x68] sm:$0xf]
    %v129 = vld [vmem:[%s0 + $0x6c] sm:$0xf]
    %v130 = vld [vmem:[%s0 + $0x70] sm:$0xf]
    %v131 = vld [vmem:[%s0 + $0x74] sm:$0xf]
    %v132 = vld [vmem:[%s0 + $0x78] sm:$0xf]
    %v133 = vld [vmem:[%s0 + $0x7c] sm:$0xf]
    %v134 = vld [vmem:[%s0 + $0x80] sm:$0xf]
    %v135 = vld [vmem:[%s0 + $0x84] sm:$0xf]
    %v136 = vld [vmem:[%s0 + $0x88] sm:$0xf]
    %v137 = vld [vmem:[%s0 + $0x8c] sm:$0xf]
    %v138 = vld [vmem:[%s0 + $0x90] sm:$0xf]
    %v139 = vld [vmem:[%s0 + $0x94] sm:$0xf]
    %v140 = vld [vmem:[%s0 + $0x98] sm:$0xf]
    %v141 = vld [vmem:[%s0 + $0x9c] sm:$0xf]
    %v142 = vld [vmem:[%s0 + $0xa0] sm:$0xf]
    %v143 = vld [vmem:[%s0 + $0xa4] sm:$0xf]
    %v144 = vld [vmem:[%s0 + $0xa8] sm:$0xf]
    %v145 = vld [vmem:[%s0 + $0xac] sm:$0xf]
    %v146 = vld [vmem:[%s0 + $0xb0] sm:$0xf]
    %v147 = vld [vmem:[%s0 + $0xb4] sm:$0xf]
    %v148 = vld [vmem:[%s0 + $0xb8] sm:$0xf]
    %v149 = vld [vmem:[%s0 + $0xbc] sm:$0xf]
    %v150 = vld [vmem:[%s0 + $0xc0] sm:$0xf]
    %v151 = vld [vmem:[%s0 + $0xc4] sm:$0xf]
    %v152 = vld [vmem:[%s0 + $0xc8] sm:$0xf]
    %v153 = vld [vmem:[%s0 + $0xcc] sm:$0xf]
    %v154 = vld [vmem:[%s0 + $0xd0] sm:$0xf]
    %v155 = vld [vmem:[%s0 + $0xd4] sm:$0xf]
    %v156 = vld [vmem:[%s0 + $0xd8] sm:$0xf]
    %v157 = vld [vmem:[%s0 + $0xdc] sm:$0xf]
    %v158 = vld [vmem:[#allocation2] sm:$0xff]
    %v159 = vld [vmem:[#allocation2 + $0x8] sm:$0xff]
    %v160 = vld [vmem:[#allocation2 + $0x10] sm:$0xff]
    %v161 = vld [vmem:[#allocation2 + $0x18] sm:$0xff]
    %s162 = scalar_lea.vmem %s0, 8
    %v163 = vld [vmem:[%s162] sm:$0xf]
    %v164 = vld [vmem:[%s162 + $0x4] sm:$0xf]
    %v165 = vld [vmem:[%s162 + $0x8] sm:$0xf]
    %v166 = vld [vmem:[%s162 + $0xc] sm:$0xf]
    %v167 = vld [vmem:[%s162 + $0x10] sm:$0xf]
    %v168 = vld [vmem:[%s162 + $0x14] sm:$0xf]
    %v169 = vld [vmem:[%s162 + $0x18] sm:$0xf]
    %v170 = vld [vmem:[%s162 + $0x1c] sm:$0xf]
    %v171 = vld [vmem:[%s162 + $0x20] sm:$0xf]
    %v172 = vld [vmem:[%s162 + $0x24] sm:$0xf]
    %v173 = vld [vmem:[%s162 + $0x28] sm:$0xf]
    %v174 = vld [vmem:[%s162 + $0x2c] sm:$0xf]
    %v175 = vld [vmem:[%s162 + $0x30] sm:$0xf]
    %v176 = vld [vmem:[%s162 + $0x34] sm:$0xf]
    %v177 = vld [vmem:[%s162 + $0x38] sm:$0xf]
    %v178 = vld [vmem:[%s162 + $0x3c] sm:$0xf]
    %v179 = vld [vmem:[%s162 + $0x40] sm:$0xf]
    %v180 = vld [vmem:[%s162 + $0x44] sm:$0xf]
    %v181 = vld [vmem:[%s162 + $0x48] sm:$0xf]
    %v182 = vld [vmem:[%s162 + $0x4c] sm:$0xf]
    %v183 = vld [vmem:[%s162 + $0x50] sm:$0xf]
    %v184 = vld [vmem:[%s162 + $0x54] sm:$0xf]
    %v185 = vld [vmem:[%s162 + $0x58] sm:$0xf]
    %v186 = vld [vmem:[%s162 + $0x5c] sm:$0xf]
    %v187 = vld [vmem:[%s162 + $0x60] sm:$0xf]
    %v188 = vld [vmem:[%s162 + $0x64] sm:$0xf]
    %v189 = vld [vmem:[%s162 + $0x68] sm:$0xf]
    %v190 = vld [vmem:[%s162 + $0x6c] sm:$0xf]
    %v191 = vld [vmem:[%s162 + $0x70] sm:$0xf]
    %v192 = vld [vmem:[%s162 + $0x74] sm:$0xf]
    %v193 = vld [vmem:[%s162 + $0x78] sm:$0xf]
    %v194 = vld [vmem:[%s162 + $0x7c] sm:$0xf]
    %v195 = vld [vmem:[%s162 + $0x80] sm:$0xf]
    %v196 = vld [vmem:[%s162 + $0x84] sm:$0xf]
    %v197 = vld [vmem:[%s162 + $0x88] sm:$0xf]
    %v198 = vld [vmem:[%s162 + $0x8c] sm:$0xf]
    %v199 = vld [vmem:[%s162 + $0x90] sm:$0xf]
    %v200 = vld [vmem:[%s162 + $0x94] sm:$0xf]
    %v201 = vld [vmem:[%s162 + $0x98] sm:$0xf]
    %v202 = vld [vmem:[%s162 + $0x9c] sm:$0xf]
    %v203 = vld [vmem:[%s162 + $0xa0] sm:$0xf]
    %v204 = vld [vmem:[%s162 + $0xa4] sm:$0xf]
    %v205 = vld [vmem:[%s162 + $0xa8] sm:$0xf]
    %v206 = vld [vmem:[%s162 + $0xac] sm:$0xf]
    %v207 = vld [vmem:[%s162 + $0xb0] sm:$0xf]
    %v208 = vld [vmem:[%s162 + $0xb4] sm:$0xf]
    %v209 = vld [vmem:[%s162 + $0xb8] sm:$0xf]
    %v210 = vld [vmem:[%s162 + $0xbc] sm:$0xf]
    %v211 = vld [vmem:[%s162 + $0xc0] sm:$0xf]
    %v212 = vld [vmem:[%s162 + $0xc4] sm:$0xf]
    %v213 = vld [vmem:[%s162 + $0xc8] sm:$0xf]
    %v214 = vld [vmem:[%s162 + $0xcc] sm:$0xf]
    %v215 = vld [vmem:[%s162 + $0xd0] sm:$0xf]
    %v216 = vld [vmem:[%s162 + $0xd4] sm:$0xf]
    %v217 = vld [vmem:[%s162 + $0xd8] sm:$0xf]
    %v218 = vld [vmem:[%s162 + $0xdc] sm:$0xf]
    %s219 = scalar_lea.vmem [#allocation2], 32
    %v220 = vld [vmem:[%s219] sm:$0xff]
    %v221 = vld [vmem:[%s219 + $0x8] sm:$0xff]
    %v222 = vld [vmem:[%s219 + $0x10] sm:$0xff]
    %v223 = vld [vmem:[%s219 + $0x18] sm:$0xff]
    %v280 = vunpack.c.l.b16 %v163
    %v281 = vunpack.c.l.b16 %v164
    %v282 = vunpack.c.l.b16 %v165
    %v283 = vunpack.c.l.b16 %v166
    %v284 = vunpack.c.l.b16 %v167
    %v285 = vunpack.c.l.b16 %v168
    %v286 = vunpack.c.l.b16 %v169
    %v287 = vunpack.c.l.b16 %v170
    %v288 = vunpack.c.l.b16 %v171
    %v289 = vunpack.c.l.b16 %v172
    %v290 = vunpack.c.l.b16 %v173
    %v291 = vunpack.c.l.b16 %v174
    %v292 = vunpack.c.l.b16 %v175
    %v293 = vunpack.c.l.b16 %v176
    %v294 = vunpack.c.l.b16 %v177
    %v295 = vunpack.c.l.b16 %v178
    %v296 = vunpack.c.l.b16 %v179
    %v297 = vunpack.c.l.b16 %v180
    %v298 = vunpack.c.l.b16 %v181
    %v299 = vunpack.c.l.b16 %v182
    %v300 = vunpack.c.l.b16 %v183
    %v301 = vunpack.c.l.b16 %v184
    %v302 = vunpack.c.l.b16 %v185
    %v303 = vunpack.c.l.b16 %v186
    %v304 = vunpack.c.l.b16 %v187
    %v305 = vunpack.c.l.b16 %v188
    %v306 = vunpack.c.l.b16 %v189
    %v307 = vunpack.c.l.b16 %v190
    %v308 = vunpack.c.l.b16 %v191
    %v309 = vunpack.c.l.b16 %v192
    %v310 = vunpack.c.l.b16 %v193
    %v311 = vunpack.c.l.b16 %v194
    %v312 = vunpack.c.l.b16 %v195
    %v313 = vunpack.c.l.b16 %v196
    %v314 = vunpack.c.l.b16 %v197
    %v315 = vunpack.c.l.b16 %v198
    %v316 = vunpack.c.l.b16 %v199
    %v317 = vunpack.c.l.b16 %v200
    %v318 = vunpack.c.l.b16 %v201
    %v319 = vunpack.c.l.b16 %v202
    %v320 = vunpack.c.l.b16 %v203
    %v321 = vunpack.c.l.b16 %v204
    %v322 = vunpack.c.l.b16 %v205
    %v323 = vunpack.c.l.b16 %v206
    %v324 = vunpack.c.l.b16 %v207
    %v325 = vunpack.c.l.b16 %v208
    %v326 = vunpack.c.l.b16 %v209
    %v327 = vunpack.c.l.b16 %v210
    %v328 = vunpack.c.l.b16 %v211
    %v329 = vunpack.c.l.b16 %v212
    %v330 = vunpack.c.l.b16 %v213
    %v331 = vunpack.c.l.b16 %v214
    %v332 = vunpack.c.l.b16 %v215
    %v333 = vunpack.c.l.b16 %v216
    %v334 = vunpack.c.l.b16 %v217
    %v335 = vunpack.c.l.b16 %v218
    %v336 = vpack.c.b16 %v281, %v280
    %v337 = vpack.c.b16 %v283, %v282
    %v338 = vpack.c.b16 %v285, %v284
    %v339 = vpack.c.b16 %v287, %v286
    %v340 = vpack.c.b16 %v289, %v288
    %v341 = vpack.c.b16 %v291, %v290
    %v342 = vpack.c.b16 %v293, %v292
    %v343 = vpack.c.b16 %v295, %v294
    %v344 = vpack.c.b16 %v297, %v296
    %v345 = vpack.c.b16 %v299, %v298
    %v346 = vpack.c.b16 %v301, %v300
    %v347 = vpack.c.b16 %v303, %v302
    %v348 = vpack.c.b16 %v305, %v304
    %v349 = vpack.c.b16 %v307, %v306
    %v350 = vpack.c.b16 %v309, %v308
    %v351 = vpack.c.b16 %v311, %v310
    %v352 = vpack.c.b16 %v313, %v312
    %v353 = vpack.c.b16 %v315, %v314
    %v354 = vpack.c.b16 %v317, %v316
    %v355 = vpack.c.b16 %v319, %v318
    %v356 = vpack.c.b16 %v321, %v320
    %v357 = vpack.c.b16 %v323, %v322
    %v358 = vpack.c.b16 %v325, %v324
    %v359 = vpack.c.b16 %v327, %v326
    %v360 = vpack.c.b16 %v329, %v328
    %v361 = vpack.c.b16 %v331, %v330
    %v362 = vpack.c.b16 %v333, %v332
    %v363 = vpack.c.b16 %v335, %v334
    %v368 = vunpack.c.l.b16 %v220
    %v369 = vunpack.c.h.b16 %v220
    %v370 = vunpack.c.l.b16 %v221
    %v371 = vunpack.c.h.b16 %v221
    %v372 = vunpack.c.l.b16 %v222
    %v373 = vunpack.c.h.b16 %v222
    %v374 = vunpack.c.l.b16 %v223
    %v375 = vunpack.c.h.b16 %v223
    %v376 = vpack.c.b16 %v370, %v368
    %v377 = vpack.c.b16 %v371, %v369
    %v378 = vpack.c.b16 %v374, %v372
    %v379 = vpack.c.b16 %v375, %v373
    %vm384 = vcmask 261120
    %v386 = vsel %vm384, %v336, 0
    %v389 = vsel %vm384, %v337, 0
    %v392 = vsel %vm384, %v338, 0
    %v395 = vsel %vm384, %v339, 0
    %v398 = vsel %vm384, %v340, 0
    %v401 = vsel %vm384, %v341, 0
    %v404 = vsel %vm384, %v342, 0
    %v407 = vsel %vm384, %v343, 0
    %v410 = vsel %vm384, %v344, 0
    %v413 = vsel %vm384, %v345, 0
    %v416 = vsel %vm384, %v346, 0
    %v419 = vsel %vm384, %v347, 0
    %v422 = vsel %vm384, %v348, 0
    %v425 = vsel %vm384, %v349, 0
    %v428 = vsel %vm384, %v350, 0
    %v431 = vsel %vm384, %v351, 0
    %v434 = vsel %vm384, %v352, 0
    %v437 = vsel %vm384, %v353, 0
    %v440 = vsel %vm384, %v354, 0
    %v443 = vsel %vm384, %v355, 0
    %v446 = vsel %vm384, %v356, 0
    %v449 = vsel %vm384, %v357, 0
    %v452 = vsel %vm384, %v358, 0
    %v455 = vsel %vm384, %v359, 0
    %v458 = vsel %vm384, %v360, 0
    %v461 = vsel %vm384, %v361, 0
    %v464 = vsel %vm384, %v362, 0
    %v467 = vsel %vm384, %v363, 0
    %469 = vmatpush.bf16.msra.mxu0 0
    %470 = vmatpush.bf16.msra.mxu0 0
    %471 = vmatpush.bf16.msra.mxu0 0
    %472 = vmatpush.bf16.msra.mxu0 0
    %473 = vmatpush.bf16.msra.mxu0 0
    %474 = vmatpush.bf16.msra.mxu0 0
    %475 = vmatpush.bf16.msra.mxu0 %v378
    %476 = vmatpush.bf16.msra.mxu0 %v376
    %477 = vmatmul.bf16.gmra.mxu0 %v386
    %v478 = vpop.f32.mrf.mxu0
    %v479 = vadd.f32 0.0, %v478
    %v480 = vpop.f32.mrf.mxu0
    %v481 = vadd.f32 0.0, %v480
    %482 = vmatmul.bf16.gmra.mxu0 %v389
    %v483 = vpop.f32.mrf.mxu0
    %v484 = vadd.f32 0.0, %v483
    %v485 = vpop.f32.mrf.mxu0
    %v486 = vadd.f32 0.0, %v485
    %487 = vmatmul.bf16.gmra.mxu0 %v392
    %v488 = vpop.f32.mrf.mxu0
    %v489 = vadd.f32 0.0, %v488
    %v490 = vpop.f32.mrf.mxu0
    %v491 = vadd.f32 0.0, %v490
    %492 = vmatmul.bf16.gmra.mxu0 %v395
    %v493 = vpop.f32.mrf.mxu0
    %v494 = vadd.f32 0.0, %v493
    %v495 = vpop.f32.mrf.mxu0
    %v496 = vadd.f32 0.0, %v495
    %497 = vmatmul.bf16.gmra.mxu0 %v398
    %v498 = vpop.f32.mrf.mxu0
    %v499 = vadd.f32 0.0, %v498
    %v500 = vpop.f32.mrf.mxu0
    %v501 = vadd.f32 0.0, %v500
    %502 = vmatmul.bf16.gmra.mxu0 %v401
    %v503 = vpop.f32.mrf.mxu0
    %v504 = vadd.f32 0.0, %v503
    %v505 = vpop.f32.mrf.mxu0
    %v506 = vadd.f32 0.0, %v505
    %507 = vmatmul.bf16.gmra.mxu0 %v404
    %v508 = vpop.f32.mrf.mxu0
    %v509 = vadd.f32 0.0, %v508
    %v510 = vpop.f32.mrf.mxu0
    %v511 = vadd.f32 0.0, %v510
    %512 = vmatmul.bf16.gmra.mxu0 %v407
    %v513 = vpop.f32.mrf.mxu0
    %v514 = vadd.f32 0.0, %v513
    %v515 = vpop.f32.mrf.mxu0
    %v516 = vadd.f32 0.0, %v515
    %517 = vmatmul.bf16.gmra.mxu0 %v410
    %v518 = vpop.f32.mrf.mxu0
    %v519 = vadd.f32 0.0, %v518
    %v520 = vpop.f32.mrf.mxu0
    %v521 = vadd.f32 0.0, %v520
    %522 = vmatmul.bf16.gmra.mxu0 %v413
    %v523 = vpop.f32.mrf.mxu0
    %v524 = vadd.f32 0.0, %v523
    %v525 = vpop.f32.mrf.mxu0
    %v526 = vadd.f32 0.0, %v525
    %527 = vmatmul.bf16.gmra.mxu0 %v416
    %v528 = vpop.f32.mrf.mxu0
    %v529 = vadd.f32 0.0, %v528
    %v530 = vpop.f32.mrf.mxu0
    %v531 = vadd.f32 0.0, %v530
    %532 = vmatmul.bf16.gmra.mxu0 %v419
    %v533 = vpop.f32.mrf.mxu0
    %v534 = vadd.f32 0.0, %v533
    %v535 = vpop.f32.mrf.mxu0
    %v536 = vadd.f32 0.0, %v535
    %537 = vmatmul.bf16.gmra.mxu0 %v422
    %v538 = vpop.f32.mrf.mxu0
    %v539 = vadd.f32 0.0, %v538
    %v540 = vpop.f32.mrf.mxu0
    %v541 = vadd.f32 0.0, %v540
    %542 = vmatmul.bf16.gmra.mxu0 %v425
    %v543 = vpop.f32.mrf.mxu0
    %v544 = vadd.f32 0.0, %v543
    %v545 = vpop.f32.mrf.mxu0
    %v546 = vadd.f32 0.0, %v545
    %547 = vmatmul.bf16.gmra.mxu0 %v428
    %v548 = vpop.f32.mrf.mxu0
    %v549 = vadd.f32 0.0, %v548
    %v550 = vpop.f32.mrf.mxu0
    %v551 = vadd.f32 0.0, %v550
    %552 = vmatmul.bf16.gmra.mxu0 %v431
    %v553 = vpop.f32.mrf.mxu0
    %v554 = vadd.f32 0.0, %v553
    %v555 = vpop.f32.mrf.mxu0
    %v556 = vadd.f32 0.0, %v555
    %557 = vmatmul.bf16.gmra.mxu0 %v434
    %v558 = vpop.f32.mrf.mxu0
    %v559 = vadd.f32 0.0, %v558
    %v560 = vpop.f32.mrf.mxu0
    %v561 = vadd.f32 0.0, %v560
    %562 = vmatmul.bf16.gmra.mxu0 %v437
    %v563 = vpop.f32.mrf.mxu0
    %v564 = vadd.f32 0.0, %v563
    %v565 = vpop.f32.mrf.mxu0
    %v566 = vadd.f32 0.0, %v565
    %567 = vmatmul.bf16.gmra.mxu0 %v440
    %v568 = vpop.f32.mrf.mxu0
    %v569 = vadd.f32 0.0, %v568
    %v570 = vpop.f32.mrf.mxu0
    %v571 = vadd.f32 0.0, %v570
    %572 = vmatmul.bf16.gmra.mxu0 %v443
    %v573 = vpop.f32.mrf.mxu0
    %v574 = vadd.f32 0.0, %v573
    %v575 = vpop.f32.mrf.mxu0
    %v576 = vadd.f32 0.0, %v575
    %577 = vmatmul.bf16.gmra.mxu0 %v446
    %v578 = vpop.f32.mrf.mxu0
    %v579 = vadd.f32 0.0, %v578
    %v580 = vpop.f32.mrf.mxu0
    %v581 = vadd.f32 0.0, %v580
    %582 = vmatmul.bf16.gmra.mxu0 %v449
    %v583 = vpop.f32.mrf.mxu0
    %v584 = vadd.f32 0.0, %v583
    %v585 = vpop.f32.mrf.mxu0
    %v586 = vadd.f32 0.0, %v585
    %587 = vmatmul.bf16.gmra.mxu0 %v452
    %v588 = vpop.f32.mrf.mxu0
    %v589 = vadd.f32 0.0, %v588
    %v590 = vpop.f32.mrf.mxu0
    %v591 = vadd.f32 0.0, %v590
    %592 = vmatmul.bf16.gmra.mxu0 %v455
    %v593 = vpop.f32.mrf.mxu0
    %v594 = vadd.f32 0.0, %v593
    %v595 = vpop.f32.mrf.mxu0
    %v596 = vadd.f32 0.0, %v595
    %597 = vmatmul.bf16.gmra.mxu0 %v458
    %v598 = vpop.f32.mrf.mxu0
    %v599 = vadd.f32 0.0, %v598
    %v600 = vpop.f32.mrf.mxu0
    %v601 = vadd.f32 0.0, %v600
    %602 = vmatmul.bf16.gmra.mxu0 %v461
    %v603 = vpop.f32.mrf.mxu0
    %v604 = vadd.f32 0.0, %v603
    %v605 = vpop.f32.mrf.mxu0
    %v606 = vadd.f32 0.0, %v605
    %607 = vmatmul.bf16.gmra.mxu0 %v464
    %v608 = vpop.f32.mrf.mxu0
    %v609 = vadd.f32 0.0, %v608
    %v610 = vpop.f32.mrf.mxu0
    %v611 = vadd.f32 0.0, %v610
    %612 = vmatmul.bf16.gmra.mxu0 %v467
    %v613 = vpop.f32.mrf.mxu0
    %v614 = vadd.f32 0.0, %v613
    %v615 = vpop.f32.mrf.mxu0
    %v616 = vadd.f32 0.0, %v615
    %617 = vdwg.mxu0
    %618 = vmatpush.bf16.msra.mxu0 0
    %619 = vmatpush.bf16.msra.mxu0 0
    %620 = vmatpush.bf16.msra.mxu0 0
    %621 = vmatpush.bf16.msra.mxu0 0
    %622 = vmatpush.bf16.msra.mxu0 0
    %623 = vmatpush.bf16.msra.mxu0 0
    %624 = vmatpush.bf16.msra.mxu0 %v379
    %625 = vmatpush.bf16.msra.mxu0 %v377
    %626 = vmatmul.bf16.gmra.mxu0 %v386
    %v627 = vpop.f32.mrf.mxu0
    %v628 = vadd.f32 0.0, %v627
    %v629 = vpop.f32.mrf.mxu0
    %v630 = vadd.f32 0.0, %v629
    %631 = vmatmul.bf16.gmra.mxu0 %v389
    %v632 = vpop.f32.mrf.mxu0
    %v633 = vadd.f32 0.0, %v632
    %v634 = vpop.f32.mrf.mxu0
    %v635 = vadd.f32 0.0, %v634
    %636 = vmatmul.bf16.gmra.mxu0 %v392
    %v637 = vpop.f32.mrf.mxu0
    %v638 = vadd.f32 0.0, %v637
    %v639 = vpop.f32.mrf.mxu0
    %v640 = vadd.f32 0.0, %v639
    %641 = vmatmul.bf16.gmra.mxu0 %v395
    %v642 = vpop.f32.mrf.mxu0
    %v643 = vadd.f32 0.0, %v642
    %v644 = vpop.f32.mrf.mxu0
    %v645 = vadd.f32 0.0, %v644
    %646 = vmatmul.bf16.gmra.mxu0 %v398
    %v647 = vpop.f32.mrf.mxu0
    %v648 = vadd.f32 0.0, %v647
    %v649 = vpop.f32.mrf.mxu0
    %v650 = vadd.f32 0.0, %v649
    %651 = vmatmul.bf16.gmra.mxu0 %v401
    %v652 = vpop.f32.mrf.mxu0
    %v653 = vadd.f32 0.0, %v652
    %v654 = vpop.f32.mrf.mxu0
    %v655 = vadd.f32 0.0, %v654
    %656 = vmatmul.bf16.gmra.mxu0 %v404
    %v657 = vpop.f32.mrf.mxu0
    %v658 = vadd.f32 0.0, %v657
    %v659 = vpop.f32.mrf.mxu0
    %v660 = vadd.f32 0.0, %v659
    %661 = vmatmul.bf16.gmra.mxu0 %v407
    %v662 = vpop.f32.mrf.mxu0
    %v663 = vadd.f32 0.0, %v662
    %v664 = vpop.f32.mrf.mxu0
    %v665 = vadd.f32 0.0, %v664
    %666 = vmatmul.bf16.gmra.mxu0 %v410
    %v667 = vpop.f32.mrf.mxu0
    %v668 = vadd.f32 0.0, %v667
    %v669 = vpop.f32.mrf.mxu0
    %v670 = vadd.f32 0.0, %v669
    %671 = vmatmul.bf16.gmra.mxu0 %v413
    %v672 = vpop.f32.mrf.mxu0
    %v673 = vadd.f32 0.0, %v672
    %v674 = vpop.f32.mrf.mxu0
    %v675 = vadd.f32 0.0, %v674
    %676 = vmatmul.bf16.gmra.mxu0 %v416
    %v677 = vpop.f32.mrf.mxu0
    %v678 = vadd.f32 0.0, %v677
    %v679 = vpop.f32.mrf.mxu0
    %v680 = vadd.f32 0.0, %v679
    %681 = vmatmul.bf16.gmra.mxu0 %v419
    %v682 = vpop.f32.mrf.mxu0
    %v683 = vadd.f32 0.0, %v682
    %v684 = vpop.f32.mrf.mxu0
    %v685 = vadd.f32 0.0, %v684
    %686 = vmatmul.bf16.gmra.mxu0 %v422
    %v687 = vpop.f32.mrf.mxu0
    %v688 = vadd.f32 0.0, %v687
    %v689 = vpop.f32.mrf.mxu0
    %v690 = vadd.f32 0.0, %v689
    %691 = vmatmul.bf16.gmra.mxu0 %v425
    %v692 = vpop.f32.mrf.mxu0
    %v693 = vadd.f32 0.0, %v692
    %v694 = vpop.f32.mrf.mxu0
    %v695 = vadd.f32 0.0, %v694
    %696 = vmatmul.bf16.gmra.mxu0 %v428
    %v697 = vpop.f32.mrf.mxu0
    %v698 = vadd.f32 0.0, %v697
    %v699 = vpop.f32.mrf.mxu0
    %v700 = vadd.f32 0.0, %v699
    %701 = vmatmul.bf16.gmra.mxu0 %v431
    %v702 = vpop.f32.mrf.mxu0
    %v703 = vadd.f32 0.0, %v702
    %v704 = vpop.f32.mrf.mxu0
    %v705 = vadd.f32 0.0, %v704
    %706 = vmatmul.bf16.gmra.mxu0 %v434
    %v707 = vpop.f32.mrf.mxu0
    %v708 = vadd.f32 0.0, %v707
    %v709 = vpop.f32.mrf.mxu0
    %v710 = vadd.f32 0.0, %v709
    %711 = vmatmul.bf16.gmra.mxu0 %v437
    %v712 = vpop.f32.mrf.mxu0
    %v713 = vadd.f32 0.0, %v712
    %v714 = vpop.f32.mrf.mxu0
    %v715 = vadd.f32 0.0, %v714
    %716 = vmatmul.bf16.gmra.mxu0 %v440
    %v717 = vpop.f32.mrf.mxu0
    %v718 = vadd.f32 0.0, %v717
    %v719 = vpop.f32.mrf.mxu0
    %v720 = vadd.f32 0.0, %v719
    %721 = vmatmul.bf16.gmra.mxu0 %v443
    %v722 = vpop.f32.mrf.mxu0
    %v723 = vadd.f32 0.0, %v722
    %v724 = vpop.f32.mrf.mxu0
    %v725 = vadd.f32 0.0, %v724
    %726 = vmatmul.bf16.gmra.mxu0 %v446
    %v727 = vpop.f32.mrf.mxu0
    %v728 = vadd.f32 0.0, %v727
    %v729 = vpop.f32.mrf.mxu0
    %v730 = vadd.f32 0.0, %v729
    %731 = vmatmul.bf16.gmra.mxu0 %v449
    %v732 = vpop.f32.mrf.mxu0
    %v733 = vadd.f32 0.0, %v732
    %v734 = vpop.f32.mrf.mxu0
    %v735 = vadd.f32 0.0, %v734
    %736 = vmatmul.bf16.gmra.mxu0 %v452
    %v737 = vpop.f32.mrf.mxu0
    %v738 = vadd.f32 0.0, %v737
    %v739 = vpop.f32.mrf.mxu0
    %v740 = vadd.f32 0.0, %v739
    %741 = vmatmul.bf16.gmra.mxu0 %v455
    %v742 = vpop.f32.mrf.mxu0
    %v743 = vadd.f32 0.0, %v742
    %v744 = vpop.f32.mrf.mxu0
    %v745 = vadd.f32 0.0, %v744
    %746 = vmatmul.bf16.gmra.mxu0 %v458
    %v747 = vpop.f32.mrf.mxu0
    %v748 = vadd.f32 0.0, %v747
    %v749 = vpop.f32.mrf.mxu0
    %v750 = vadd.f32 0.0, %v749
    %751 = vmatmul.bf16.gmra.mxu0 %v461
    %v752 = vpop.f32.mrf.mxu0
    %v753 = vadd.f32 0.0, %v752
    %v754 = vpop.f32.mrf.mxu0
    %v755 = vadd.f32 0.0, %v754
    %756 = vmatmul.bf16.gmra.mxu0 %v464
    %v757 = vpop.f32.mrf.mxu0
    %v758 = vadd.f32 0.0, %v757
    %v759 = vpop.f32.mrf.mxu0
    %v760 = vadd.f32 0.0, %v759
    %761 = vmatmul.bf16.gmra.mxu0 %v467
    %v762 = vpop.f32.mrf.mxu0
    %v763 = vadd.f32 0.0, %v762
    %v764 = vpop.f32.mrf.mxu0
    %v765 = vadd.f32 0.0, %v764
    %766 = vdwg.mxu0
    %v823 = vunpack.c.l.b16 %v102
    %v824 = vunpack.c.l.b16 %v103
    %v825 = vunpack.c.l.b16 %v104
    %v826 = vunpack.c.l.b16 %v105
    %v827 = vunpack.c.l.b16 %v106
    %v828 = vunpack.c.l.b16 %v107
    %v829 = vunpack.c.l.b16 %v108
    %v830 = vunpack.c.l.b16 %v109
    %v831 = vunpack.c.l.b16 %v110
    %v832 = vunpack.c.l.b16 %v111
    %v833 = vunpack.c.l.b16 %v112
    %v834 = vunpack.c.l.b16 %v113
    %v835 = vunpack.c.l.b16 %v114
    %v836 = vunpack.c.l.b16 %v115
    %v837 = vunpack.c.l.b16 %v116
    %v838 = vunpack.c.l.b16 %v117
    %v839 = vunpack.c.l.b16 %v118
    %v840 = vunpack.c.l.b16 %v119
    %v841 = vunpack.c.l.b16 %v120
    %v842 = vunpack.c.l.b16 %v121
    %v843 = vunpack.c.l.b16 %v122
    %v844 = vunpack.c.l.b16 %v123
    %v845 = vunpack.c.l.b16 %v124
    %v846 = vunpack.c.l.b16 %v125
    %v847 = vunpack.c.l.b16 %v126
    %v848 = vunpack.c.l.b16 %v127
    %v849 = vunpack.c.l.b16 %v128
    %v850 = vunpack.c.l.b16 %v129
    %v851 = vunpack.c.l.b16 %v130
    %v852 = vunpack.c.l.b16 %v131
    %v853 = vunpack.c.l.b16 %v132
    %v854 = vunpack.c.l.b16 %v133
    %v855 = vunpack.c.l.b16 %v134
    %v856 = vunpack.c.l.b16 %v135
    %v857 = vunpack.c.l.b16 %v136
    %v858 = vunpack.c.l.b16 %v137
    %v859 = vunpack.c.l.b16 %v138
    %v860 = vunpack.c.l.b16 %v139
    %v861 = vunpack.c.l.b16 %v140
    %v862 = vunpack.c.l.b16 %v141
    %v863 = vunpack.c.l.b16 %v142
    %v864 = vunpack.c.l.b16 %v143
    %v865 = vunpack.c.l.b16 %v144
    %v866 = vunpack.c.l.b16 %v145
    %v867 = vunpack.c.l.b16 %v146
    %v868 = vunpack.c.l.b16 %v147
    %v869 = vunpack.c.l.b16 %v148
    %v870 = vunpack.c.l.b16 %v149
    %v871 = vunpack.c.l.b16 %v150
    %v872 = vunpack.c.l.b16 %v151
    %v873 = vunpack.c.l.b16 %v152
    %v874 = vunpack.c.l.b16 %v153
    %v875 = vunpack.c.l.b16 %v154
    %v876 = vunpack.c.l.b16 %v155
    %v877 = vunpack.c.l.b16 %v156
    %v878 = vunpack.c.l.b16 %v157
    %v879 = vpack.c.b16 %v824, %v823
    %v880 = vpack.c.b16 %v826, %v825
    %v881 = vpack.c.b16 %v828, %v827
    %v882 = vpack.c.b16 %v830, %v829
    %v883 = vpack.c.b16 %v832, %v831
    %v884 = vpack.c.b16 %v834, %v833
    %v885 = vpack.c.b16 %v836, %v835
    %v886 = vpack.c.b16 %v838, %v837
    %v887 = vpack.c.b16 %v840, %v839
    %v888 = vpack.c.b16 %v842, %v841
    %v889 = vpack.c.b16 %v844, %v843
    %v890 = vpack.c.b16 %v846, %v845
    %v891 = vpack.c.b16 %v848, %v847
    %v892 = vpack.c.b16 %v850, %v849
    %v893 = vpack.c.b16 %v852, %v851
    %v894 = vpack.c.b16 %v854, %v853
    %v895 = vpack.c.b16 %v856, %v855
    %v896 = vpack.c.b16 %v858, %v857
    %v897 = vpack.c.b16 %v860, %v859
    %v898 = vpack.c.b16 %v862, %v861
    %v899 = vpack.c.b16 %v864, %v863
    %v900 = vpack.c.b16 %v866, %v865
    %v901 = vpack.c.b16 %v868, %v867
    %v902 = vpack.c.b16 %v870, %v869
    %v903 = vpack.c.b16 %v872, %v871
    %v904 = vpack.c.b16 %v874, %v873
    %v905 = vpack.c.b16 %v876, %v875
    %v906 = vpack.c.b16 %v878, %v877
    %v911 = vunpack.c.l.b16 %v158
    %v912 = vunpack.c.h.b16 %v158
    %v913 = vunpack.c.l.b16 %v159
    %v914 = vunpack.c.h.b16 %v159
    %v915 = vunpack.c.l.b16 %v160
    %v916 = vunpack.c.h.b16 %v160
    %v917 = vunpack.c.l.b16 %v161
    %v918 = vunpack.c.h.b16 %v161
    %v919 = vpack.c.b16 %v913, %v911
    %v920 = vpack.c.b16 %v914, %v912
    %v921 = vpack.c.b16 %v917, %v915
    %v922 = vpack.c.b16 %v918, %v916
    %v928 = vsel %vm384, %v879, 0
    %v931 = vsel %vm384, %v880, 0
    %v934 = vsel %vm384, %v881, 0
    %v937 = vsel %vm384, %v882, 0
    %v940 = vsel %vm384, %v883, 0
    %v943 = vsel %vm384, %v884, 0
    %v946 = vsel %vm384, %v885, 0
    %v949 = vsel %vm384, %v886, 0
    %v952 = vsel %vm384, %v887, 0
    %v955 = vsel %vm384, %v888, 0
    %v958 = vsel %vm384, %v889, 0
    %v961 = vsel %vm384, %v890, 0
    %v964 = vsel %vm384, %v891, 0
    %v967 = vsel %vm384, %v892, 0
    %v970 = vsel %vm384, %v893, 0
    %v973 = vsel %vm384, %v894, 0
    %v976 = vsel %vm384, %v895, 0
    %v979 = vsel %vm384, %v896, 0
    %v982 = vsel %vm384, %v897, 0
    %v985 = vsel %vm384, %v898, 0
    %v988 = vsel %vm384, %v899, 0
    %v991 = vsel %vm384, %v900, 0
    %v994 = vsel %vm384, %v901, 0
    %v997 = vsel %vm384, %v902, 0
    %v1000 = vsel %vm384, %v903, 0
    %v1003 = vsel %vm384, %v904, 0
    %v1006 = vsel %vm384, %v905, 0
    %v1009 = vsel %vm384, %v906, 0
    %1011 = vmatpush.bf16.msra.mxu0 0
    %1012 = vmatpush.bf16.msra.mxu0 0
    %1013 = vmatpush.bf16.msra.mxu0 0
    %1014 = vmatpush.bf16.msra.mxu0 0
    %1015 = vmatpush.bf16.msra.mxu0 0
    %1016 = vmatpush.bf16.msra.mxu0 0
    %1017 = vmatpush.bf16.msra.mxu0 %v921
    %1018 = vmatpush.bf16.msra.mxu0 %v919
    %1019 = vmatmul.bf16.gmra.mxu0 %v928
    %v1020 = vpop.f32.mrf.mxu0
    %v1021 = vadd.f32 %v479, %v1020
    %v1022 = vpop.f32.mrf.mxu0
    %v1023 = vadd.f32 %v481, %v1022
    %1024 = vmatmul.bf16.gmra.mxu0 %v931
    %v1025 = vpop.f32.mrf.mxu0
    %v1026 = vadd.f32 %v484, %v1025
    %v1027 = vpop.f32.mrf.mxu0
    %v1028 = vadd.f32 %v486, %v1027
    %1029 = vmatmul.bf16.gmra.mxu0 %v934
    %v1030 = vpop.f32.mrf.mxu0
    %v1031 = vadd.f32 %v489, %v1030
    %v1032 = vpop.f32.mrf.mxu0
    %v1033 = vadd.f32 %v491, %v1032
    %1034 = vmatmul.bf16.gmra.mxu0 %v937
    %v1035 = vpop.f32.mrf.mxu0
    %v1036 = vadd.f32 %v494, %v1035
    %v1037 = vpop.f32.mrf.mxu0
    %v1038 = vadd.f32 %v496, %v1037
    %1039 = vmatmul.bf16.gmra.mxu0 %v940
    %v1040 = vpop.f32.mrf.mxu0
    %v1041 = vadd.f32 %v499, %v1040
    %v1042 = vpop.f32.mrf.mxu0
    %v1043 = vadd.f32 %v501, %v1042
    %1044 = vmatmul.bf16.gmra.mxu0 %v943
    %v1045 = vpop.f32.mrf.mxu0
    %v1046 = vadd.f32 %v504, %v1045
    %v1047 = vpop.f32.mrf.mxu0
    %v1048 = vadd.f32 %v506, %v1047
    %1049 = vmatmul.bf16.gmra.mxu0 %v946
    %v1050 = vpop.f32.mrf.mxu0
    %v1051 = vadd.f32 %v509, %v1050
    %v1052 = vpop.f32.mrf.mxu0
    %v1053 = vadd.f32 %v511, %v1052
    %1054 = vmatmul.bf16.gmra.mxu0 %v949
    %v1055 = vpop.f32.mrf.mxu0
    %v1056 = vadd.f32 %v514, %v1055
    %v1057 = vpop.f32.mrf.mxu0
    %v1058 = vadd.f32 %v516, %v1057
    %1059 = vmatmul.bf16.gmra.mxu0 %v952
    %v1060 = vpop.f32.mrf.mxu0
    %v1061 = vadd.f32 %v519, %v1060
    %v1062 = vpop.f32.mrf.mxu0
    %v1063 = vadd.f32 %v521, %v1062
    %1064 = vmatmul.bf16.gmra.mxu0 %v955
    %v1065 = vpop.f32.mrf.mxu0
    %v1066 = vadd.f32 %v524, %v1065
    %v1067 = vpop.f32.mrf.mxu0
    %v1068 = vadd.f32 %v526, %v1067
    %1069 = vmatmul.bf16.gmra.mxu0 %v958
    %v1070 = vpop.f32.mrf.mxu0
    %v1071 = vadd.f32 %v529, %v1070
    %v1072 = vpop.f32.mrf.mxu0
    %v1073 = vadd.f32 %v531, %v1072
    %1074 = vmatmul.bf16.gmra.mxu0 %v961
    %v1075 = vpop.f32.mrf.mxu0
    %v1076 = vadd.f32 %v534, %v1075
    %v1077 = vpop.f32.mrf.mxu0
    %v1078 = vadd.f32 %v536, %v1077
    %1079 = vmatmul.bf16.gmra.mxu0 %v964
    %v1080 = vpop.f32.mrf.mxu0
    %v1081 = vadd.f32 %v539, %v1080
    %v1082 = vpop.f32.mrf.mxu0
    %v1083 = vadd.f32 %v541, %v1082
    %1084 = vmatmul.bf16.gmra.mxu0 %v967
    %v1085 = vpop.f32.mrf.mxu0
    %v1086 = vadd.f32 %v544, %v1085
    %v1087 = vpop.f32.mrf.mxu0
    %v1088 = vadd.f32 %v546, %v1087
    %1089 = vmatmul.bf16.gmra.mxu0 %v970
    %v1090 = vpop.f32.mrf.mxu0
    %v1091 = vadd.f32 %v549, %v1090
    %v1092 = vpop.f32.mrf.mxu0
    %v1093 = vadd.f32 %v551, %v1092
    %1094 = vmatmul.bf16.gmra.mxu0 %v973
    %v1095 = vpop.f32.mrf.mxu0
    %v1096 = vadd.f32 %v554, %v1095
    %v1097 = vpop.f32.mrf.mxu0
    %v1098 = vadd.f32 %v556, %v1097
    %1099 = vmatmul.bf16.gmra.mxu0 %v976
    %v1100 = vpop.f32.mrf.mxu0
    %v1101 = vadd.f32 %v559, %v1100
    %v1102 = vpop.f32.mrf.mxu0
    %v1103 = vadd.f32 %v561, %v1102
    %1104 = vmatmul.bf16.gmra.mxu0 %v979
    %v1105 = vpop.f32.mrf.mxu0
    %v1106 = vadd.f32 %v564, %v1105
    %v1107 = vpop.f32.mrf.mxu0
    %v1108 = vadd.f32 %v566, %v1107
    %1109 = vmatmul.bf16.gmra.mxu0 %v982
    %v1110 = vpop.f32.mrf.mxu0
    %v1111 = vadd.f32 %v569, %v1110
    %v1112 = vpop.f32.mrf.mxu0
    %v1113 = vadd.f32 %v571, %v1112
    %1114 = vmatmul.bf16.gmra.mxu0 %v985
    %v1115 = vpop.f32.mrf.mxu0
    %v1116 = vadd.f32 %v574, %v1115
    %v1117 = vpop.f32.mrf.mxu0
    %v1118 = vadd.f32 %v576, %v1117
    %1119 = vmatmul.bf16.gmra.mxu0 %v988
    %v1120 = vpop.f32.mrf.mxu0
    %v1121 = vadd.f32 %v579, %v1120
    %v1122 = vpop.f32.mrf.mxu0
    %v1123 = vadd.f32 %v581, %v1122
    %1124 = vmatmul.bf16.gmra.mxu0 %v991
    %v1125 = vpop.f32.mrf.mxu0
    %v1126 = vadd.f32 %v584, %v1125
    %v1127 = vpop.f32.mrf.mxu0
    %v1128 = vadd.f32 %v586, %v1127
    %1129 = vmatmul.bf16.gmra.mxu0 %v994
    %v1130 = vpop.f32.mrf.mxu0
    %v1131 = vadd.f32 %v589, %v1130
    %v1132 = vpop.f32.mrf.mxu0
    %v1133 = vadd.f32 %v591, %v1132
    %1134 = vmatmul.bf16.gmra.mxu0 %v997
    %v1135 = vpop.f32.mrf.mxu0
    %v1136 = vadd.f32 %v594, %v1135
    %v1137 = vpop.f32.mrf.mxu0
    %v1138 = vadd.f32 %v596, %v1137
    %1139 = vmatmul.bf16.gmra.mxu0 %v1000
    %v1140 = vpop.f32.mrf.mxu0
    %v1141 = vadd.f32 %v599, %v1140
    %v1142 = vpop.f32.mrf.mxu0
    %v1143 = vadd.f32 %v601, %v1142
    %1144 = vmatmul.bf16.gmra.mxu0 %v1003
    %v1145 = vpop.f32.mrf.mxu0
    %v1146 = vadd.f32 %v604, %v1145
    %v1147 = vpop.f32.mrf.mxu0
    %v1148 = vadd.f32 %v606, %v1147
    %1149 = vmatmul.bf16.gmra.mxu0 %v1006
    %v1150 = vpop.f32.mrf.mxu0
    %v1151 = vadd.f32 %v609, %v1150
    %v1152 = vpop.f32.mrf.mxu0
    %v1153 = vadd.f32 %v611, %v1152
    %1154 = vmatmul.bf16.gmra.mxu0 %v1009
    %v1155 = vpop.f32.mrf.mxu0
    %v1156 = vadd.f32 %v614, %v1155
    %v1157 = vpop.f32.mrf.mxu0
    %v1158 = vadd.f32 %v616, %v1157
    %1159 = vdwg.mxu0
    %1160 = vmatpush.bf16.msra.mxu0 0
    %1161 = vmatpush.bf16.msra.mxu0 0
    %1162 = vmatpush.bf16.msra.mxu0 0
    %1163 = vmatpush.bf16.msra.mxu0 0
    %1164 = vmatpush.bf16.msra.mxu0 0
    %1165 = vmatpush.bf16.msra.mxu0 0
    %1166 = vmatpush.bf16.msra.mxu0 %v922
    %1167 = vmatpush.bf16.msra.mxu0 %v920
    %1168 = vmatmul.bf16.gmra.mxu0 %v928
    %v1169 = vpop.f32.mrf.mxu0
    %v1170 = vadd.f32 %v628, %v1169
    %v1171 = vpop.f32.mrf.mxu0
    %v1172 = vadd.f32 %v630, %v1171
    %1173 = vmatmul.bf16.gmra.mxu0 %v931
    %v1174 = vpop.f32.mrf.mxu0
    %v1175 = vadd.f32 %v633, %v1174
    %v1176 = vpop.f32.mrf.mxu0
    %v1177 = vadd.f32 %v635, %v1176
    %1178 = vmatmul.bf16.gmra.mxu0 %v934
    %v1179 = vpop.f32.mrf.mxu0
    %v1180 = vadd.f32 %v638, %v1179
    %v1181 = vpop.f32.mrf.mxu0
    %v1182 = vadd.f32 %v640, %v1181
    %1183 = vmatmul.bf16.gmra.mxu0 %v937
    %v1184 = vpop.f32.mrf.mxu0
    %v1185 = vadd.f32 %v643, %v1184
    %v1186 = vpop.f32.mrf.mxu0
    %v1187 = vadd.f32 %v645, %v1186
    %1188 = vmatmul.bf16.gmra.mxu0 %v940
    %v1189 = vpop.f32.mrf.mxu0
    %v1190 = vadd.f32 %v648, %v1189
    %v1191 = vpop.f32.mrf.mxu0
    %v1192 = vadd.f32 %v650, %v1191
    %1193 = vmatmul.bf16.gmra.mxu0 %v943
    %v1194 = vpop.f32.mrf.mxu0
    %v1195 = vadd.f32 %v653, %v1194
    %v1196 = vpop.f32.mrf.mxu0
    %v1197 = vadd.f32 %v655, %v1196
    %1198 = vmatmul.bf16.gmra.mxu0 %v946
    %v1199 = vpop.f32.mrf.mxu0
    %v1200 = vadd.f32 %v658, %v1199
    %v1201 = vpop.f32.mrf.mxu0
    %v1202 = vadd.f32 %v660, %v1201
    %1203 = vmatmul.bf16.gmra.mxu0 %v949
    %v1204 = vpop.f32.mrf.mxu0
    %v1205 = vadd.f32 %v663, %v1204
    %v1206 = vpop.f32.mrf.mxu0
    %v1207 = vadd.f32 %v665, %v1206
    %1208 = vmatmul.bf16.gmra.mxu0 %v952
    %v1209 = vpop.f32.mrf.mxu0
    %v1210 = vadd.f32 %v668, %v1209
    %v1211 = vpop.f32.mrf.mxu0
    %v1212 = vadd.f32 %v670, %v1211
    %1213 = vmatmul.bf16.gmra.mxu0 %v955
    %v1214 = vpop.f32.mrf.mxu0
    %v1215 = vadd.f32 %v673, %v1214
    %v1216 = vpop.f32.mrf.mxu0
    %v1217 = vadd.f32 %v675, %v1216
    %1218 = vmatmul.bf16.gmra.mxu0 %v958
    %v1219 = vpop.f32.mrf.mxu0
    %v1220 = vadd.f32 %v678, %v1219
    %v1221 = vpop.f32.mrf.mxu0
    %v1222 = vadd.f32 %v680, %v1221
    %1223 = vmatmul.bf16.gmra.mxu0 %v961
    %v1224 = vpop.f32.mrf.mxu0
    %v1225 = vadd.f32 %v683, %v1224
    %v1226 = vpop.f32.mrf.mxu0
    %v1227 = vadd.f32 %v685, %v1226
    %1228 = vmatmul.bf16.gmra.mxu0 %v964
    %v1229 = vpop.f32.mrf.mxu0
    %v1230 = vadd.f32 %v688, %v1229
    %v1231 = vpop.f32.mrf.mxu0
    %v1232 = vadd.f32 %v690, %v1231
    %1233 = vmatmul.bf16.gmra.mxu0 %v967
    %v1234 = vpop.f32.mrf.mxu0
    %v1235 = vadd.f32 %v693, %v1234
    %v1236 = vpop.f32.mrf.mxu0
    %v1237 = vadd.f32 %v695, %v1236
    %1238 = vmatmul.bf16.gmra.mxu0 %v970
    %v1239 = vpop.f32.mrf.mxu0
    %v1240 = vadd.f32 %v698, %v1239
    %v1241 = vpop.f32.mrf.mxu0
    %v1242 = vadd.f32 %v700, %v1241
    %1243 = vmatmul.bf16.gmra.mxu0 %v973
    %v1244 = vpop.f32.mrf.mxu0
    %v1245 = vadd.f32 %v703, %v1244
    %v1246 = vpop.f32.mrf.mxu0
    %v1247 = vadd.f32 %v705, %v1246
    %1248 = vmatmul.bf16.gmra.mxu0 %v976
    %v1249 = vpop.f32.mrf.mxu0
    %v1250 = vadd.f32 %v708, %v1249
    %v1251 = vpop.f32.mrf.mxu0
    %v1252 = vadd.f32 %v710, %v1251
    %1253 = vmatmul.bf16.gmra.mxu0 %v979
    %v1254 = vpop.f32.mrf.mxu0
    %v1255 = vadd.f32 %v713, %v1254
    %v1256 = vpop.f32.mrf.mxu0
    %v1257 = vadd.f32 %v715, %v1256
    %1258 = vmatmul.bf16.gmra.mxu0 %v982
    %v1259 = vpop.f32.mrf.mxu0
    %v1260 = vadd.f32 %v718, %v1259
    %v1261 = vpop.f32.mrf.mxu0
    %v1262 = vadd.f32 %v720, %v1261
    %1263 = vmatmul.bf16.gmra.mxu0 %v985
    %v1264 = vpop.f32.mrf.mxu0
    %v1265 = vadd.f32 %v723, %v1264
    %v1266 = vpop.f32.mrf.mxu0
    %v1267 = vadd.f32 %v725, %v1266
    %1268 = vmatmul.bf16.gmra.mxu0 %v988
    %v1269 = vpop.f32.mrf.mxu0
    %v1270 = vadd.f32 %v728, %v1269
    %v1271 = vpop.f32.mrf.mxu0
    %v1272 = vadd.f32 %v730, %v1271
    %1273 = vmatmul.bf16.gmra.mxu0 %v991
    %v1274 = vpop.f32.mrf.mxu0
    %v1275 = vadd.f32 %v733, %v1274
    %v1276 = vpop.f32.mrf.mxu0
    %v1277 = vadd.f32 %v735, %v1276
    %1278 = vmatmul.bf16.gmra.mxu0 %v994
    %v1279 = vpop.f32.mrf.mxu0
    %v1280 = vadd.f32 %v738, %v1279
    %v1281 = vpop.f32.mrf.mxu0
    %v1282 = vadd.f32 %v740, %v1281
    %1283 = vmatmul.bf16.gmra.mxu0 %v997
    %v1284 = vpop.f32.mrf.mxu0
    %v1285 = vadd.f32 %v743, %v1284
    %v1286 = vpop.f32.mrf.mxu0
    %v1287 = vadd.f32 %v745, %v1286
    %1288 = vmatmul.bf16.gmra.mxu0 %v1000
    %v1289 = vpop.f32.mrf.mxu0
    %v1290 = vadd.f32 %v748, %v1289
    %v1291 = vpop.f32.mrf.mxu0
    %v1292 = vadd.f32 %v750, %v1291
    %1293 = vmatmul.bf16.gmra.mxu0 %v1003
    %v1294 = vpop.f32.mrf.mxu0
    %v1295 = vadd.f32 %v753, %v1294
    %v1296 = vpop.f32.mrf.mxu0
    %v1297 = vadd.f32 %v755, %v1296
    %1298 = vmatmul.bf16.gmra.mxu0 %v1006
    %v1299 = vpop.f32.mrf.mxu0
    %v1300 = vadd.f32 %v758, %v1299
    %v1301 = vpop.f32.mrf.mxu0
    %v1302 = vadd.f32 %v760, %v1301
    %1303 = vmatmul.bf16.gmra.mxu0 %v1009
    %v1304 = vpop.f32.mrf.mxu0
    %v1305 = vadd.f32 %v763, %v1304
    %v1306 = vpop.f32.mrf.mxu0
    %v1307 = vadd.f32 %v765, %v1306
    %1308 = vdwg.mxu0
    %s1309 = scalar_lea.vmem %s0, 16
    %v1310 = vld [vmem:[%s1309] sm:$0xf]
    %v1311 = vld [vmem:[%s1309 + $0x4] sm:$0xf]
    %v1312 = vld [vmem:[%s1309 + $0x8] sm:$0xf]
    %v1313 = vld [vmem:[%s1309 + $0xc] sm:$0xf]
    %v1314 = vld [vmem:[%s1309 + $0x10] sm:$0xf]
    %v1315 = vld [vmem:[%s1309 + $0x14] sm:$0xf]
    %v1316 = vld [vmem:[%s1309 + $0x18] sm:$0xf]
    %v1317 = vld [vmem:[%s1309 + $0x1c] sm:$0xf]
    %v1318 = vld [vmem:[%s1309 + $0x20] sm:$0xf]
    %v1319 = vld [vmem:[%s1309 + $0x24] sm:$0xf]
    %v1320 = vld [vmem:[%s1309 + $0x28] sm:$0xf]
    %v1321 = vld [vmem:[%s1309 + $0x2c] sm:$0xf]
    %v1322 = vld [vmem:[%s1309 + $0x30] sm:$0xf]
    %v1323 = vld [vmem:[%s1309 + $0x34] sm:$0xf]
    %v1324 = vld [vmem:[%s1309 + $0x38] sm:$0xf]
    %v1325 = vld [vmem:[%s1309 + $0x3c] sm:$0xf]
    %v1326 = vld [vmem:[%s1309 + $0x40] sm:$0xf]
    %v1327 = vld [vmem:[%s1309 + $0x44] sm:$0xf]
    %v1328 = vld [vmem:[%s1309 + $0x48] sm:$0xf]
    %v1329 = vld [vmem:[%s1309 + $0x4c] sm:$0xf]
    %v1330 = vld [vmem:[%s1309 + $0x50] sm:$0xf]
    %v1331 = vld [vmem:[%s1309 + $0x54] sm:$0xf]
    %v1332 = vld [vmem:[%s1309 + $0x58] sm:$0xf]
    %v1333 = vld [vmem:[%s1309 + $0x5c] sm:$0xf]
    %v1334 = vld [vmem:[%s1309 + $0x60] sm:$0xf]
    %v1335 = vld [vmem:[%s1309 + $0x64] sm:$0xf]
    %v1336 = vld [vmem:[%s1309 + $0x68] sm:$0xf]
    %v1337 = vld [vmem:[%s1309 + $0x6c] sm:$0xf]
    %v1338 = vld [vmem:[%s1309 + $0x70] sm:$0xf]
    %v1339 = vld [vmem:[%s1309 + $0x74] sm:$0xf]
    %v1340 = vld [vmem:[%s1309 + $0x78] sm:$0xf]
    %v1341 = vld [vmem:[%s1309 + $0x7c] sm:$0xf]
    %v1342 = vld [vmem:[%s1309 + $0x80] sm:$0xf]
    %v1343 = vld [vmem:[%s1309 + $0x84] sm:$0xf]
    %v1344 = vld [vmem:[%s1309 + $0x88] sm:$0xf]
    %v1345 = vld [vmem:[%s1309 + $0x8c] sm:$0xf]
    %v1346 = vld [vmem:[%s1309 + $0x90] sm:$0xf]
    %v1347 = vld [vmem:[%s1309 + $0x94] sm:$0xf]
    %v1348 = vld [vmem:[%s1309 + $0x98] sm:$0xf]
    %v1349 = vld [vmem:[%s1309 + $0x9c] sm:$0xf]
    %v1350 = vld [vmem:[%s1309 + $0xa0] sm:$0xf]
    %v1351 = vld [vmem:[%s1309 + $0xa4] sm:$0xf]
    %v1352 = vld [vmem:[%s1309 + $0xa8] sm:$0xf]
    %v1353 = vld [vmem:[%s1309 + $0xac] sm:$0xf]
    %v1354 = vld [vmem:[%s1309 + $0xb0] sm:$0xf]
    %v1355 = vld [vmem:[%s1309 + $0xb4] sm:$0xf]
    %v1356 = vld [vmem:[%s1309 + $0xb8] sm:$0xf]
    %v1357 = vld [vmem:[%s1309 + $0xbc] sm:$0xf]
    %v1358 = vld [vmem:[%s1309 + $0xc0] sm:$0xf]
    %v1359 = vld [vmem:[%s1309 + $0xc4] sm:$0xf]
    %v1360 = vld [vmem:[%s1309 + $0xc8] sm:$0xf]
    %v1361 = vld [vmem:[%s1309 + $0xcc] sm:$0xf]
    %v1362 = vld [vmem:[%s1309 + $0xd0] sm:$0xf]
    %v1363 = vld [vmem:[%s1309 + $0xd4] sm:$0xf]
    %v1364 = vld [vmem:[%s1309 + $0xd8] sm:$0xf]
    %v1365 = vld [vmem:[%s1309 + $0xdc] sm:$0xf]
    %s1366 = scalar_lea.vmem [#allocation2], 64
    %v1367 = vld [vmem:[%s1366] sm:$0xff]
    %v1368 = vld [vmem:[%s1366 + $0x8] sm:$0xff]
    %v1369 = vld [vmem:[%s1366 + $0x10] sm:$0xff]
    %v1370 = vld [vmem:[%s1366 + $0x18] sm:$0xff]
    %v1427 = vunpack.c.l.b16 %v1310
    %v1428 = vunpack.c.l.b16 %v1311
    %v1429 = vunpack.c.l.b16 %v1312
    %v1430 = vunpack.c.l.b16 %v1313
    %v1431 = vunpack.c.l.b16 %v1314
    %v1432 = vunpack.c.l.b16 %v1315
    %v1433 = vunpack.c.l.b16 %v1316
    %v1434 = vunpack.c.l.b16 %v1317
    %v1435 = vunpack.c.l.b16 %v1318
    %v1436 = vunpack.c.l.b16 %v1319
    %v1437 = vunpack.c.l.b16 %v1320
    %v1438 = vunpack.c.l.b16 %v1321
    %v1439 = vunpack.c.l.b16 %v1322
    %v1440 = vunpack.c.l.b16 %v1323
    %v1441 = vunpack.c.l.b16 %v1324
    %v1442 = vunpack.c.l.b16 %v1325
    %v1443 = vunpack.c.l.b16 %v1326
    %v1444 = vunpack.c.l.b16 %v1327
    %v1445 = vunpack.c.l.b16 %v1328
    %v1446 = vunpack.c.l.b16 %v1329
    %v1447 = vunpack.c.l.b16 %v1330
    %v1448 = vunpack.c.l.b16 %v1331
    %v1449 = vunpack.c.l.b16 %v1332
    %v1450 = vunpack.c.l.b16 %v1333
    %v1451 = vunpack.c.l.b16 %v1334
    %v1452 = vunpack.c.l.b16 %v1335
    %v1453 = vunpack.c.l.b16 %v1336
    %v1454 = vunpack.c.l.b16 %v1337
    %v1455 = vunpack.c.l.b16 %v1338
    %v1456 = vunpack.c.l.b16 %v1339
    %v1457 = vunpack.c.l.b16 %v1340
    %v1458 = vunpack.c.l.b16 %v1341
    %v1459 = vunpack.c.l.b16 %v1342
    %v1460 = vunpack.c.l.b16 %v1343
    %v1461 = vunpack.c.l.b16 %v1344
    %v1462 = vunpack.c.l.b16 %v1345
    %v1463 = vunpack.c.l.b16 %v1346
    %v1464 = vunpack.c.l.b16 %v1347
    %v1465 = vunpack.c.l.b16 %v1348
    %v1466 = vunpack.c.l.b16 %v1349
    %v1467 = vunpack.c.l.b16 %v1350
    %v1468 = vunpack.c.l.b16 %v1351
    %v1469 = vunpack.c.l.b16 %v1352
    %v1470 = vunpack.c.l.b16 %v1353
    %v1471 = vunpack.c.l.b16 %v1354
    %v1472 = vunpack.c.l.b16 %v1355
    %v1473 = vunpack.c.l.b16 %v1356
    %v1474 = vunpack.c.l.b16 %v1357
    %v1475 = vunpack.c.l.b16 %v1358
    %v1476 = vunpack.c.l.b16 %v1359
    %v1477 = vunpack.c.l.b16 %v1360
    %v1478 = vunpack.c.l.b16 %v1361
    %v1479 = vunpack.c.l.b16 %v1362
    %v1480 = vunpack.c.l.b16 %v1363
    %v1481 = vunpack.c.l.b16 %v1364
    %v1482 = vunpack.c.l.b16 %v1365
    %v1483 = vpack.c.b16 %v1428, %v1427
    %v1484 = vpack.c.b16 %v1430, %v1429
    %v1485 = vpack.c.b16 %v1432, %v1431
    %v1486 = vpack.c.b16 %v1434, %v1433
    %v1487 = vpack.c.b16 %v1436, %v1435
    %v1488 = vpack.c.b16 %v1438, %v1437
    %v1489 = vpack.c.b16 %v1440, %v1439
    %v1490 = vpack.c.b16 %v1442, %v1441
    %v1491 = vpack.c.b16 %v1444, %v1443
    %v1492 = vpack.c.b16 %v1446, %v1445
    %v1493 = vpack.c.b16 %v1448, %v1447
    %v1494 = vpack.c.b16 %v1450, %v1449
    %v1495 = vpack.c.b16 %v1452, %v1451
    %v1496 = vpack.c.b16 %v1454, %v1453
    %v1497 = vpack.c.b16 %v1456, %v1455
    %v1498 = vpack.c.b16 %v1458, %v1457
    %v1499 = vpack.c.b16 %v1460, %v1459
    %v1500 = vpack.c.b16 %v1462, %v1461
    %v1501 = vpack.c.b16 %v1464, %v1463
    %v1502 = vpack.c.b16 %v1466, %v1465
    %v1503 = vpack.c.b16 %v1468, %v1467
    %v1504 = vpack.c.b16 %v1470, %v1469
    %v1505 = vpack.c.b16 %v1472, %v1471
    %v1506 = vpack.c.b16 %v1474, %v1473
    %v1507 = vpack.c.b16 %v1476, %v1475
    %v1508 = vpack.c.b16 %v1478, %v1477
    %v1509 = vpack.c.b16 %v1480, %v1479
    %v1510 = vpack.c.b16 %v1482, %v1481
    %v1515 = vunpack.c.l.b16 %v1367
    %v1516 = vunpack.c.h.b16 %v1367
    %v1517 = vunpack.c.l.b16 %v1368
    %v1518 = vunpack.c.h.b16 %v1368
    %v1519 = vunpack.c.l.b16 %v1369
    %v1520 = vunpack.c.h.b16 %v1369
    %v1521 = vunpack.c.l.b16 %v1370
    %v1522 = vunpack.c.h.b16 %v1370
    %v1523 = vpack.c.b16 %v1517, %v1515
    %v1524 = vpack.c.b16 %v1518, %v1516
    %v1525 = vpack.c.b16 %v1521, %v1519
    %v1526 = vpack.c.b16 %v1522, %v1520
    %v1532 = vsel %vm384, %v1483, 0
    %v1535 = vsel %vm384, %v1484, 0
    %v1538 = vsel %vm384, %v1485, 0
    %v1541 = vsel %vm384, %v1486, 0
    %v1544 = vsel %vm384, %v1487, 0
    %v1547 = vsel %vm384, %v1488, 0
    %v1550 = vsel %vm384, %v1489, 0
    %v1553 = vsel %vm384, %v1490, 0
    %v1556 = vsel %vm384, %v1491, 0
    %v1559 = vsel %vm384, %v1492, 0
    %v1562 = vsel %vm384, %v1493, 0
    %v1565 = vsel %vm384, %v1494, 0
    %v1568 = vsel %vm384, %v1495, 0
    %v1571 = vsel %vm384, %v1496, 0
    %v1574 = vsel %vm384, %v1497, 0
    %v1577 = vsel %vm384, %v1498, 0
    %v1580 = vsel %vm384, %v1499, 0
    %v1583 = vsel %vm384, %v1500, 0
    %v1586 = vsel %vm384, %v1501, 0
    %v1589 = vsel %vm384, %v1502, 0
    %v1592 = vsel %vm384, %v1503, 0
    %v1595 = vsel %vm384, %v1504, 0
    %v1598 = vsel %vm384, %v1505, 0
    %v1601 = vsel %vm384, %v1506, 0
    %v1604 = vsel %vm384, %v1507, 0
    %v1607 = vsel %vm384, %v1508, 0
    %v1610 = vsel %vm384, %v1509, 0
    %v1613 = vsel %vm384, %v1510, 0
    %1615 = vmatpush.bf16.msra.mxu0 0
    %1616 = vmatpush.bf16.msra.mxu0 0
    %1617 = vmatpush.bf16.msra.mxu0 0
    %1618 = vmatpush.bf16.msra.mxu0 0
    %1619 = vmatpush.bf16.msra.mxu0 0
    %1620 = vmatpush.bf16.msra.mxu0 0
    %1621 = vmatpush.bf16.msra.mxu0 %v1525
    %1622 = vmatpush.bf16.msra.mxu0 %v1523
    %1623 = vmatmul.bf16.gmra.mxu0 %v1532
    %v1624 = vpop.f32.mrf.mxu0
    %v1625 = vadd.f32 0.0, %v1624
    %v1626 = vpop.f32.mrf.mxu0
    %v1627 = vadd.f32 0.0, %v1626
    %1628 = vmatmul.bf16.gmra.mxu0 %v1535
    %v1629 = vpop.f32.mrf.mxu0
    %v1630 = vadd.f32 0.0, %v1629
    %v1631 = vpop.f32.mrf.mxu0
    %v1632 = vadd.f32 0.0, %v1631
    %1633 = vmatmul.bf16.gmra.mxu0 %v1538
    %v1634 = vpop.f32.mrf.mxu0
    %v1635 = vadd.f32 0.0, %v1634
    %v1636 = vpop.f32.mrf.mxu0
    %v1637 = vadd.f32 0.0, %v1636
    %1638 = vmatmul.bf16.gmra.mxu0 %v1541
    %v1639 = vpop.f32.mrf.mxu0
    %v1640 = vadd.f32 0.0, %v1639
    %v1641 = vpop.f32.mrf.mxu0
    %v1642 = vadd.f32 0.0, %v1641
    %1643 = vmatmul.bf16.gmra.mxu0 %v1544
    %v1644 = vpop.f32.mrf.mxu0
    %v1645 = vadd.f32 0.0, %v1644
    %v1646 = vpop.f32.mrf.mxu0
    %v1647 = vadd.f32 0.0, %v1646
    %1648 = vmatmul.bf16.gmra.mxu0 %v1547
    %v1649 = vpop.f32.mrf.mxu0
    %v1650 = vadd.f32 0.0, %v1649
    %v1651 = vpop.f32.mrf.mxu0
    %v1652 = vadd.f32 0.0, %v1651
    %1653 = vmatmul.bf16.gmra.mxu0 %v1550
    %v1654 = vpop.f32.mrf.mxu0
    %v1655 = vadd.f32 0.0, %v1654
    %v1656 = vpop.f32.mrf.mxu0
    %v1657 = vadd.f32 0.0, %v1656
    %1658 = vmatmul.bf16.gmra.mxu0 %v1553
    %v1659 = vpop.f32.mrf.mxu0
    %v1660 = vadd.f32 0.0, %v1659
    %v1661 = vpop.f32.mrf.mxu0
    %v1662 = vadd.f32 0.0, %v1661
    %1663 = vmatmul.bf16.gmra.mxu0 %v1556
    %v1664 = vpop.f32.mrf.mxu0
    %v1665 = vadd.f32 0.0, %v1664
    %v1666 = vpop.f32.mrf.mxu0
    %v1667 = vadd.f32 0.0, %v1666
    %1668 = vmatmul.bf16.gmra.mxu0 %v1559
    %v1669 = vpop.f32.mrf.mxu0
    %v1670 = vadd.f32 0.0, %v1669
    %v1671 = vpop.f32.mrf.mxu0
    %v1672 = vadd.f32 0.0, %v1671
    %1673 = vmatmul.bf16.gmra.mxu0 %v1562
    %v1674 = vpop.f32.mrf.mxu0
    %v1675 = vadd.f32 0.0, %v1674
    %v1676 = vpop.f32.mrf.mxu0
    %v1677 = vadd.f32 0.0, %v1676
    %1678 = vmatmul.bf16.gmra.mxu0 %v1565
    %v1679 = vpop.f32.mrf.mxu0
    %v1680 = vadd.f32 0.0, %v1679
    %v1681 = vpop.f32.mrf.mxu0
    %v1682 = vadd.f32 0.0, %v1681
    %1683 = vmatmul.bf16.gmra.mxu0 %v1568
    %v1684 = vpop.f32.mrf.mxu0
    %v1685 = vadd.f32 0.0, %v1684
    %v1686 = vpop.f32.mrf.mxu0
    %v1687 = vadd.f32 0.0, %v1686
    %1688 = vmatmul.bf16.gmra.mxu0 %v1571
    %v1689 = vpop.f32.mrf.mxu0
    %v1690 = vadd.f32 0.0, %v1689
    %v1691 = vpop.f32.mrf.mxu0
    %v1692 = vadd.f32 0.0, %v1691
    %1693 = vmatmul.bf16.gmra.mxu0 %v1574
    %v1694 = vpop.f32.mrf.mxu0
    %v1695 = vadd.f32 0.0, %v1694
    %v1696 = vpop.f32.mrf.mxu0
    %v1697 = vadd.f32 0.0, %v1696
    %1698 = vmatmul.bf16.gmra.mxu0 %v1577
    %v1699 = vpop.f32.mrf.mxu0
    %v1700 = vadd.f32 0.0, %v1699
    %v1701 = vpop.f32.mrf.mxu0
    %v1702 = vadd.f32 0.0, %v1701
    %1703 = vmatmul.bf16.gmra.mxu0 %v1580
    %v1704 = vpop.f32.mrf.mxu0
    %v1705 = vadd.f32 0.0, %v1704
    %v1706 = vpop.f32.mrf.mxu0
    %v1707 = vadd.f32 0.0, %v1706
    %1708 = vmatmul.bf16.gmra.mxu0 %v1583
    %v1709 = vpop.f32.mrf.mxu0
    %v1710 = vadd.f32 0.0, %v1709
    %v1711 = vpop.f32.mrf.mxu0
    %v1712 = vadd.f32 0.0, %v1711
    %1713 = vmatmul.bf16.gmra.mxu0 %v1586
    %v1714 = vpop.f32.mrf.mxu0
    %v1715 = vadd.f32 0.0, %v1714
    %v1716 = vpop.f32.mrf.mxu0
    %v1717 = vadd.f32 0.0, %v1716
    %1718 = vmatmul.bf16.gmra.mxu0 %v1589
    %v1719 = vpop.f32.mrf.mxu0
    %v1720 = vadd.f32 0.0, %v1719
    %v1721 = vpop.f32.mrf.mxu0
    %v1722 = vadd.f32 0.0, %v1721
    %1723 = vmatmul.bf16.gmra.mxu0 %v1592
    %v1724 = vpop.f32.mrf.mxu0
    %v1725 = vadd.f32 0.0, %v1724
    %v1726 = vpop.f32.mrf.mxu0
    %v1727 = vadd.f32 0.0, %v1726
    %1728 = vmatmul.bf16.gmra.mxu0 %v1595
    %v1729 = vpop.f32.mrf.mxu0
    %v1730 = vadd.f32 0.0, %v1729
    %v1731 = vpop.f32.mrf.mxu0
    %v1732 = vadd.f32 0.0, %v1731
    %1733 = vmatmul.bf16.gmra.mxu0 %v1598
    %v1734 = vpop.f32.mrf.mxu0
    %v1735 = vadd.f32 0.0, %v1734
    %v1736 = vpop.f32.mrf.mxu0
    %v1737 = vadd.f32 0.0, %v1736
    %1738 = vmatmul.bf16.gmra.mxu0 %v1601
    %v1739 = vpop.f32.mrf.mxu0
    %v1740 = vadd.f32 0.0, %v1739
    %v1741 = vpop.f32.mrf.mxu0
    %v1742 = vadd.f32 0.0, %v1741
    %1743 = vmatmul.bf16.gmra.mxu0 %v1604
    %v1744 = vpop.f32.mrf.mxu0
    %v1745 = vadd.f32 0.0, %v1744
    %v1746 = vpop.f32.mrf.mxu0
    %v1747 = vadd.f32 0.0, %v1746
    %1748 = vmatmul.bf16.gmra.mxu0 %v1607
    %v1749 = vpop.f32.mrf.mxu0
    %v1750 = vadd.f32 0.0, %v1749
    %v1751 = vpop.f32.mrf.mxu0
    %v1752 = vadd.f32 0.0, %v1751
    %1753 = vmatmul.bf16.gmra.mxu0 %v1610
    %v1754 = vpop.f32.mrf.mxu0
    %v1755 = vadd.f32 0.0, %v1754
    %v1756 = vpop.f32.mrf.mxu0
    %v1757 = vadd.f32 0.0, %v1756
    %1758 = vmatmul.bf16.gmra.mxu0 %v1613
    %v1759 = vpop.f32.mrf.mxu0
    %v1760 = vadd.f32 0.0, %v1759
    %v1761 = vpop.f32.mrf.mxu0
    %v1762 = vadd.f32 0.0, %v1761
    %1763 = vdwg.mxu0
    %1764 = vmatpush.bf16.msra.mxu0 0
    %1765 = vmatpush.bf16.msra.mxu0 0
    %1766 = vmatpush.bf16.msra.mxu0 0
    %1767 = vmatpush.bf16.msra.mxu0 0
    %1768 = vmatpush.bf16.msra.mxu0 0
    %1769 = vmatpush.bf16.msra.mxu0 0
    %1770 = vmatpush.bf16.msra.mxu0 %v1526
    %1771 = vmatpush.bf16.msra.mxu0 %v1524
    %1772 = vmatmul.bf16.gmra.mxu0 %v1532
    %v1773 = vpop.f32.mrf.mxu0
    %v1774 = vadd.f32 0.0, %v1773
    %v1775 = vpop.f32.mrf.mxu0
    %v1776 = vadd.f32 0.0, %v1775
    %1777 = vmatmul.bf16.gmra.mxu0 %v1535
    %v1778 = vpop.f32.mrf.mxu0
    %v1779 = vadd.f32 0.0, %v1778
    %v1780 = vpop.f32.mrf.mxu0
    %v1781 = vadd.f32 0.0, %v1780
    %1782 = vmatmul.bf16.gmra.mxu0 %v1538
    %v1783 = vpop.f32.mrf.mxu0
    %v1784 = vadd.f32 0.0, %v1783
    %v1785 = vpop.f32.mrf.mxu0
    %v1786 = vadd.f32 0.0, %v1785
    %1787 = vmatmul.bf16.gmra.mxu0 %v1541
    %v1788 = vpop.f32.mrf.mxu0
    %v1789 = vadd.f32 0.0, %v1788
    %v1790 = vpop.f32.mrf.mxu0
    %v1791 = vadd.f32 0.0, %v1790
    %1792 = vmatmul.bf16.gmra.mxu0 %v1544
    %v1793 = vpop.f32.mrf.mxu0
    %v1794 = vadd.f32 0.0, %v1793
    %v1795 = vpop.f32.mrf.mxu0
    %v1796 = vadd.f32 0.0, %v1795
    %1797 = vmatmul.bf16.gmra.mxu0 %v1547
    %v1798 = vpop.f32.mrf.mxu0
    %v1799 = vadd.f32 0.0, %v1798
    %v1800 = vpop.f32.mrf.mxu0
    %v1801 = vadd.f32 0.0, %v1800
    %1802 = vmatmul.bf16.gmra.mxu0 %v1550
    %v1803 = vpop.f32.mrf.mxu0
    %v1804 = vadd.f32 0.0, %v1803
    %v1805 = vpop.f32.mrf.mxu0
    %v1806 = vadd.f32 0.0, %v1805
    %1807 = vmatmul.bf16.gmra.mxu0 %v1553
    %v1808 = vpop.f32.mrf.mxu0
    %v1809 = vadd.f32 0.0, %v1808
    %v1810 = vpop.f32.mrf.mxu0
    %v1811 = vadd.f32 0.0, %v1810
    %1812 = vmatmul.bf16.gmra.mxu0 %v1556
    %v1813 = vpop.f32.mrf.mxu0
    %v1814 = vadd.f32 0.0, %v1813
    %v1815 = vpop.f32.mrf.mxu0
    %v1816 = vadd.f32 0.0, %v1815
    %1817 = vmatmul.bf16.gmra.mxu0 %v1559
    %v1818 = vpop.f32.mrf.mxu0
    %v1819 = vadd.f32 0.0, %v1818
    %v1820 = vpop.f32.mrf.mxu0
    %v1821 = vadd.f32 0.0, %v1820
    %1822 = vmatmul.bf16.gmra.mxu0 %v1562
    %v1823 = vpop.f32.mrf.mxu0
    %v1824 = vadd.f32 0.0, %v1823
    %v1825 = vpop.f32.mrf.mxu0
    %v1826 = vadd.f32 0.0, %v1825
    %1827 = vmatmul.bf16.gmra.mxu0 %v1565
    %v1828 = vpop.f32.mrf.mxu0
    %v1829 = vadd.f32 0.0, %v1828
    %v1830 = vpop.f32.mrf.mxu0
    %v1831 = vadd.f32 0.0, %v1830
    %1832 = vmatmul.bf16.gmra.mxu0 %v1568
    %v1833 = vpop.f32.mrf.mxu0
    %v1834 = vadd.f32 0.0, %v1833
    %v1835 = vpop.f32.mrf.mxu0
    %v1836 = vadd.f32 0.0, %v1835
    %1837 = vmatmul.bf16.gmra.mxu0 %v1571
    %v1838 = vpop.f32.mrf.mxu0
    %v1839 = vadd.f32 0.0, %v1838
    %v1840 = vpop.f32.mrf.mxu0
    %v1841 = vadd.f32 0.0, %v1840
    %1842 = vmatmul.bf16.gmra.mxu0 %v1574
    %v1843 = vpop.f32.mrf.mxu0
    %v1844 = vadd.f32 0.0, %v1843
    %v1845 = vpop.f32.mrf.mxu0
    %v1846 = vadd.f32 0.0, %v1845
    %1847 = vmatmul.bf16.gmra.mxu0 %v1577
    %v1848 = vpop.f32.mrf.mxu0
    %v1849 = vadd.f32 0.0, %v1848
    %v1850 = vpop.f32.mrf.mxu0
    %v1851 = vadd.f32 0.0, %v1850
    %1852 = vmatmul.bf16.gmra.mxu0 %v1580
    %v1853 = vpop.f32.mrf.mxu0
    %v1854 = vadd.f32 0.0, %v1853
    %v1855 = vpop.f32.mrf.mxu0
    %v1856 = vadd.f32 0.0, %v1855
    %1857 = vmatmul.bf16.gmra.mxu0 %v1583
    %v1858 = vpop.f32.mrf.mxu0
    %v1859 = vadd.f32 0.0, %v1858
    %v1860 = vpop.f32.mrf.mxu0
    %v1861 = vadd.f32 0.0, %v1860
    %1862 = vmatmul.bf16.gmra.mxu0 %v1586
    %v1863 = vpop.f32.mrf.mxu0
    %v1864 = vadd.f32 0.0, %v1863
    %v1865 = vpop.f32.mrf.mxu0
    %v1866 = vadd.f32 0.0, %v1865
    %1867 = vmatmul.bf16.gmra.mxu0 %v1589
    %v1868 = vpop.f32.mrf.mxu0
    %v1869 = vadd.f32 0.0, %v1868
    %v1870 = vpop.f32.mrf.mxu0
    %v1871 = vadd.f32 0.0, %v1870
    %1872 = vmatmul.bf16.gmra.mxu0 %v1592
    %v1873 = vpop.f32.mrf.mxu0
    %v1874 = vadd.f32 0.0, %v1873
    %v1875 = vpop.f32.mrf.mxu0
    %v1876 = vadd.f32 0.0, %v1875
    %1877 = vmatmul.bf16.gmra.mxu0 %v1595
    %v1878 = vpop.f32.mrf.mxu0
    %v1879 = vadd.f32 0.0, %v1878
    %v1880 = vpop.f32.mrf.mxu0
    %v1881 = vadd.f32 0.0, %v1880
    %1882 = vmatmul.bf16.gmra.mxu0 %v1598
    %v1883 = vpop.f32.mrf.mxu0
    %v1884 = vadd.f32 0.0, %v1883
    %v1885 = vpop.f32.mrf.mxu0
    %v1886 = vadd.f32 0.0, %v1885
    %1887 = vmatmul.bf16.gmra.mxu0 %v1601
    %v1888 = vpop.f32.mrf.mxu0
    %v1889 = vadd.f32 0.0, %v1888
    %v1890 = vpop.f32.mrf.mxu0
    %v1891 = vadd.f32 0.0, %v1890
    %1892 = vmatmul.bf16.gmra.mxu0 %v1604
    %v1893 = vpop.f32.mrf.mxu0
    %v1894 = vadd.f32 0.0, %v1893
    %v1895 = vpop.f32.mrf.mxu0
    %v1896 = vadd.f32 0.0, %v1895
    %1897 = vmatmul.bf16.gmra.mxu0 %v1607
    %v1898 = vpop.f32.mrf.mxu0
    %v1899 = vadd.f32 0.0, %v1898
    %v1900 = vpop.f32.mrf.mxu0
    %v1901 = vadd.f32 0.0, %v1900
    %1902 = vmatmul.bf16.gmra.mxu0 %v1610
    %v1903 = vpop.f32.mrf.mxu0
    %v1904 = vadd.f32 0.0, %v1903
    %v1905 = vpop.f32.mrf.mxu0
    %v1906 = vadd.f32 0.0, %v1905
    %1907 = vmatmul.bf16.gmra.mxu0 %v1613
    %v1908 = vpop.f32.mrf.mxu0
    %v1909 = vadd.f32 0.0, %v1908
    %v1910 = vpop.f32.mrf.mxu0
    %v1911 = vadd.f32 0.0, %v1910
    %1912 = vdwg.mxu0
    %v1913 = vadd.f32 %v1021, %v1625
    %v1914 = vadd.f32 %v1170, %v1774
    %v1915 = vadd.f32 %v1023, %v1627
    %v1916 = vadd.f32 %v1172, %v1776
    %v1917 = vadd.f32 %v1026, %v1630
    %v1918 = vadd.f32 %v1175, %v1779
    %v1919 = vadd.f32 %v1028, %v1632
    %v1920 = vadd.f32 %v1177, %v1781
    %v1921 = vadd.f32 %v1031, %v1635
    %v1922 = vadd.f32 %v1180, %v1784
    %v1923 = vadd.f32 %v1033, %v1637
    %v1924 = vadd.f32 %v1182, %v1786
    %v1925 = vadd.f32 %v1036, %v1640
    %v1926 = vadd.f32 %v1185, %v1789
    %v1927 = vadd.f32 %v1038, %v1642
    %v1928 = vadd.f32 %v1187, %v1791
    %v1929 = vadd.f32 %v1041, %v1645
    %v1930 = vadd.f32 %v1190, %v1794
    %v1931 = vadd.f32 %v1043, %v1647
    %v1932 = vadd.f32 %v1192, %v1796
    %v1933 = vadd.f32 %v1046, %v1650
    %v1934 = vadd.f32 %v1195, %v1799
    %v1935 = vadd.f32 %v1048, %v1652
    %v1936 = vadd.f32 %v1197, %v1801
    %v1937 = vadd.f32 %v1051, %v1655
    %v1938 = vadd.f32 %v1200, %v1804
    %v1939 = vadd.f32 %v1053, %v1657
    %v1940 = vadd.f32 %v1202, %v1806
    %v1941 = vadd.f32 %v1056, %v1660
    %v1942 = vadd.f32 %v1205, %v1809
    %v1943 = vadd.f32 %v1058, %v1662
    %v1944 = vadd.f32 %v1207, %v1811
    %v1945 = vadd.f32 %v1061, %v1665
    %v1946 = vadd.f32 %v1210, %v1814
    %v1947 = vadd.f32 %v1063, %v1667
    %v1948 = vadd.f32 %v1212, %v1816
    %v1949 = vadd.f32 %v1066, %v1670
    %v1950 = vadd.f32 %v1215, %v1819
    %v1951 = vadd.f32 %v1068, %v1672
    %v1952 = vadd.f32 %v1217, %v1821
    %v1953 = vadd.f32 %v1071, %v1675
    %v1954 = vadd.f32 %v1220, %v1824
    %v1955 = vadd.f32 %v1073, %v1677
    %v1956 = vadd.f32 %v1222, %v1826
    %v1957 = vadd.f32 %v1076, %v1680
    %v1958 = vadd.f32 %v1225, %v1829
    %v1959 = vadd.f32 %v1078, %v1682
    %v1960 = vadd.f32 %v1227, %v1831
    %v1961 = vadd.f32 %v1081, %v1685
    %v1962 = vadd.f32 %v1230, %v1834
    %v1963 = vadd.f32 %v1083, %v1687
    %v1964 = vadd.f32 %v1232, %v1836
    %v1965 = vadd.f32 %v1086, %v1690
    %v1966 = vadd.f32 %v1235, %v1839
    %v1967 = vadd.f32 %v1088, %v1692
    %v1968 = vadd.f32 %v1237, %v1841
    %v1969 = vadd.f32 %v1091, %v1695
    %v1970 = vadd.f32 %v1240, %v1844
    %v1971 = vadd.f32 %v1093, %v1697
    %v1972 = vadd.f32 %v1242, %v1846
    %v1973 = vadd.f32 %v1096, %v1700
    %v1974 = vadd.f32 %v1245, %v1849
    %v1975 = vadd.f32 %v1098, %v1702
    %v1976 = vadd.f32 %v1247, %v1851
    %v1977 = vadd.f32 %v1101, %v1705
    %v1978 = vadd.f32 %v1250, %v1854
    %v1979 = vadd.f32 %v1103, %v1707
    %v1980 = vadd.f32 %v1252, %v1856
    %v1981 = vadd.f32 %v1106, %v1710
    %v1982 = vadd.f32 %v1255, %v1859
    %v1983 = vadd.f32 %v1108, %v1712
    %v1984 = vadd.f32 %v1257, %v1861
    %v1985 = vadd.f32 %v1111, %v1715
    %v1986 = vadd.f32 %v1260, %v1864
    %v1987 = vadd.f32 %v1113, %v1717
    %v1988 = vadd.f32 %v1262, %v1866
    %v1989 = vadd.f32 %v1116, %v1720
    %v1990 = vadd.f32 %v1265, %v1869
    %v1991 = vadd.f32 %v1118, %v1722
    %v1992 = vadd.f32 %v1267, %v1871
    %v1993 = vadd.f32 %v1121, %v1725
    %v1994 = vadd.f32 %v1270, %v1874
    %v1995 = vadd.f32 %v1123, %v1727
    %v1996 = vadd.f32 %v1272, %v1876
    %v1997 = vadd.f32 %v1126, %v1730
    %v1998 = vadd.f32 %v1275, %v1879
    %v1999 = vadd.f32 %v1128, %v1732
    %v2000 = vadd.f32 %v1277, %v1881
    %v2001 = vadd.f32 %v1131, %v1735
    %v2002 = vadd.f32 %v1280, %v1884
    %v2003 = vadd.f32 %v1133, %v1737
    %v2004 = vadd.f32 %v1282, %v1886
    %v2005 = vadd.f32 %v1136, %v1740
    %v2006 = vadd.f32 %v1285, %v1889
    %v2007 = vadd.f32 %v1138, %v1742
    %v2008 = vadd.f32 %v1287, %v1891
    %v2009 = vadd.f32 %v1141, %v1745
    %v2010 = vadd.f32 %v1290, %v1894
    %v2011 = vadd.f32 %v1143, %v1747
    %v2012 = vadd.f32 %v1292, %v1896
    %v2013 = vadd.f32 %v1146, %v1750
    %v2014 = vadd.f32 %v1295, %v1899
    %v2015 = vadd.f32 %v1148, %v1752
    %v2016 = vadd.f32 %v1297, %v1901
    %v2017 = vadd.f32 %v1151, %v1755
    %v2018 = vadd.f32 %v1300, %v1904
    %v2019 = vadd.f32 %v1153, %v1757
    %v2020 = vadd.f32 %v1302, %v1906
    %v2021 = vadd.f32 %v1156, %v1760
    %v2022 = vadd.f32 %v1305, %v1909
    %v2023 = vadd.f32 %v1158, %v1762
    %v2024 = vadd.f32 %v1307, %v1911
    %s2025 = scalar_lea.vmem %s0, 24
    %v2026 = vld [vmem:[%s2025] sm:$0xf]
    %v2027 = vld [vmem:[%s2025 + $0x4] sm:$0xf]
    %v2028 = vld [vmem:[%s2025 + $0x8] sm:$0xf]
    %v2029 = vld [vmem:[%s2025 + $0xc] sm:$0xf]
    %v2030 = vld [vmem:[%s2025 + $0x10] sm:$0xf]
    %v2031 = vld [vmem:[%s2025 + $0x14] sm:$0xf]
    %v2032 = vld [vmem:[%s2025 + $0x18] sm:$0xf]
    %v2033 = vld [vmem:[%s2025 + $0x1c] sm:$0xf]
    %v2034 = vld [vmem:[%s2025 + $0x20] sm:$0xf]
    %v2035 = vld [vmem:[%s2025 + $0x24] sm:$0xf]
    %v2036 = vld [vmem:[%s2025 + $0x28] sm:$0xf]
    %v2037 = vld [vmem:[%s2025 + $0x2c] sm:$0xf]
    %v2038 = vld [vmem:[%s2025 + $0x30] sm:$0xf]
    %v2039 = vld [vmem:[%s2025 + $0x34] sm:$0xf]
    %v2040 = vld [vmem:[%s2025 + $0x38] sm:$0xf]
    %v2041 = vld [vmem:[%s2025 + $0x3c] sm:$0xf]
    %v2042 = vld [vmem:[%s2025 + $0x40] sm:$0xf]
    %v2043 = vld [vmem:[%s2025 + $0x44] sm:$0xf]
    %v2044 = vld [vmem:[%s2025 + $0x48] sm:$0xf]
    %v2045 = vld [vmem:[%s2025 + $0x4c] sm:$0xf]
    %v2046 = vld [vmem:[%s2025 + $0x50] sm:$0xf]
    %v2047 = vld [vmem:[%s2025 + $0x54] sm:$0xf]
    %v2048 = vld [vmem:[%s2025 + $0x58] sm:$0xf]
    %v2049 = vld [vmem:[%s2025 + $0x5c] sm:$0xf]
    %v2050 = vld [vmem:[%s2025 + $0x60] sm:$0xf]
    %v2051 = vld [vmem:[%s2025 + $0x64] sm:$0xf]
    %v2052 = vld [vmem:[%s2025 + $0x68] sm:$0xf]
    %v2053 = vld [vmem:[%s2025 + $0x6c] sm:$0xf]
    %v2054 = vld [vmem:[%s2025 + $0x70] sm:$0xf]
    %v2055 = vld [vmem:[%s2025 + $0x74] sm:$0xf]
    %v2056 = vld [vmem:[%s2025 + $0x78] sm:$0xf]
    %v2057 = vld [vmem:[%s2025 + $0x7c] sm:$0xf]
    %v2058 = vld [vmem:[%s2025 + $0x80] sm:$0xf]
    %v2059 = vld [vmem:[%s2025 + $0x84] sm:$0xf]
    %v2060 = vld [vmem:[%s2025 + $0x88] sm:$0xf]
    %v2061 = vld [vmem:[%s2025 + $0x8c] sm:$0xf]
    %v2062 = vld [vmem:[%s2025 + $0x90] sm:$0xf]
    %v2063 = vld [vmem:[%s2025 + $0x94] sm:$0xf]
    %v2064 = vld [vmem:[%s2025 + $0x98] sm:$0xf]
    %v2065 = vld [vmem:[%s2025 + $0x9c] sm:$0xf]
    %v2066 = vld [vmem:[%s2025 + $0xa0] sm:$0xf]
    %v2067 = vld [vmem:[%s2025 + $0xa4] sm:$0xf]
    %v2068 = vld [vmem:[%s2025 + $0xa8] sm:$0xf]
    %v2069 = vld [vmem:[%s2025 + $0xac] sm:$0xf]
    %v2070 = vld [vmem:[%s2025 + $0xb0] sm:$0xf]
    %v2071 = vld [vmem:[%s2025 + $0xb4] sm:$0xf]
    %v2072 = vld [vmem:[%s2025 + $0xb8] sm:$0xf]
    %v2073 = vld [vmem:[%s2025 + $0xbc] sm:$0xf]
    %v2074 = vld [vmem:[%s2025 + $0xc0] sm:$0xf]
    %v2075 = vld [vmem:[%s2025 + $0xc4] sm:$0xf]
    %v2076 = vld [vmem:[%s2025 + $0xc8] sm:$0xf]
    %v2077 = vld [vmem:[%s2025 + $0xcc] sm:$0xf]
    %v2078 = vld [vmem:[%s2025 + $0xd0] sm:$0xf]
    %v2079 = vld [vmem:[%s2025 + $0xd4] sm:$0xf]
    %v2080 = vld [vmem:[%s2025 + $0xd8] sm:$0xf]
    %v2081 = vld [vmem:[%s2025 + $0xdc] sm:$0xf]
    %s2082 = scalar_lea.vmem [#allocation2], 96
    %v2083 = vld [vmem:[%s2082] sm:$0xff]
    %v2084 = vld [vmem:[%s2082 + $0x8] sm:$0xff]
    %v2085 = vld [vmem:[%s2082 + $0x10] sm:$0xff]
    %v2086 = vld [vmem:[%s2082 + $0x18] sm:$0xff]
    %v2143 = vunpack.c.l.b16 %v2026
    %v2144 = vunpack.c.l.b16 %v2027
    %v2145 = vunpack.c.l.b16 %v2028
    %v2146 = vunpack.c.l.b16 %v2029
    %v2147 = vunpack.c.l.b16 %v2030
    %v2148 = vunpack.c.l.b16 %v2031
    %v2149 = vunpack.c.l.b16 %v2032
    %v2150 = vunpack.c.l.b16 %v2033
    %v2151 = vunpack.c.l.b16 %v2034
    %v2152 = vunpack.c.l.b16 %v2035
    %v2153 = vunpack.c.l.b16 %v2036
    %v2154 = vunpack.c.l.b16 %v2037
    %v2155 = vunpack.c.l.b16 %v2038
    %v2156 = vunpack.c.l.b16 %v2039
    %v2157 = vunpack.c.l.b16 %v2040
    %v2158 = vunpack.c.l.b16 %v2041
    %v2159 = vunpack.c.l.b16 %v2042
    %v2160 = vunpack.c.l.b16 %v2043
    %v2161 = vunpack.c.l.b16 %v2044
    %v2162 = vunpack.c.l.b16 %v2045
    %v2163 = vunpack.c.l.b16 %v2046
    %v2164 = vunpack.c.l.b16 %v2047
    %v2165 = vunpack.c.l.b16 %v2048
    %v2166 = vunpack.c.l.b16 %v2049
    %v2167 = vunpack.c.l.b16 %v2050
    %v2168 = vunpack.c.l.b16 %v2051
    %v2169 = vunpack.c.l.b16 %v2052
    %v2170 = vunpack.c.l.b16 %v2053
    %v2171 = vunpack.c.l.b16 %v2054
    %v2172 = vunpack.c.l.b16 %v2055
    %v2173 = vunpack.c.l.b16 %v2056
    %v2174 = vunpack.c.l.b16 %v2057
    %v2175 = vunpack.c.l.b16 %v2058
    %v2176 = vunpack.c.l.b16 %v2059
    %v2177 = vunpack.c.l.b16 %v2060
    %v2178 = vunpack.c.l.b16 %v2061
    %v2179 = vunpack.c.l.b16 %v2062
    %v2180 = vunpack.c.l.b16 %v2063
    %v2181 = vunpack.c.l.b16 %v2064
    %v2182 = vunpack.c.l.b16 %v2065
    %v2183 = vunpack.c.l.b16 %v2066
    %v2184 = vunpack.c.l.b16 %v2067
    %v2185 = vunpack.c.l.b16 %v2068
    %v2186 = vunpack.c.l.b16 %v2069
    %v2187 = vunpack.c.l.b16 %v2070
    %v2188 = vunpack.c.l.b16 %v2071
    %v2189 = vunpack.c.l.b16 %v2072
    %v2190 = vunpack.c.l.b16 %v2073
    %v2191 = vunpack.c.l.b16 %v2074
    %v2192 = vunpack.c.l.b16 %v2075
    %v2193 = vunpack.c.l.b16 %v2076
    %v2194 = vunpack.c.l.b16 %v2077
    %v2195 = vunpack.c.l.b16 %v2078
    %v2196 = vunpack.c.l.b16 %v2079
    %v2197 = vunpack.c.l.b16 %v2080
    %v2198 = vunpack.c.l.b16 %v2081
    %v2199 = vpack.c.b16 %v2144, %v2143
    %v2200 = vpack.c.b16 %v2146, %v2145
    %v2201 = vpack.c.b16 %v2148, %v2147
    %v2202 = vpack.c.b16 %v2150, %v2149
    %v2203 = vpack.c.b16 %v2152, %v2151
    %v2204 = vpack.c.b16 %v2154, %v2153
    %v2205 = vpack.c.b16 %v2156, %v2155
    %v2206 = vpack.c.b16 %v2158, %v2157
    %v2207 = vpack.c.b16 %v2160, %v2159
    %v2208 = vpack.c.b16 %v2162, %v2161
    %v2209 = vpack.c.b16 %v2164, %v2163
    %v2210 = vpack.c.b16 %v2166, %v2165
    %v2211 = vpack.c.b16 %v2168, %v2167
    %v2212 = vpack.c.b16 %v2170, %v2169
    %v2213 = vpack.c.b16 %v2172, %v2171
    %v2214 = vpack.c.b16 %v2174, %v2173
    %v2215 = vpack.c.b16 %v2176, %v2175
    %v2216 = vpack.c.b16 %v2178, %v2177
    %v2217 = vpack.c.b16 %v2180, %v2179
    %v2218 = vpack.c.b16 %v2182, %v2181
    %v2219 = vpack.c.b16 %v2184, %v2183
    %v2220 = vpack.c.b16 %v2186, %v2185
    %v2221 = vpack.c.b16 %v2188, %v2187
    %v2222 = vpack.c.b16 %v2190, %v2189
    %v2223 = vpack.c.b16 %v2192, %v2191
    %v2224 = vpack.c.b16 %v2194, %v2193
    %v2225 = vpack.c.b16 %v2196, %v2195
    %v2226 = vpack.c.b16 %v2198, %v2197
    %v2231 = vunpack.c.l.b16 %v2083
    %v2232 = vunpack.c.h.b16 %v2083
    %v2233 = vunpack.c.l.b16 %v2084
    %v2234 = vunpack.c.h.b16 %v2084
    %v2235 = vunpack.c.l.b16 %v2085
    %v2236 = vunpack.c.h.b16 %v2085
    %v2237 = vunpack.c.l.b16 %v2086
    %v2238 = vunpack.c.h.b16 %v2086
    %v2239 = vpack.c.b16 %v2233, %v2231
    %v2240 = vpack.c.b16 %v2234, %v2232
    %v2241 = vpack.c.b16 %v2237, %v2235
    %v2242 = vpack.c.b16 %v2238, %v2236
    %v2248 = vsel %vm384, %v2199, 0
    %v2251 = vsel %vm384, %v2200, 0
    %v2254 = vsel %vm384, %v2201, 0
    %v2257 = vsel %vm384, %v2202, 0
    %v2260 = vsel %vm384, %v2203, 0
    %v2263 = vsel %vm384, %v2204, 0
    %v2266 = vsel %vm384, %v2205, 0
    %v2269 = vsel %vm384, %v2206, 0
    %v2272 = vsel %vm384, %v2207, 0
    %v2275 = vsel %vm384, %v2208, 0
    %v2278 = vsel %vm384, %v2209, 0
    %v2281 = vsel %vm384, %v2210, 0
    %v2284 = vsel %vm384, %v2211, 0
    %v2287 = vsel %vm384, %v2212, 0
    %v2290 = vsel %vm384, %v2213, 0
    %v2293 = vsel %vm384, %v2214, 0
    %v2296 = vsel %vm384, %v2215, 0
    %v2299 = vsel %vm384, %v2216, 0
    %v2302 = vsel %vm384, %v2217, 0
    %v2305 = vsel %vm384, %v2218, 0
    %v2308 = vsel %vm384, %v2219, 0
    %v2311 = vsel %vm384, %v2220, 0
    %v2314 = vsel %vm384, %v2221, 0
    %v2317 = vsel %vm384, %v2222, 0
    %v2320 = vsel %vm384, %v2223, 0
    %v2323 = vsel %vm384, %v2224, 0
    %v2326 = vsel %vm384, %v2225, 0
    %v2329 = vsel %vm384, %v2226, 0
    %2331 = vmatpush.bf16.msra.mxu0 0
    %2332 = vmatpush.bf16.msra.mxu0 0
    %2333 = vmatpush.bf16.msra.mxu0 0
    %2334 = vmatpush.bf16.msra.mxu0 0
    %2335 = vmatpush.bf16.msra.mxu0 0
    %2336 = vmatpush.bf16.msra.mxu0 0
    %2337 = vmatpush.bf16.msra.mxu0 %v2241
    %2338 = vmatpush.bf16.msra.mxu0 %v2239
    %2339 = vmatmul.bf16.gmra.mxu0 %v2248
    %v2340 = vpop.f32.mrf.mxu0
    %v2341 = vadd.f32 0.0, %v2340
    %v2342 = vpop.f32.mrf.mxu0
    %v2343 = vadd.f32 0.0, %v2342
    %2344 = vmatmul.bf16.gmra.mxu0 %v2251
    %v2345 = vpop.f32.mrf.mxu0
    %v2346 = vadd.f32 0.0, %v2345
    %v2347 = vpop.f32.mrf.mxu0
    %v2348 = vadd.f32 0.0, %v2347
    %2349 = vmatmul.bf16.gmra.mxu0 %v2254
    %v2350 = vpop.f32.mrf.mxu0
    %v2351 = vadd.f32 0.0, %v2350
    %v2352 = vpop.f32.mrf.mxu0
    %v2353 = vadd.f32 0.0, %v2352
    %2354 = vmatmul.bf16.gmra.mxu0 %v2257
    %v2355 = vpop.f32.mrf.mxu0
    %v2356 = vadd.f32 0.0, %v2355
    %v2357 = vpop.f32.mrf.mxu0
    %v2358 = vadd.f32 0.0, %v2357
    %2359 = vmatmul.bf16.gmra.mxu0 %v2260
    %v2360 = vpop.f32.mrf.mxu0
    %v2361 = vadd.f32 0.0, %v2360
    %v2362 = vpop.f32.mrf.mxu0
    %v2363 = vadd.f32 0.0, %v2362
    %2364 = vmatmul.bf16.gmra.mxu0 %v2263
    %v2365 = vpop.f32.mrf.mxu0
    %v2366 = vadd.f32 0.0, %v2365
    %v2367 = vpop.f32.mrf.mxu0
    %v2368 = vadd.f32 0.0, %v2367
    %2369 = vmatmul.bf16.gmra.mxu0 %v2266
    %v2370 = vpop.f32.mrf.mxu0
    %v2371 = vadd.f32 0.0, %v2370
    %v2372 = vpop.f32.mrf.mxu0
    %v2373 = vadd.f32 0.0, %v2372
    %2374 = vmatmul.bf16.gmra.mxu0 %v2269
    %v2375 = vpop.f32.mrf.mxu0
    %v2376 = vadd.f32 0.0, %v2375
    %v2377 = vpop.f32.mrf.mxu0
    %v2378 = vadd.f32 0.0, %v2377
    %2379 = vmatmul.bf16.gmra.mxu0 %v2272
    %v2380 = vpop.f32.mrf.mxu0
    %v2381 = vadd.f32 0.0, %v2380
    %v2382 = vpop.f32.mrf.mxu0
    %v2383 = vadd.f32 0.0, %v2382
    %2384 = vmatmul.bf16.gmra.mxu0 %v2275
    %v2385 = vpop.f32.mrf.mxu0
    %v2386 = vadd.f32 0.0, %v2385
    %v2387 = vpop.f32.mrf.mxu0
    %v2388 = vadd.f32 0.0, %v2387
    %2389 = vmatmul.bf16.gmra.mxu0 %v2278
    %v2390 = vpop.f32.mrf.mxu0
    %v2391 = vadd.f32 0.0, %v2390
    %v2392 = vpop.f32.mrf.mxu0
    %v2393 = vadd.f32 0.0, %v2392
    %2394 = vmatmul.bf16.gmra.mxu0 %v2281
    %v2395 = vpop.f32.mrf.mxu0
    %v2396 = vadd.f32 0.0, %v2395
    %v2397 = vpop.f32.mrf.mxu0
    %v2398 = vadd.f32 0.0, %v2397
    %2399 = vmatmul.bf16.gmra.mxu0 %v2284
    %v2400 = vpop.f32.mrf.mxu0
    %v2401 = vadd.f32 0.0, %v2400
    %v2402 = vpop.f32.mrf.mxu0
    %v2403 = vadd.f32 0.0, %v2402
    %2404 = vmatmul.bf16.gmra.mxu0 %v2287
    %v2405 = vpop.f32.mrf.mxu0
    %v2406 = vadd.f32 0.0, %v2405
    %v2407 = vpop.f32.mrf.mxu0
    %v2408 = vadd.f32 0.0, %v2407
    %2409 = vmatmul.bf16.gmra.mxu0 %v2290
    %v2410 = vpop.f32.mrf.mxu0
    %v2411 = vadd.f32 0.0, %v2410
    %v2412 = vpop.f32.mrf.mxu0
    %v2413 = vadd.f32 0.0, %v2412
    %2414 = vmatmul.bf16.gmra.mxu0 %v2293
    %v2415 = vpop.f32.mrf.mxu0
    %v2416 = vadd.f32 0.0, %v2415
    %v2417 = vpop.f32.mrf.mxu0
    %v2418 = vadd.f32 0.0, %v2417
    %2419 = vmatmul.bf16.gmra.mxu0 %v2296
    %v2420 = vpop.f32.mrf.mxu0
    %v2421 = vadd.f32 0.0, %v2420
    %v2422 = vpop.f32.mrf.mxu0
    %v2423 = vadd.f32 0.0, %v2422
    %2424 = vmatmul.bf16.gmra.mxu0 %v2299
    %v2425 = vpop.f32.mrf.mxu0
    %v2426 = vadd.f32 0.0, %v2425
    %v2427 = vpop.f32.mrf.mxu0
    %v2428 = vadd.f32 0.0, %v2427
    %2429 = vmatmul.bf16.gmra.mxu0 %v2302
    %v2430 = vpop.f32.mrf.mxu0
    %v2431 = vadd.f32 0.0, %v2430
    %v2432 = vpop.f32.mrf.mxu0
    %v2433 = vadd.f32 0.0, %v2432
    %2434 = vmatmul.bf16.gmra.mxu0 %v2305
    %v2435 = vpop.f32.mrf.mxu0
    %v2436 = vadd.f32 0.0, %v2435
    %v2437 = vpop.f32.mrf.mxu0
    %v2438 = vadd.f32 0.0, %v2437
    %2439 = vmatmul.bf16.gmra.mxu0 %v2308
    %v2440 = vpop.f32.mrf.mxu0
    %v2441 = vadd.f32 0.0, %v2440
    %v2442 = vpop.f32.mrf.mxu0
    %v2443 = vadd.f32 0.0, %v2442
    %2444 = vmatmul.bf16.gmra.mxu0 %v2311
    %v2445 = vpop.f32.mrf.mxu0
    %v2446 = vadd.f32 0.0, %v2445
    %v2447 = vpop.f32.mrf.mxu0
    %v2448 = vadd.f32 0.0, %v2447
    %2449 = vmatmul.bf16.gmra.mxu0 %v2314
    %v2450 = vpop.f32.mrf.mxu0
    %v2451 = vadd.f32 0.0, %v2450
    %v2452 = vpop.f32.mrf.mxu0
    %v2453 = vadd.f32 0.0, %v2452
    %2454 = vmatmul.bf16.gmra.mxu0 %v2317
    %v2455 = vpop.f32.mrf.mxu0
    %v2456 = vadd.f32 0.0, %v2455
    %v2457 = vpop.f32.mrf.mxu0
    %v2458 = vadd.f32 0.0, %v2457
    %2459 = vmatmul.bf16.gmra.mxu0 %v2320
    %v2460 = vpop.f32.mrf.mxu0
    %v2461 = vadd.f32 0.0, %v2460
    %v2462 = vpop.f32.mrf.mxu0
    %v2463 = vadd.f32 0.0, %v2462
    %2464 = vmatmul.bf16.gmra.mxu0 %v2323
    %v2465 = vpop.f32.mrf.mxu0
    %v2466 = vadd.f32 0.0, %v2465
    %v2467 = vpop.f32.mrf.mxu0
    %v2468 = vadd.f32 0.0, %v2467
    %2469 = vmatmul.bf16.gmra.mxu0 %v2326
    %v2470 = vpop.f32.mrf.mxu0
    %v2471 = vadd.f32 0.0, %v2470
    %v2472 = vpop.f32.mrf.mxu0
    %v2473 = vadd.f32 0.0, %v2472
    %2474 = vmatmul.bf16.gmra.mxu0 %v2329
    %v2475 = vpop.f32.mrf.mxu0
    %v2476 = vadd.f32 0.0, %v2475
    %v2477 = vpop.f32.mrf.mxu0
    %v2478 = vadd.f32 0.0, %v2477
    %2479 = vdwg.mxu0
    %2480 = vmatpush.bf16.msra.mxu0 0
    %2481 = vmatpush.bf16.msra.mxu0 0
    %2482 = vmatpush.bf16.msra.mxu0 0
    %2483 = vmatpush.bf16.msra.mxu0 0
    %2484 = vmatpush.bf16.msra.mxu0 0
    %2485 = vmatpush.bf16.msra.mxu0 0
    %2486 = vmatpush.bf16.msra.mxu0 %v2242
    %2487 = vmatpush.bf16.msra.mxu0 %v2240
    %2488 = vmatmul.bf16.gmra.mxu0 %v2248
    %v2489 = vpop.f32.mrf.mxu0
    %v2490 = vadd.f32 0.0, %v2489
    %v2491 = vpop.f32.mrf.mxu0
    %v2492 = vadd.f32 0.0, %v2491
    %2493 = vmatmul.bf16.gmra.mxu0 %v2251
    %v2494 = vpop.f32.mrf.mxu0
    %v2495 = vadd.f32 0.0, %v2494
    %v2496 = vpop.f32.mrf.mxu0
    %v2497 = vadd.f32 0.0, %v2496
    %2498 = vmatmul.bf16.gmra.mxu0 %v2254
    %v2499 = vpop.f32.mrf.mxu0
    %v2500 = vadd.f32 0.0, %v2499
    %v2501 = vpop.f32.mrf.mxu0
    %v2502 = vadd.f32 0.0, %v2501
    %2503 = vmatmul.bf16.gmra.mxu0 %v2257
    %v2504 = vpop.f32.mrf.mxu0
    %v2505 = vadd.f32 0.0, %v2504
    %v2506 = vpop.f32.mrf.mxu0
    %v2507 = vadd.f32 0.0, %v2506
    %2508 = vmatmul.bf16.gmra.mxu0 %v2260
    %v2509 = vpop.f32.mrf.mxu0
    %v2510 = vadd.f32 0.0, %v2509
    %v2511 = vpop.f32.mrf.mxu0
    %v2512 = vadd.f32 0.0, %v2511
    %2513 = vmatmul.bf16.gmra.mxu0 %v2263
    %v2514 = vpop.f32.mrf.mxu0
    %v2515 = vadd.f32 0.0, %v2514
    %v2516 = vpop.f32.mrf.mxu0
    %v2517 = vadd.f32 0.0, %v2516
    %2518 = vmatmul.bf16.gmra.mxu0 %v2266
    %v2519 = vpop.f32.mrf.mxu0
    %v2520 = vadd.f32 0.0, %v2519
    %v2521 = vpop.f32.mrf.mxu0
    %v2522 = vadd.f32 0.0, %v2521
    %2523 = vmatmul.bf16.gmra.mxu0 %v2269
    %v2524 = vpop.f32.mrf.mxu0
    %v2525 = vadd.f32 0.0, %v2524
    %v2526 = vpop.f32.mrf.mxu0
    %v2527 = vadd.f32 0.0, %v2526
    %2528 = vmatmul.bf16.gmra.mxu0 %v2272
    %v2529 = vpop.f32.mrf.mxu0
    %v2530 = vadd.f32 0.0, %v2529
    %v2531 = vpop.f32.mrf.mxu0
    %v2532 = vadd.f32 0.0, %v2531
    %2533 = vmatmul.bf16.gmra.mxu0 %v2275
    %v2534 = vpop.f32.mrf.mxu0
    %v2535 = vadd.f32 0.0, %v2534
    %v2536 = vpop.f32.mrf.mxu0
    %v2537 = vadd.f32 0.0, %v2536
    %2538 = vmatmul.bf16.gmra.mxu0 %v2278
    %v2539 = vpop.f32.mrf.mxu0
    %v2540 = vadd.f32 0.0, %v2539
    %v2541 = vpop.f32.mrf.mxu0
    %v2542 = vadd.f32 0.0, %v2541
    %2543 = vmatmul.bf16.gmra.mxu0 %v2281
    %v2544 = vpop.f32.mrf.mxu0
    %v2545 = vadd.f32 0.0, %v2544
    %v2546 = vpop.f32.mrf.mxu0
    %v2547 = vadd.f32 0.0, %v2546
    %2548 = vmatmul.bf16.gmra.mxu0 %v2284
    %v2549 = vpop.f32.mrf.mxu0
    %v2550 = vadd.f32 0.0, %v2549
    %v2551 = vpop.f32.mrf.mxu0
    %v2552 = vadd.f32 0.0, %v2551
    %2553 = vmatmul.bf16.gmra.mxu0 %v2287
    %v2554 = vpop.f32.mrf.mxu0
    %v2555 = vadd.f32 0.0, %v2554
    %v2556 = vpop.f32.mrf.mxu0
    %v2557 = vadd.f32 0.0, %v2556
    %2558 = vmatmul.bf16.gmra.mxu0 %v2290
    %v2559 = vpop.f32.mrf.mxu0
    %v2560 = vadd.f32 0.0, %v2559
    %v2561 = vpop.f32.mrf.mxu0
    %v2562 = vadd.f32 0.0, %v2561
    %2563 = vmatmul.bf16.gmra.mxu0 %v2293
    %v2564 = vpop.f32.mrf.mxu0
    %v2565 = vadd.f32 0.0, %v2564
    %v2566 = vpop.f32.mrf.mxu0
    %v2567 = vadd.f32 0.0, %v2566
    %2568 = vmatmul.bf16.gmra.mxu0 %v2296
    %v2569 = vpop.f32.mrf.mxu0
    %v2570 = vadd.f32 0.0, %v2569
    %v2571 = vpop.f32.mrf.mxu0
    %v2572 = vadd.f32 0.0, %v2571
    %2573 = vmatmul.bf16.gmra.mxu0 %v2299
    %v2574 = vpop.f32.mrf.mxu0
    %v2575 = vadd.f32 0.0, %v2574
    %v2576 = vpop.f32.mrf.mxu0
    %v2577 = vadd.f32 0.0, %v2576
    %2578 = vmatmul.bf16.gmra.mxu0 %v2302
    %v2579 = vpop.f32.mrf.mxu0
    %v2580 = vadd.f32 0.0, %v2579
    %v2581 = vpop.f32.mrf.mxu0
    %v2582 = vadd.f32 0.0, %v2581
    %2583 = vmatmul.bf16.gmra.mxu0 %v2305
    %v2584 = vpop.f32.mrf.mxu0
    %v2585 = vadd.f32 0.0, %v2584
    %v2586 = vpop.f32.mrf.mxu0
    %v2587 = vadd.f32 0.0, %v2586
    %2588 = vmatmul.bf16.gmra.mxu0 %v2308
    %v2589 = vpop.f32.mrf.mxu0
    %v2590 = vadd.f32 0.0, %v2589
    %v2591 = vpop.f32.mrf.mxu0
    %v2592 = vadd.f32 0.0, %v2591
    %2593 = vmatmul.bf16.gmra.mxu0 %v2311
    %v2594 = vpop.f32.mrf.mxu0
    %v2595 = vadd.f32 0.0, %v2594
    %v2596 = vpop.f32.mrf.mxu0
    %v2597 = vadd.f32 0.0, %v2596
    %2598 = vmatmul.bf16.gmra.mxu0 %v2314
    %v2599 = vpop.f32.mrf.mxu0
    %v2600 = vadd.f32 0.0, %v2599
    %v2601 = vpop.f32.mrf.mxu0
    %v2602 = vadd.f32 0.0, %v2601
    %2603 = vmatmul.bf16.gmra.mxu0 %v2317
    %v2604 = vpop.f32.mrf.mxu0
    %v2605 = vadd.f32 0.0, %v2604
    %v2606 = vpop.f32.mrf.mxu0
    %v2607 = vadd.f32 0.0, %v2606
    %2608 = vmatmul.bf16.gmra.mxu0 %v2320
    %v2609 = vpop.f32.mrf.mxu0
    %v2610 = vadd.f32 0.0, %v2609
    %v2611 = vpop.f32.mrf.mxu0
    %v2612 = vadd.f32 0.0, %v2611
    %2613 = vmatmul.bf16.gmra.mxu0 %v2323
    %v2614 = vpop.f32.mrf.mxu0
    %v2615 = vadd.f32 0.0, %v2614
    %v2616 = vpop.f32.mrf.mxu0
    %v2617 = vadd.f32 0.0, %v2616
    %2618 = vmatmul.bf16.gmra.mxu0 %v2326
    %v2619 = vpop.f32.mrf.mxu0
    %v2620 = vadd.f32 0.0, %v2619
    %v2621 = vpop.f32.mrf.mxu0
    %v2622 = vadd.f32 0.0, %v2621
    %2623 = vmatmul.bf16.gmra.mxu0 %v2329
    %v2624 = vpop.f32.mrf.mxu0
    %v2625 = vadd.f32 0.0, %v2624
    %v2626 = vpop.f32.mrf.mxu0
    %v2627 = vadd.f32 0.0, %v2626
    %2628 = vdwg.mxu0
    %v2629 = vadd.f32 %v1913, %v2341
    %v2630 = vadd.f32 %v1914, %v2490
    %v2631 = vadd.f32 %v1915, %v2343
    %v2632 = vadd.f32 %v1916, %v2492
    %v2633 = vadd.f32 %v1917, %v2346
    %v2634 = vadd.f32 %v1918, %v2495
    %v2635 = vadd.f32 %v1919, %v2348
    %v2636 = vadd.f32 %v1920, %v2497
    %v2637 = vadd.f32 %v1921, %v2351
    %v2638 = vadd.f32 %v1922, %v2500
    %v2639 = vadd.f32 %v1923, %v2353
    %v2640 = vadd.f32 %v1924, %v2502
    %v2641 = vadd.f32 %v1925, %v2356
    %v2642 = vadd.f32 %v1926, %v2505
    %v2643 = vadd.f32 %v1927, %v2358
    %v2644 = vadd.f32 %v1928, %v2507
    %v2645 = vadd.f32 %v1929, %v2361
    %v2646 = vadd.f32 %v1930, %v2510
    %v2647 = vadd.f32 %v1931, %v2363
    %v2648 = vadd.f32 %v1932, %v2512
    %v2649 = vadd.f32 %v1933, %v2366
    %v2650 = vadd.f32 %v1934, %v2515
    %v2651 = vadd.f32 %v1935, %v2368
    %v2652 = vadd.f32 %v1936, %v2517
    %v2653 = vadd.f32 %v1937, %v2371
    %v2654 = vadd.f32 %v1938, %v2520
    %v2655 = vadd.f32 %v1939, %v2373
    %v2656 = vadd.f32 %v1940, %v2522
    %v2657 = vadd.f32 %v1941, %v2376
    %v2658 = vadd.f32 %v1942, %v2525
    %v2659 = vadd.f32 %v1943, %v2378
    %v2660 = vadd.f32 %v1944, %v2527
    %v2661 = vadd.f32 %v1945, %v2381
    %v2662 = vadd.f32 %v1946, %v2530
    %v2663 = vadd.f32 %v1947, %v2383
    %v2664 = vadd.f32 %v1948, %v2532
    %v2665 = vadd.f32 %v1949, %v2386
    %v2666 = vadd.f32 %v1950, %v2535
    %v2667 = vadd.f32 %v1951, %v2388
    %v2668 = vadd.f32 %v1952, %v2537
    %v2669 = vadd.f32 %v1953, %v2391
    %v2670 = vadd.f32 %v1954, %v2540
    %v2671 = vadd.f32 %v1955, %v2393
    %v2672 = vadd.f32 %v1956, %v2542
    %v2673 = vadd.f32 %v1957, %v2396
    %v2674 = vadd.f32 %v1958, %v2545
    %v2675 = vadd.f32 %v1959, %v2398
    %v2676 = vadd.f32 %v1960, %v2547
    %v2677 = vadd.f32 %v1961, %v2401
    %v2678 = vadd.f32 %v1962, %v2550
    %v2679 = vadd.f32 %v1963, %v2403
    %v2680 = vadd.f32 %v1964, %v2552
    %v2681 = vadd.f32 %v1965, %v2406
    %v2682 = vadd.f32 %v1966, %v2555
    %v2683 = vadd.f32 %v1967, %v2408
    %v2684 = vadd.f32 %v1968, %v2557
    %v2685 = vadd.f32 %v1969, %v2411
    %v2686 = vadd.f32 %v1970, %v2560
    %v2687 = vadd.f32 %v1971, %v2413
    %v2688 = vadd.f32 %v1972, %v2562
    %v2689 = vadd.f32 %v1973, %v2416
    %v2690 = vadd.f32 %v1974, %v2565
    %v2691 = vadd.f32 %v1975, %v2418
    %v2692 = vadd.f32 %v1976, %v2567
    %v2693 = vadd.f32 %v1977, %v2421
    %v2694 = vadd.f32 %v1978, %v2570
    %v2695 = vadd.f32 %v1979, %v2423
    %v2696 = vadd.f32 %v1980, %v2572
    %v2697 = vadd.f32 %v1981, %v2426
    %v2698 = vadd.f32 %v1982, %v2575
    %v2699 = vadd.f32 %v1983, %v2428
    %v2700 = vadd.f32 %v1984, %v2577
    %v2701 = vadd.f32 %v1985, %v2431
    %v2702 = vadd.f32 %v1986, %v2580
    %v2703 = vadd.f32 %v1987, %v2433
    %v2704 = vadd.f32 %v1988, %v2582
    %v2705 = vadd.f32 %v1989, %v2436
    %v2706 = vadd.f32 %v1990, %v2585
    %v2707 = vadd.f32 %v1991, %v2438
    %v2708 = vadd.f32 %v1992, %v2587
    %v2709 = vadd.f32 %v1993, %v2441
    %v2710 = vadd.f32 %v1994, %v2590
    %v2711 = vadd.f32 %v1995, %v2443
    %v2712 = vadd.f32 %v1996, %v2592
    %v2713 = vadd.f32 %v1997, %v2446
    %v2714 = vadd.f32 %v1998, %v2595
    %v2715 = vadd.f32 %v1999, %v2448
    %v2716 = vadd.f32 %v2000, %v2597
    %v2717 = vadd.f32 %v2001, %v2451
    %v2718 = vadd.f32 %v2002, %v2600
    %v2719 = vadd.f32 %v2003, %v2453
    %v2720 = vadd.f32 %v2004, %v2602
    %v2721 = vadd.f32 %v2005, %v2456
    %v2722 = vadd.f32 %v2006, %v2605
    %v2723 = vadd.f32 %v2007, %v2458
    %v2724 = vadd.f32 %v2008, %v2607
    %v2725 = vadd.f32 %v2009, %v2461
    %v2726 = vadd.f32 %v2010, %v2610
    %v2727 = vadd.f32 %v2011, %v2463
    %v2728 = vadd.f32 %v2012, %v2612
    %v2729 = vadd.f32 %v2013, %v2466
    %v2730 = vadd.f32 %v2014, %v2615
    %v2731 = vadd.f32 %v2015, %v2468
    %v2732 = vadd.f32 %v2016, %v2617
    %v2733 = vadd.f32 %v2017, %v2471
    %v2734 = vadd.f32 %v2018, %v2620
    %v2735 = vadd.f32 %v2019, %v2473
    %v2736 = vadd.f32 %v2020, %v2622
    %v2737 = vadd.f32 %v2021, %v2476
    %v2738 = vadd.f32 %v2022, %v2625
    %v2739 = vadd.f32 %v2023, %v2478
    %v2740 = vadd.f32 %v2024, %v2627
    %s2741 = scalar_lea.vmem %s0, 32
    %v2742 = vld [vmem:[%s2741] sm:$0xf]
    %v2743 = vld [vmem:[%s2741 + $0x4] sm:$0xf]
    %v2744 = vld [vmem:[%s2741 + $0x8] sm:$0xf]
    %v2745 = vld [vmem:[%s2741 + $0xc] sm:$0xf]
    %v2746 = vld [vmem:[%s2741 + $0x10] sm:$0xf]
    %v2747 = vld [vmem:[%s2741 + $0x14] sm:$0xf]
    %v2748 = vld [vmem:[%s2741 + $0x18] sm:$0xf]
    %v2749 = vld [vmem:[%s2741 + $0x1c] sm:$0xf]
    %v2750 = vld [vmem:[%s2741 + $0x20] sm:$0xf]
    %v2751 = vld [vmem:[%s2741 + $0x24] sm:$0xf]
    %v2752 = vld [vmem:[%s2741 + $0x28] sm:$0xf]
    %v2753 = vld [vmem:[%s2741 + $0x2c] sm:$0xf]
    %v2754 = vld [vmem:[%s2741 + $0x30] sm:$0xf]
    %v2755 = vld [vmem:[%s2741 + $0x34] sm:$0xf]
    %v2756 = vld [vmem:[%s2741 + $0x38] sm:$0xf]
    %v2757 = vld [vmem:[%s2741 + $0x3c] sm:$0xf]
    %v2758 = vld [vmem:[%s2741 + $0x40] sm:$0xf]
    %v2759 = vld [vmem:[%s2741 + $0x44] sm:$0xf]
    %v2760 = vld [vmem:[%s2741 + $0x48] sm:$0xf]
    %v2761 = vld [vmem:[%s2741 + $0x4c] sm:$0xf]
    %v2762 = vld [vmem:[%s2741 + $0x50] sm:$0xf]
    %v2763 = vld [vmem:[%s2741 + $0x54] sm:$0xf]
    %v2764 = vld [vmem:[%s2741 + $0x58] sm:$0xf]
    %v2765 = vld [vmem:[%s2741 + $0x5c] sm:$0xf]
    %v2766 = vld [vmem:[%s2741 + $0x60] sm:$0xf]
    %v2767 = vld [vmem:[%s2741 + $0x64] sm:$0xf]
    %v2768 = vld [vmem:[%s2741 + $0x68] sm:$0xf]
    %v2769 = vld [vmem:[%s2741 + $0x6c] sm:$0xf]
    %v2770 = vld [vmem:[%s2741 + $0x70] sm:$0xf]
    %v2771 = vld [vmem:[%s2741 + $0x74] sm:$0xf]
    %v2772 = vld [vmem:[%s2741 + $0x78] sm:$0xf]
    %v2773 = vld [vmem:[%s2741 + $0x7c] sm:$0xf]
    %v2774 = vld [vmem:[%s2741 + $0x80] sm:$0xf]
    %v2775 = vld [vmem:[%s2741 + $0x84] sm:$0xf]
    %v2776 = vld [vmem:[%s2741 + $0x88] sm:$0xf]
    %v2777 = vld [vmem:[%s2741 + $0x8c] sm:$0xf]
    %v2778 = vld [vmem:[%s2741 + $0x90] sm:$0xf]
    %v2779 = vld [vmem:[%s2741 + $0x94] sm:$0xf]
    %v2780 = vld [vmem:[%s2741 + $0x98] sm:$0xf]
    %v2781 = vld [vmem:[%s2741 + $0x9c] sm:$0xf]
    %v2782 = vld [vmem:[%s2741 + $0xa0] sm:$0xf]
    %v2783 = vld [vmem:[%s2741 + $0xa4] sm:$0xf]
    %v2784 = vld [vmem:[%s2741 + $0xa8] sm:$0xf]
    %v2785 = vld [vmem:[%s2741 + $0xac] sm:$0xf]
    %v2786 = vld [vmem:[%s2741 + $0xb0] sm:$0xf]
    %v2787 = vld [vmem:[%s2741 + $0xb4] sm:$0xf]
    %v2788 = vld [vmem:[%s2741 + $0xb8] sm:$0xf]
    %v2789 = vld [vmem:[%s2741 + $0xbc] sm:$0xf]
    %v2790 = vld [vmem:[%s2741 + $0xc0] sm:$0xf]
    %v2791 = vld [vmem:[%s2741 + $0xc4] sm:$0xf]
    %v2792 = vld [vmem:[%s2741 + $0xc8] sm:$0xf]
    %v2793 = vld [vmem:[%s2741 + $0xcc] sm:$0xf]
    %v2794 = vld [vmem:[%s2741 + $0xd0] sm:$0xf]
    %v2795 = vld [vmem:[%s2741 + $0xd4] sm:$0xf]
    %v2796 = vld [vmem:[%s2741 + $0xd8] sm:$0xf]
    %v2797 = vld [vmem:[%s2741 + $0xdc] sm:$0xf]
    %s2798 = scalar_lea.vmem [#allocation2], 128
    %v2799 = vld [vmem:[%s2798] sm:$0xff]
    %v2800 = vld [vmem:[%s2798 + $0x8] sm:$0xff]
    %v2801 = vld [vmem:[%s2798 + $0x10] sm:$0xff]
    %v2802 = vld [vmem:[%s2798 + $0x18] sm:$0xff]
    %v2859 = vunpack.c.l.b16 %v2742
    %v2860 = vunpack.c.l.b16 %v2743
    %v2861 = vunpack.c.l.b16 %v2744
    %v2862 = vunpack.c.l.b16 %v2745
    %v2863 = vunpack.c.l.b16 %v2746
    %v2864 = vunpack.c.l.b16 %v2747
    %v2865 = vunpack.c.l.b16 %v2748
    %v2866 = vunpack.c.l.b16 %v2749
    %v2867 = vunpack.c.l.b16 %v2750
    %v2868 = vunpack.c.l.b16 %v2751
    %v2869 = vunpack.c.l.b16 %v2752
    %v2870 = vunpack.c.l.b16 %v2753
    %v2871 = vunpack.c.l.b16 %v2754
    %v2872 = vunpack.c.l.b16 %v2755
    %v2873 = vunpack.c.l.b16 %v2756
    %v2874 = vunpack.c.l.b16 %v2757
    %v2875 = vunpack.c.l.b16 %v2758
    %v2876 = vunpack.c.l.b16 %v2759
    %v2877 = vunpack.c.l.b16 %v2760
    %v2878 = vunpack.c.l.b16 %v2761
    %v2879 = vunpack.c.l.b16 %v2762
    %v2880 = vunpack.c.l.b16 %v2763
    %v2881 = vunpack.c.l.b16 %v2764
    %v2882 = vunpack.c.l.b16 %v2765
    %v2883 = vunpack.c.l.b16 %v2766
    %v2884 = vunpack.c.l.b16 %v2767
    %v2885 = vunpack.c.l.b16 %v2768
    %v2886 = vunpack.c.l.b16 %v2769
    %v2887 = vunpack.c.l.b16 %v2770
    %v2888 = vunpack.c.l.b16 %v2771
    %v2889 = vunpack.c.l.b16 %v2772
    %v2890 = vunpack.c.l.b16 %v2773
    %v2891 = vunpack.c.l.b16 %v2774
    %v2892 = vunpack.c.l.b16 %v2775
    %v2893 = vunpack.c.l.b16 %v2776
    %v2894 = vunpack.c.l.b16 %v2777
    %v2895 = vunpack.c.l.b16 %v2778
    %v2896 = vunpack.c.l.b16 %v2779
    %v2897 = vunpack.c.l.b16 %v2780
    %v2898 = vunpack.c.l.b16 %v2781
    %v2899 = vunpack.c.l.b16 %v2782
    %v2900 = vunpack.c.l.b16 %v2783
    %v2901 = vunpack.c.l.b16 %v2784
    %v2902 = vunpack.c.l.b16 %v2785
    %v2903 = vunpack.c.l.b16 %v2786
    %v2904 = vunpack.c.l.b16 %v2787
    %v2905 = vunpack.c.l.b16 %v2788
    %v2906 = vunpack.c.l.b16 %v2789
    %v2907 = vunpack.c.l.b16 %v2790
    %v2908 = vunpack.c.l.b16 %v2791
    %v2909 = vunpack.c.l.b16 %v2792
    %v2910 = vunpack.c.l.b16 %v2793
    %v2911 = vunpack.c.l.b16 %v2794
    %v2912 = vunpack.c.l.b16 %v2795
    %v2913 = vunpack.c.l.b16 %v2796
    %v2914 = vunpack.c.l.b16 %v2797
    %v2915 = vpack.c.b16 %v2860, %v2859
    %v2916 = vpack.c.b16 %v2862, %v2861
    %v2917 = vpack.c.b16 %v2864, %v2863
    %v2918 = vpack.c.b16 %v2866, %v2865
    %v2919 = vpack.c.b16 %v2868, %v2867
    %v2920 = vpack.c.b16 %v2870, %v2869
    %v2921 = vpack.c.b16 %v2872, %v2871
    %v2922 = vpack.c.b16 %v2874, %v2873
    %v2923 = vpack.c.b16 %v2876, %v2875
    %v2924 = vpack.c.b16 %v2878, %v2877
    %v2925 = vpack.c.b16 %v2880, %v2879
    %v2926 = vpack.c.b16 %v2882, %v2881
    %v2927 = vpack.c.b16 %v2884, %v2883
    %v2928 = vpack.c.b16 %v2886, %v2885
    %v2929 = vpack.c.b16 %v2888, %v2887
    %v2930 = vpack.c.b16 %v2890, %v2889
    %v2931 = vpack.c.b16 %v2892, %v2891
    %v2932 = vpack.c.b16 %v2894, %v2893
    %v2933 = vpack.c.b16 %v2896, %v2895
    %v2934 = vpack.c.b16 %v2898, %v2897
    %v2935 = vpack.c.b16 %v2900, %v2899
    %v2936 = vpack.c.b16 %v2902, %v2901
    %v2937 = vpack.c.b16 %v2904, %v2903
    %v2938 = vpack.c.b16 %v2906, %v2905
    %v2939 = vpack.c.b16 %v2908, %v2907
    %v2940 = vpack.c.b16 %v2910, %v2909
    %v2941 = vpack.c.b16 %v2912, %v2911
    %v2942 = vpack.c.b16 %v2914, %v2913
    %v2947 = vunpack.c.l.b16 %v2799
    %v2948 = vunpack.c.h.b16 %v2799
    %v2949 = vunpack.c.l.b16 %v2800
    %v2950 = vunpack.c.h.b16 %v2800
    %v2951 = vunpack.c.l.b16 %v2801
    %v2952 = vunpack.c.h.b16 %v2801
    %v2953 = vunpack.c.l.b16 %v2802
    %v2954 = vunpack.c.h.b16 %v2802
    %v2955 = vpack.c.b16 %v2949, %v2947
    %v2956 = vpack.c.b16 %v2950, %v2948
    %v2957 = vpack.c.b16 %v2953, %v2951
    %v2958 = vpack.c.b16 %v2954, %v2952
    %v2964 = vsel %vm384, %v2915, 0
    %v2967 = vsel %vm384, %v2916, 0
    %v2970 = vsel %vm384, %v2917, 0
    %v2973 = vsel %vm384, %v2918, 0
    %v2976 = vsel %vm384, %v2919, 0
    %v2979 = vsel %vm384, %v2920, 0
    %v2982 = vsel %vm384, %v2921, 0
    %v2985 = vsel %vm384, %v2922, 0
    %v2988 = vsel %vm384, %v2923, 0
    %v2991 = vsel %vm384, %v2924, 0
    %v2994 = vsel %vm384, %v2925, 0
    %v2997 = vsel %vm384, %v2926, 0
    %v3000 = vsel %vm384, %v2927, 0
    %v3003 = vsel %vm384, %v2928, 0
    %v3006 = vsel %vm384, %v2929, 0
    %v3009 = vsel %vm384, %v2930, 0
    %v3012 = vsel %vm384, %v2931, 0
    %v3015 = vsel %vm384, %v2932, 0
    %v3018 = vsel %vm384, %v2933, 0
    %v3021 = vsel %vm384, %v2934, 0
    %v3024 = vsel %vm384, %v2935, 0
    %v3027 = vsel %vm384, %v2936, 0
    %v3030 = vsel %vm384, %v2937, 0
    %v3033 = vsel %vm384, %v2938, 0
    %v3036 = vsel %vm384, %v2939, 0
    %v3039 = vsel %vm384, %v2940, 0
    %v3042 = vsel %vm384, %v2941, 0
    %v3045 = vsel %vm384, %v2942, 0
    %3047 = vmatpush.bf16.msra.mxu0 0
    %3048 = vmatpush.bf16.msra.mxu0 0
    %3049 = vmatpush.bf16.msra.mxu0 0
    %3050 = vmatpush.bf16.msra.mxu0 0
    %3051 = vmatpush.bf16.msra.mxu0 0
    %3052 = vmatpush.bf16.msra.mxu0 0
    %3053 = vmatpush.bf16.msra.mxu0 %v2957
    %3054 = vmatpush.bf16.msra.mxu0 %v2955
    %3055 = vmatmul.bf16.gmra.mxu0 %v2964
    %v3056 = vpop.f32.mrf.mxu0
    %v3057 = vadd.f32 0.0, %v3056
    %v3058 = vpop.f32.mrf.mxu0
    %v3059 = vadd.f32 0.0, %v3058
    %3060 = vmatmul.bf16.gmra.mxu0 %v2967
    %v3061 = vpop.f32.mrf.mxu0
    %v3062 = vadd.f32 0.0, %v3061
    %v3063 = vpop.f32.mrf.mxu0
    %v3064 = vadd.f32 0.0, %v3063
    %3065 = vmatmul.bf16.gmra.mxu0 %v2970
    %v3066 = vpop.f32.mrf.mxu0
    %v3067 = vadd.f32 0.0, %v3066
    %v3068 = vpop.f32.mrf.mxu0
    %v3069 = vadd.f32 0.0, %v3068
    %3070 = vmatmul.bf16.gmra.mxu0 %v2973
    %v3071 = vpop.f32.mrf.mxu0
    %v3072 = vadd.f32 0.0, %v3071
    %v3073 = vpop.f32.mrf.mxu0
    %v3074 = vadd.f32 0.0, %v3073
    %3075 = vmatmul.bf16.gmra.mxu0 %v2976
    %v3076 = vpop.f32.mrf.mxu0
    %v3077 = vadd.f32 0.0, %v3076
    %v3078 = vpop.f32.mrf.mxu0
    %v3079 = vadd.f32 0.0, %v3078
    %3080 = vmatmul.bf16.gmra.mxu0 %v2979
    %v3081 = vpop.f32.mrf.mxu0
    %v3082 = vadd.f32 0.0, %v3081
    %v3083 = vpop.f32.mrf.mxu0
    %v3084 = vadd.f32 0.0, %v3083
    %3085 = vmatmul.bf16.gmra.mxu0 %v2982
    %v3086 = vpop.f32.mrf.mxu0
    %v3087 = vadd.f32 0.0, %v3086
    %v3088 = vpop.f32.mrf.mxu0
    %v3089 = vadd.f32 0.0, %v3088
    %3090 = vmatmul.bf16.gmra.mxu0 %v2985
    %v3091 = vpop.f32.mrf.mxu0
    %v3092 = vadd.f32 0.0, %v3091
    %v3093 = vpop.f32.mrf.mxu0
    %v3094 = vadd.f32 0.0, %v3093
    %3095 = vmatmul.bf16.gmra.mxu0 %v2988
    %v3096 = vpop.f32.mrf.mxu0
    %v3097 = vadd.f32 0.0, %v3096
    %v3098 = vpop.f32.mrf.mxu0
    %v3099 = vadd.f32 0.0, %v3098
    %3100 = vmatmul.bf16.gmra.mxu0 %v2991
    %v3101 = vpop.f32.mrf.mxu0
    %v3102 = vadd.f32 0.0, %v3101
    %v3103 = vpop.f32.mrf.mxu0
    %v3104 = vadd.f32 0.0, %v3103
    %3105 = vmatmul.bf16.gmra.mxu0 %v2994
    %v3106 = vpop.f32.mrf.mxu0
    %v3107 = vadd.f32 0.0, %v3106
    %v3108 = vpop.f32.mrf.mxu0
    %v3109 = vadd.f32 0.0, %v3108
    %3110 = vmatmul.bf16.gmra.mxu0 %v2997
    %v3111 = vpop.f32.mrf.mxu0
    %v3112 = vadd.f32 0.0, %v3111
    %v3113 = vpop.f32.mrf.mxu0
    %v3114 = vadd.f32 0.0, %v3113
    %3115 = vmatmul.bf16.gmra.mxu0 %v3000
    %v3116 = vpop.f32.mrf.mxu0
    %v3117 = vadd.f32 0.0, %v3116
    %v3118 = vpop.f32.mrf.mxu0
    %v3119 = vadd.f32 0.0, %v3118
    %3120 = vmatmul.bf16.gmra.mxu0 %v3003
    %v3121 = vpop.f32.mrf.mxu0
    %v3122 = vadd.f32 0.0, %v3121
    %v3123 = vpop.f32.mrf.mxu0
    %v3124 = vadd.f32 0.0, %v3123
    %3125 = vmatmul.bf16.gmra.mxu0 %v3006
    %v3126 = vpop.f32.mrf.mxu0
    %v3127 = vadd.f32 0.0, %v3126
    %v3128 = vpop.f32.mrf.mxu0
    %v3129 = vadd.f32 0.0, %v3128
    %3130 = vmatmul.bf16.gmra.mxu0 %v3009
    %v3131 = vpop.f32.mrf.mxu0
    %v3132 = vadd.f32 0.0, %v3131
    %v3133 = vpop.f32.mrf.mxu0
    %v3134 = vadd.f32 0.0, %v3133
    %3135 = vmatmul.bf16.gmra.mxu0 %v3012
    %v3136 = vpop.f32.mrf.mxu0
    %v3137 = vadd.f32 0.0, %v3136
    %v3138 = vpop.f32.mrf.mxu0
    %v3139 = vadd.f32 0.0, %v3138
    %3140 = vmatmul.bf16.gmra.mxu0 %v3015
    %v3141 = vpop.f32.mrf.mxu0
    %v3142 = vadd.f32 0.0, %v3141
    %v3143 = vpop.f32.mrf.mxu0
    %v3144 = vadd.f32 0.0, %v3143
    %3145 = vmatmul.bf16.gmra.mxu0 %v3018
    %v3146 = vpop.f32.mrf.mxu0
    %v3147 = vadd.f32 0.0, %v3146
    %v3148 = vpop.f32.mrf.mxu0
    %v3149 = vadd.f32 0.0, %v3148
    %3150 = vmatmul.bf16.gmra.mxu0 %v3021
    %v3151 = vpop.f32.mrf.mxu0
    %v3152 = vadd.f32 0.0, %v3151
    %v3153 = vpop.f32.mrf.mxu0
    %v3154 = vadd.f32 0.0, %v3153
    %3155 = vmatmul.bf16.gmra.mxu0 %v3024
    %v3156 = vpop.f32.mrf.mxu0
    %v3157 = vadd.f32 0.0, %v3156
    %v3158 = vpop.f32.mrf.mxu0
    %v3159 = vadd.f32 0.0, %v3158
    %3160 = vmatmul.bf16.gmra.mxu0 %v3027
    %v3161 = vpop.f32.mrf.mxu0
    %v3162 = vadd.f32 0.0, %v3161
    %v3163 = vpop.f32.mrf.mxu0
    %v3164 = vadd.f32 0.0, %v3163
    %3165 = vmatmul.bf16.gmra.mxu0 %v3030
    %v3166 = vpop.f32.mrf.mxu0
    %v3167 = vadd.f32 0.0, %v3166
    %v3168 = vpop.f32.mrf.mxu0
    %v3169 = vadd.f32 0.0, %v3168
    %3170 = vmatmul.bf16.gmra.mxu0 %v3033
    %v3171 = vpop.f32.mrf.mxu0
    %v3172 = vadd.f32 0.0, %v3171
    %v3173 = vpop.f32.mrf.mxu0
    %v3174 = vadd.f32 0.0, %v3173
    %3175 = vmatmul.bf16.gmra.mxu0 %v3036
    %v3176 = vpop.f32.mrf.mxu0
    %v3177 = vadd.f32 0.0, %v3176
    %v3178 = vpop.f32.mrf.mxu0
    %v3179 = vadd.f32 0.0, %v3178
    %3180 = vmatmul.bf16.gmra.mxu0 %v3039
    %v3181 = vpop.f32.mrf.mxu0
    %v3182 = vadd.f32 0.0, %v3181
    %v3183 = vpop.f32.mrf.mxu0
    %v3184 = vadd.f32 0.0, %v3183
    %3185 = vmatmul.bf16.gmra.mxu0 %v3042
    %v3186 = vpop.f32.mrf.mxu0
    %v3187 = vadd.f32 0.0, %v3186
    %v3188 = vpop.f32.mrf.mxu0
    %v3189 = vadd.f32 0.0, %v3188
    %3190 = vmatmul.bf16.gmra.mxu0 %v3045
    %v3191 = vpop.f32.mrf.mxu0
    %v3192 = vadd.f32 0.0, %v3191
    %v3193 = vpop.f32.mrf.mxu0
    %v3194 = vadd.f32 0.0, %v3193
    %3195 = vdwg.mxu0
    %3196 = vmatpush.bf16.msra.mxu0 0
    %3197 = vmatpush.bf16.msra.mxu0 0
    %3198 = vmatpush.bf16.msra.mxu0 0
    %3199 = vmatpush.bf16.msra.mxu0 0
    %3200 = vmatpush.bf16.msra.mxu0 0
    %3201 = vmatpush.bf16.msra.mxu0 0
    %3202 = vmatpush.bf16.msra.mxu0 %v2958
    %3203 = vmatpush.bf16.msra.mxu0 %v2956
    %3204 = vmatmul.bf16.gmra.mxu0 %v2964
    %v3205 = vpop.f32.mrf.mxu0
    %v3206 = vadd.f32 0.0, %v3205
    %v3207 = vpop.f32.mrf.mxu0
    %v3208 = vadd.f32 0.0, %v3207
    %3209 = vmatmul.bf16.gmra.mxu0 %v2967
    %v3210 = vpop.f32.mrf.mxu0
    %v3211 = vadd.f32 0.0, %v3210
    %v3212 = vpop.f32.mrf.mxu0
    %v3213 = vadd.f32 0.0, %v3212
    %3214 = vmatmul.bf16.gmra.mxu0 %v2970
    %v3215 = vpop.f32.mrf.mxu0
    %v3216 = vadd.f32 0.0, %v3215
    %v3217 = vpop.f32.mrf.mxu0
    %v3218 = vadd.f32 0.0, %v3217
    %3219 = vmatmul.bf16.gmra.mxu0 %v2973
    %v3220 = vpop.f32.mrf.mxu0
    %v3221 = vadd.f32 0.0, %v3220
    %v3222 = vpop.f32.mrf.mxu0
    %v3223 = vadd.f32 0.0, %v3222
    %3224 = vmatmul.bf16.gmra.mxu0 %v2976
    %v3225 = vpop.f32.mrf.mxu0
    %v3226 = vadd.f32 0.0, %v3225
    %v3227 = vpop.f32.mrf.mxu0
    %v3228 = vadd.f32 0.0, %v3227
    %3229 = vmatmul.bf16.gmra.mxu0 %v2979
    %v3230 = vpop.f32.mrf.mxu0
    %v3231 = vadd.f32 0.0, %v3230
    %v3232 = vpop.f32.mrf.mxu0
    %v3233 = vadd.f32 0.0, %v3232
    %3234 = vmatmul.bf16.gmra.mxu0 %v2982
    %v3235 = vpop.f32.mrf.mxu0
    %v3236 = vadd.f32 0.0, %v3235
    %v3237 = vpop.f32.mrf.mxu0
    %v3238 = vadd.f32 0.0, %v3237
    %3239 = vmatmul.bf16.gmra.mxu0 %v2985
    %v3240 = vpop.f32.mrf.mxu0
    %v3241 = vadd.f32 0.0, %v3240
    %v3242 = vpop.f32.mrf.mxu0
    %v3243 = vadd.f32 0.0, %v3242
    %3244 = vmatmul.bf16.gmra.mxu0 %v2988
    %v3245 = vpop.f32.mrf.mxu0
    %v3246 = vadd.f32 0.0, %v3245
    %v3247 = vpop.f32.mrf.mxu0
    %v3248 = vadd.f32 0.0, %v3247
    %3249 = vmatmul.bf16.gmra.mxu0 %v2991
    %v3250 = vpop.f32.mrf.mxu0
    %v3251 = vadd.f32 0.0, %v3250
    %v3252 = vpop.f32.mrf.mxu0
    %v3253 = vadd.f32 0.0, %v3252
    %3254 = vmatmul.bf16.gmra.mxu0 %v2994
    %v3255 = vpop.f32.mrf.mxu0
    %v3256 = vadd.f32 0.0, %v3255
    %v3257 = vpop.f32.mrf.mxu0
    %v3258 = vadd.f32 0.0, %v3257
    %3259 = vmatmul.bf16.gmra.mxu0 %v2997
    %v3260 = vpop.f32.mrf.mxu0
    %v3261 = vadd.f32 0.0, %v3260
    %v3262 = vpop.f32.mrf.mxu0
    %v3263 = vadd.f32 0.0, %v3262
    %3264 = vmatmul.bf16.gmra.mxu0 %v3000
    %v3265 = vpop.f32.mrf.mxu0
    %v3266 = vadd.f32 0.0, %v3265
    %v3267 = vpop.f32.mrf.mxu0
    %v3268 = vadd.f32 0.0, %v3267
    %3269 = vmatmul.bf16.gmra.mxu0 %v3003
    %v3270 = vpop.f32.mrf.mxu0
    %v3271 = vadd.f32 0.0, %v3270
    %v3272 = vpop.f32.mrf.mxu0
    %v3273 = vadd.f32 0.0, %v3272
    %3274 = vmatmul.bf16.gmra.mxu0 %v3006
    %v3275 = vpop.f32.mrf.mxu0
    %v3276 = vadd.f32 0.0, %v3275
    %v3277 = vpop.f32.mrf.mxu0
    %v3278 = vadd.f32 0.0, %v3277
    %3279 = vmatmul.bf16.gmra.mxu0 %v3009
    %v3280 = vpop.f32.mrf.mxu0
    %v3281 = vadd.f32 0.0, %v3280
    %v3282 = vpop.f32.mrf.mxu0
    %v3283 = vadd.f32 0.0, %v3282
    %3284 = vmatmul.bf16.gmra.mxu0 %v3012
    %v3285 = vpop.f32.mrf.mxu0
    %v3286 = vadd.f32 0.0, %v3285
    %v3287 = vpop.f32.mrf.mxu0
    %v3288 = vadd.f32 0.0, %v3287
    %3289 = vmatmul.bf16.gmra.mxu0 %v3015
    %v3290 = vpop.f32.mrf.mxu0
    %v3291 = vadd.f32 0.0, %v3290
    %v3292 = vpop.f32.mrf.mxu0
    %v3293 = vadd.f32 0.0, %v3292
    %3294 = vmatmul.bf16.gmra.mxu0 %v3018
    %v3295 = vpop.f32.mrf.mxu0
    %v3296 = vadd.f32 0.0, %v3295
    %v3297 = vpop.f32.mrf.mxu0
    %v3298 = vadd.f32 0.0, %v3297
    %3299 = vmatmul.bf16.gmra.mxu0 %v3021
    %v3300 = vpop.f32.mrf.mxu0
    %v3301 = vadd.f32 0.0, %v3300
    %v3302 = vpop.f32.mrf.mxu0
    %v3303 = vadd.f32 0.0, %v3302
    %3304 = vmatmul.bf16.gmra.mxu0 %v3024
    %v3305 = vpop.f32.mrf.mxu0
    %v3306 = vadd.f32 0.0, %v3305
    %v3307 = vpop.f32.mrf.mxu0
    %v3308 = vadd.f32 0.0, %v3307
    %3309 = vmatmul.bf16.gmra.mxu0 %v3027
    %v3310 = vpop.f32.mrf.mxu0
    %v3311 = vadd.f32 0.0, %v3310
    %v3312 = vpop.f32.mrf.mxu0
    %v3313 = vadd.f32 0.0, %v3312
    %3314 = vmatmul.bf16.gmra.mxu0 %v3030
    %v3315 = vpop.f32.mrf.mxu0
    %v3316 = vadd.f32 0.0, %v3315
    %v3317 = vpop.f32.mrf.mxu0
    %v3318 = vadd.f32 0.0, %v3317
    %3319 = vmatmul.bf16.gmra.mxu0 %v3033
    %v3320 = vpop.f32.mrf.mxu0
    %v3321 = vadd.f32 0.0, %v3320
    %v3322 = vpop.f32.mrf.mxu0
    %v3323 = vadd.f32 0.0, %v3322
    %3324 = vmatmul.bf16.gmra.mxu0 %v3036
    %v3325 = vpop.f32.mrf.mxu0
    %v3326 = vadd.f32 0.0, %v3325
    %v3327 = vpop.f32.mrf.mxu0
    %v3328 = vadd.f32 0.0, %v3327
    %3329 = vmatmul.bf16.gmra.mxu0 %v3039
    %v3330 = vpop.f32.mrf.mxu0
    %v3331 = vadd.f32 0.0, %v3330
    %v3332 = vpop.f32.mrf.mxu0
    %v3333 = vadd.f32 0.0, %v3332
    %3334 = vmatmul.bf16.gmra.mxu0 %v3042
    %v3335 = vpop.f32.mrf.mxu0
    %v3336 = vadd.f32 0.0, %v3335
    %v3337 = vpop.f32.mrf.mxu0
    %v3338 = vadd.f32 0.0, %v3337
    %3339 = vmatmul.bf16.gmra.mxu0 %v3045
    %v3340 = vpop.f32.mrf.mxu0
    %v3341 = vadd.f32 0.0, %v3340
    %v3342 = vpop.f32.mrf.mxu0
    %v3343 = vadd.f32 0.0, %v3342
    %3344 = vdwg.mxu0
    %v3345 = vadd.f32 %v2629, %v3057
    %v3346 = vadd.f32 %v2630, %v3206
    %v3347 = vadd.f32 %v2631, %v3059
    %v3348 = vadd.f32 %v2632, %v3208
    %v3349 = vadd.f32 %v2633, %v3062
    %v3350 = vadd.f32 %v2634, %v3211
    %v3351 = vadd.f32 %v2635, %v3064
    %v3352 = vadd.f32 %v2636, %v3213
    %v3353 = vadd.f32 %v2637, %v3067
    %v3354 = vadd.f32 %v2638, %v3216
    %v3355 = vadd.f32 %v2639, %v3069
    %v3356 = vadd.f32 %v2640, %v3218
    %v3357 = vadd.f32 %v2641, %v3072
    %v3358 = vadd.f32 %v2642, %v3221
    %v3359 = vadd.f32 %v2643, %v3074
    %v3360 = vadd.f32 %v2644, %v3223
    %v3361 = vadd.f32 %v2645, %v3077
    %v3362 = vadd.f32 %v2646, %v3226
    %v3363 = vadd.f32 %v2647, %v3079
    %v3364 = vadd.f32 %v2648, %v3228
    %v3365 = vadd.f32 %v2649, %v3082
    %v3366 = vadd.f32 %v2650, %v3231
    %v3367 = vadd.f32 %v2651, %v3084
    %v3368 = vadd.f32 %v2652, %v3233
    %v3369 = vadd.f32 %v2653, %v3087
    %v3370 = vadd.f32 %v2654, %v3236
    %v3371 = vadd.f32 %v2655, %v3089
    %v3372 = vadd.f32 %v2656, %v3238
    %v3373 = vadd.f32 %v2657, %v3092
    %v3374 = vadd.f32 %v2658, %v3241
    %v3375 = vadd.f32 %v2659, %v3094
    %v3376 = vadd.f32 %v2660, %v3243
    %v3377 = vadd.f32 %v2661, %v3097
    %v3378 = vadd.f32 %v2662, %v3246
    %v3379 = vadd.f32 %v2663, %v3099
    %v3380 = vadd.f32 %v2664, %v3248
    %v3381 = vadd.f32 %v2665, %v3102
    %v3382 = vadd.f32 %v2666, %v3251
    %v3383 = vadd.f32 %v2667, %v3104
    %v3384 = vadd.f32 %v2668, %v3253
    %v3385 = vadd.f32 %v2669, %v3107
    %v3386 = vadd.f32 %v2670, %v3256
    %v3387 = vadd.f32 %v2671, %v3109
    %v3388 = vadd.f32 %v2672, %v3258
    %v3389 = vadd.f32 %v2673, %v3112
    %v3390 = vadd.f32 %v2674, %v3261
    %v3391 = vadd.f32 %v2675, %v3114
    %v3392 = vadd.f32 %v2676, %v3263
    %v3393 = vadd.f32 %v2677, %v3117
    %v3394 = vadd.f32 %v2678, %v3266
    %v3395 = vadd.f32 %v2679, %v3119
    %v3396 = vadd.f32 %v2680, %v3268
    %v3397 = vadd.f32 %v2681, %v3122
    %v3398 = vadd.f32 %v2682, %v3271
    %v3399 = vadd.f32 %v2683, %v3124
    %v3400 = vadd.f32 %v2684, %v3273
    %v3401 = vadd.f32 %v2685, %v3127
    %v3402 = vadd.f32 %v2686, %v3276
    %v3403 = vadd.f32 %v2687, %v3129
    %v3404 = vadd.f32 %v2688, %v3278
    %v3405 = vadd.f32 %v2689, %v3132
    %v3406 = vadd.f32 %v2690, %v3281
    %v3407 = vadd.f32 %v2691, %v3134
    %v3408 = vadd.f32 %v2692, %v3283
    %v3409 = vadd.f32 %v2693, %v3137
    %v3410 = vadd.f32 %v2694, %v3286
    %v3411 = vadd.f32 %v2695, %v3139
    %v3412 = vadd.f32 %v2696, %v3288
    %v3413 = vadd.f32 %v2697, %v3142
    %v3414 = vadd.f32 %v2698, %v3291
    %v3415 = vadd.f32 %v2699, %v3144
    %v3416 = vadd.f32 %v2700, %v3293
    %v3417 = vadd.f32 %v2701, %v3147
    %v3418 = vadd.f32 %v2702, %v3296
    %v3419 = vadd.f32 %v2703, %v3149
    %v3420 = vadd.f32 %v2704, %v3298
    %v3421 = vadd.f32 %v2705, %v3152
    %v3422 = vadd.f32 %v2706, %v3301
    %v3423 = vadd.f32 %v2707, %v3154
    %v3424 = vadd.f32 %v2708, %v3303
    %v3425 = vadd.f32 %v2709, %v3157
    %v3426 = vadd.f32 %v2710, %v3306
    %v3427 = vadd.f32 %v2711, %v3159
    %v3428 = vadd.f32 %v2712, %v3308
    %v3429 = vadd.f32 %v2713, %v3162
    %v3430 = vadd.f32 %v2714, %v3311
    %v3431 = vadd.f32 %v2715, %v3164
    %v3432 = vadd.f32 %v2716, %v3313
    %v3433 = vadd.f32 %v2717, %v3167
    %v3434 = vadd.f32 %v2718, %v3316
    %v3435 = vadd.f32 %v2719, %v3169
    %v3436 = vadd.f32 %v2720, %v3318
    %v3437 = vadd.f32 %v2721, %v3172
    %v3438 = vadd.f32 %v2722, %v3321
    %v3439 = vadd.f32 %v2723, %v3174
    %v3440 = vadd.f32 %v2724, %v3323
    %v3441 = vadd.f32 %v2725, %v3177
    %v3442 = vadd.f32 %v2726, %v3326
    %v3443 = vadd.f32 %v2727, %v3179
    %v3444 = vadd.f32 %v2728, %v3328
    %v3445 = vadd.f32 %v2729, %v3182
    %v3446 = vadd.f32 %v2730, %v3331
    %v3447 = vadd.f32 %v2731, %v3184
    %v3448 = vadd.f32 %v2732, %v3333
    %v3449 = vadd.f32 %v2733, %v3187
    %v3450 = vadd.f32 %v2734, %v3336
    %v3451 = vadd.f32 %v2735, %v3189
    %v3452 = vadd.f32 %v2736, %v3338
    %v3453 = vadd.f32 %v2737, %v3192
    %v3454 = vadd.f32 %v2738, %v3341
    %v3455 = vadd.f32 %v2739, %v3194
    %v3456 = vadd.f32 %v2740, %v3343
    %v3457 = vmax.f32 %v3345, %v3346
    %v3458 = vmax.f32 %v3347, %v3348
    %v3459 = vmax.f32 %v3349, %v3350
    %v3460 = vmax.f32 %v3351, %v3352
    %v3461 = vmax.f32 %v3353, %v3354
    %v3462 = vmax.f32 %v3355, %v3356
    %v3463 = vmax.f32 %v3357, %v3358
    %v3464 = vmax.f32 %v3359, %v3360
    %v3465 = vmax.f32 %v3361, %v3362
    %v3466 = vmax.f32 %v3363, %v3364
    %v3467 = vmax.f32 %v3365, %v3366
    %v3468 = vmax.f32 %v3367, %v3368
    %v3469 = vmax.f32 %v3369, %v3370
    %v3470 = vmax.f32 %v3371, %v3372
    %v3471 = vmax.f32 %v3373, %v3374
    %v3472 = vmax.f32 %v3375, %v3376
    %v3473 = vmax.f32 %v3377, %v3378
    %v3474 = vmax.f32 %v3379, %v3380
    %v3475 = vmax.f32 %v3381, %v3382
    %v3476 = vmax.f32 %v3383, %v3384
    %v3477 = vmax.f32 %v3385, %v3386
    %v3478 = vmax.f32 %v3387, %v3388
    %v3479 = vmax.f32 %v3389, %v3390
    %v3480 = vmax.f32 %v3391, %v3392
    %v3481 = vmax.f32 %v3393, %v3394
    %v3482 = vmax.f32 %v3395, %v3396
    %v3483 = vmax.f32 %v3397, %v3398
    %v3484 = vmax.f32 %v3399, %v3400
    %v3485 = vmax.f32 %v3401, %v3402
    %v3486 = vmax.f32 %v3403, %v3404
    %v3487 = vmax.f32 %v3405, %v3406
    %v3488 = vmax.f32 %v3407, %v3408
    %v3489 = vmax.f32 %v3409, %v3410
    %v3490 = vmax.f32 %v3411, %v3412
    %v3491 = vmax.f32 %v3413, %v3414
    %v3492 = vmax.f32 %v3415, %v3416
    %v3493 = vmax.f32 %v3417, %v3418
    %v3494 = vmax.f32 %v3419, %v3420
    %v3495 = vmax.f32 %v3421, %v3422
    %v3496 = vmax.f32 %v3423, %v3424
    %v3497 = vmax.f32 %v3425, %v3426
    %v3498 = vmax.f32 %v3427, %v3428
    %v3499 = vmax.f32 %v3429, %v3430
    %v3500 = vmax.f32 %v3431, %v3432
    %v3501 = vmax.f32 %v3433, %v3434
    %v3502 = vmax.f32 %v3435, %v3436
    %v3503 = vmax.f32 %v3437, %v3438
    %v3504 = vmax.f32 %v3439, %v3440
    %v3505 = vmax.f32 %v3441, %v3442
    %v3506 = vmax.f32 %v3443, %v3444
    %v3507 = vmax.f32 %v3445, %v3446
    %v3508 = vmax.f32 %v3447, %v3448
    %v3509 = vmax.f32 %v3449, %v3450
    %v3510 = vmax.f32 %v3451, %v3452
    %v3511 = vmax.f32 %v3453, %v3454
    %v3512 = vmax.f32 %v3455, %v3456
    %v3513 = vld [vmem:[%s2] sm:$0x1]
    %v3515 = vperm.slane %v3513, 0
    %v3517 = vadd.f32 %v3457, %v3515
    %v3518 = vadd.f32 %v3458, %v3515
    %v3519 = vadd.f32 %v3459, %v3515
    %v3520 = vadd.f32 %v3460, %v3515
    %v3521 = vadd.f32 %v3461, %v3515
    %v3522 = vadd.f32 %v3462, %v3515
    %v3523 = vadd.f32 %v3463, %v3515
    %v3524 = vadd.f32 %v3464, %v3515
    %v3525 = vadd.f32 %v3465, %v3515
    %v3526 = vadd.f32 %v3466, %v3515
    %v3527 = vadd.f32 %v3467, %v3515
    %v3528 = vadd.f32 %v3468, %v3515
    %v3529 = vadd.f32 %v3469, %v3515
    %v3530 = vadd.f32 %v3470, %v3515
    %v3531 = vadd.f32 %v3471, %v3515
    %v3532 = vadd.f32 %v3472, %v3515
    %v3533 = vadd.f32 %v3473, %v3515
    %v3534 = vadd.f32 %v3474, %v3515
    %v3535 = vadd.f32 %v3475, %v3515
    %v3536 = vadd.f32 %v3476, %v3515
    %v3537 = vadd.f32 %v3477, %v3515
    %v3538 = vadd.f32 %v3478, %v3515
    %v3539 = vadd.f32 %v3479, %v3515
    %v3540 = vadd.f32 %v3480, %v3515
    %v3541 = vadd.f32 %v3481, %v3515
    %v3542 = vadd.f32 %v3482, %v3515
    %v3543 = vadd.f32 %v3483, %v3515
    %v3544 = vadd.f32 %v3484, %v3515
    %v3545 = vadd.f32 %v3485, %v3515
    %v3546 = vadd.f32 %v3486, %v3515
    %v3547 = vadd.f32 %v3487, %v3515
    %v3548 = vadd.f32 %v3488, %v3515
    %v3549 = vadd.f32 %v3489, %v3515
    %v3550 = vadd.f32 %v3490, %v3515
    %v3551 = vadd.f32 %v3491, %v3515
    %v3552 = vadd.f32 %v3492, %v3515
    %v3553 = vadd.f32 %v3493, %v3515
    %v3554 = vadd.f32 %v3494, %v3515
    %v3555 = vadd.f32 %v3495, %v3515
    %v3556 = vadd.f32 %v3496, %v3515
    %v3557 = vadd.f32 %v3497, %v3515
    %v3558 = vadd.f32 %v3498, %v3515
    %v3559 = vadd.f32 %v3499, %v3515
    %v3560 = vadd.f32 %v3500, %v3515
    %v3561 = vadd.f32 %v3501, %v3515
    %v3562 = vadd.f32 %v3502, %v3515
    %v3563 = vadd.f32 %v3503, %v3515
    %v3564 = vadd.f32 %v3504, %v3515
    %v3565 = vadd.f32 %v3505, %v3515
    %v3566 = vadd.f32 %v3506, %v3515
    %v3567 = vadd.f32 %v3507, %v3515
    %v3568 = vadd.f32 %v3508, %v3515
    %v3569 = vadd.f32 %v3509, %v3515
    %v3570 = vadd.f32 %v3510, %v3515
    %v3571 = vadd.f32 %v3511, %v3515
    %v3572 = vadd.f32 %v3512, %v3515
    %v3573 = vmax.f32 %v3517, 0.0
    %v3574 = vmax.f32 %v3518, 0.0
    %v3575 = vmax.f32 %v3519, 0.0
    %v3576 = vmax.f32 %v3520, 0.0
    %v3577 = vmax.f32 %v3521, 0.0
    %v3578 = vmax.f32 %v3522, 0.0
    %v3579 = vmax.f32 %v3523, 0.0
    %v3580 = vmax.f32 %v3524, 0.0
    %v3581 = vmax.f32 %v3525, 0.0
    %v3582 = vmax.f32 %v3526, 0.0
    %v3583 = vmax.f32 %v3527, 0.0
    %v3584 = vmax.f32 %v3528, 0.0
    %v3585 = vmax.f32 %v3529, 0.0
    %v3586 = vmax.f32 %v3530, 0.0
    %v3587 = vmax.f32 %v3531, 0.0
    %v3588 = vmax.f32 %v3532, 0.0
    %v3589 = vmax.f32 %v3533, 0.0
    %v3590 = vmax.f32 %v3534, 0.0
    %v3591 = vmax.f32 %v3535, 0.0
    %v3592 = vmax.f32 %v3536, 0.0
    %v3593 = vmax.f32 %v3537, 0.0
    %v3594 = vmax.f32 %v3538, 0.0
    %v3595 = vmax.f32 %v3539, 0.0
    %v3596 = vmax.f32 %v3540, 0.0
    %v3597 = vmax.f32 %v3541, 0.0
    %v3598 = vmax.f32 %v3542, 0.0
    %v3599 = vmax.f32 %v3543, 0.0
    %v3600 = vmax.f32 %v3544, 0.0
    %v3601 = vmax.f32 %v3545, 0.0
    %v3602 = vmax.f32 %v3546, 0.0
    %v3603 = vmax.f32 %v3547, 0.0
    %v3604 = vmax.f32 %v3548, 0.0
    %v3605 = vmax.f32 %v3549, 0.0
    %v3606 = vmax.f32 %v3550, 0.0
    %v3607 = vmax.f32 %v3551, 0.0
    %v3608 = vmax.f32 %v3552, 0.0
    %v3609 = vmax.f32 %v3553, 0.0
    %v3610 = vmax.f32 %v3554, 0.0
    %v3611 = vmax.f32 %v3555, 0.0
    %v3612 = vmax.f32 %v3556, 0.0
    %v3613 = vmax.f32 %v3557, 0.0
    %v3614 = vmax.f32 %v3558, 0.0
    %v3615 = vmax.f32 %v3559, 0.0
    %v3616 = vmax.f32 %v3560, 0.0
    %v3617 = vmax.f32 %v3561, 0.0
    %v3618 = vmax.f32 %v3562, 0.0
    %v3619 = vmax.f32 %v3563, 0.0
    %v3620 = vmax.f32 %v3564, 0.0
    %v3621 = vmax.f32 %v3565, 0.0
    %v3622 = vmax.f32 %v3566, 0.0
    %v3623 = vmax.f32 %v3567, 0.0
    %v3624 = vmax.f32 %v3568, 0.0
    %v3625 = vmax.f32 %v3569, 0.0
    %v3626 = vmax.f32 %v3570, 0.0
    %v3627 = vmax.f32 %v3571, 0.0
    %v3628 = vmax.f32 %v3572, 0.0
    %v3629 = vmax.f32 %v3573, %v3575
    %v3630 = vmax.f32 %v3574, %v3576
    %v3631 = vmax.f32 %v3577, %v3579
    %v3632 = vmax.f32 %v3578, %v3580
    %v3633 = vmax.f32 %v3581, %v3583
    %v3634 = vmax.f32 %v3582, %v3584
    %v3635 = vmax.f32 %v3585, %v3587
    %v3636 = vmax.f32 %v3586, %v3588
    %v3637 = vmax.f32 %v3589, %v3591
    %v3638 = vmax.f32 %v3590, %v3592
    %v3639 = vmax.f32 %v3593, %v3595
    %v3640 = vmax.f32 %v3594, %v3596
    %v3641 = vmax.f32 %v3597, %v3599
    %v3642 = vmax.f32 %v3598, %v3600
    %v3643 = vmax.f32 %v3601, %v3603
    %v3644 = vmax.f32 %v3602, %v3604
    %v3645 = vmax.f32 %v3605, %v3607
    %v3646 = vmax.f32 %v3606, %v3608
    %v3647 = vmax.f32 %v3609, %v3611
    %v3648 = vmax.f32 %v3610, %v3612
    %v3649 = vmax.f32 %v3613, %v3615
    %v3650 = vmax.f32 %v3614, %v3616
    %v3651 = vmax.f32 %v3617, %v3619
    %v3652 = vmax.f32 %v3618, %v3620
    %v3653 = vmax.f32 %v3621, %v3623
    %v3654 = vmax.f32 %v3622, %v3624
    %v3655 = vmax.f32 %v3625, %v3627
    %v3656 = vmax.f32 %v3626, %v3628
    %v3657 = vpack.c.bf16 %v3629, %v3629
    %v3658 = vpack.c.bf16 %v3630, %v3630
    %v3659 = vpack.c.bf16 %v3631, %v3631
    %v3660 = vpack.c.bf16 %v3632, %v3632
    %v3661 = vpack.c.bf16 %v3633, %v3633
    %v3662 = vpack.c.bf16 %v3634, %v3634
    %v3663 = vpack.c.bf16 %v3635, %v3635
    %v3664 = vpack.c.bf16 %v3636, %v3636
    %v3665 = vpack.c.bf16 %v3637, %v3637
    %v3666 = vpack.c.bf16 %v3638, %v3638
    %v3667 = vpack.c.bf16 %v3639, %v3639
    %v3668 = vpack.c.bf16 %v3640, %v3640
    %v3669 = vpack.c.bf16 %v3641, %v3641
    %v3670 = vpack.c.bf16 %v3642, %v3642
    %v3671 = vpack.c.bf16 %v3643, %v3643
    %v3672 = vpack.c.bf16 %v3644, %v3644
    %v3673 = vpack.c.bf16 %v3645, %v3645
    %v3674 = vpack.c.bf16 %v3646, %v3646
    %v3675 = vpack.c.bf16 %v3647, %v3647
    %v3676 = vpack.c.bf16 %v3648, %v3648
    %v3677 = vpack.c.bf16 %v3649, %v3649
    %v3678 = vpack.c.bf16 %v3650, %v3650
    %v3679 = vpack.c.bf16 %v3651, %v3651
    %v3680 = vpack.c.bf16 %v3652, %v3652
    %v3681 = vpack.c.bf16 %v3653, %v3653
    %v3682 = vpack.c.bf16 %v3654, %v3654
    %v3683 = vpack.c.bf16 %v3655, %v3655
    %v3684 = vpack.c.bf16 %v3656, %v3656
    %v3705 = vunpack.c.l.b16 %v3657
    %v3706 = vunpack.c.l.b16 %v3658
    %v3707 = vunpack.c.l.b16 %v3659
    %v3708 = vunpack.c.l.b16 %v3660
    %v3709 = vunpack.c.l.b16 %v3661
    %v3710 = vunpack.c.l.b16 %v3662
    %v3711 = vunpack.c.l.b16 %v3663
    %v3712 = vunpack.c.l.b16 %v3664
    %v3713 = vunpack.c.l.b16 %v3665
    %v3714 = vunpack.c.l.b16 %v3666
    %v3715 = vunpack.c.l.b16 %v3667
    %v3716 = vunpack.c.l.b16 %v3668
    %v3717 = vunpack.c.l.b16 %v3669
    %v3718 = vunpack.c.l.b16 %v3670
    %v3719 = vunpack.c.l.b16 %v3671
    %v3720 = vunpack.c.l.b16 %v3672
    %v3721 = vunpack.c.l.b16 %v3673
    %v3722 = vunpack.c.l.b16 %v3674
    %v3723 = vunpack.c.l.b16 %v3675
    %v3724 = vunpack.c.l.b16 %v3676
    %v3725 = vpack.c.b16 %v3706, %v3705
    %v3726 = vpack.c.b16 %v3708, %v3707
    %v3727 = vpack.c.b16 %v3710, %v3709
    %v3728 = vpack.c.b16 %v3712, %v3711
    %v3729 = vpack.c.b16 %v3714, %v3713
    %v3730 = vpack.c.b16 %v3716, %v3715
    %v3731 = vpack.c.b16 %v3718, %v3717
    %v3732 = vpack.c.b16 %v3720, %v3719
    %v3733 = vpack.c.b16 %v3722, %v3721
    %v3734 = vpack.c.b16 %v3724, %v3723
    %v3747 = vunpack.c.l.b16 %v3677
    %v3748 = vunpack.c.l.b16 %v3678
    %v3749 = vpack.c.b16 %v3748, %v3747
    %v3753 = vunpack.c.l.b16 %v3679
    %v3754 = vunpack.c.l.b16 %v3680
    %v3755 = vpack.c.b16 %v3754, %v3753
    %v3759 = vunpack.c.l.b16 %v3681
    %v3760 = vunpack.c.l.b16 %v3682
    %v3761 = vpack.c.b16 %v3760, %v3759
    %v3765 = vunpack.c.l.b16 %v3683
    %v3766 = vunpack.c.l.b16 %v3684
    %v3767 = vpack.c.b16 %v3766, %v3765
    %v3769 = vld [vmem:[#allocation4] sm:$0xff]
    %v3770 = vld [vmem:[#allocation4 + $0x8] sm:$0xff]
    %v3771 = vld [vmem:[#allocation4 + $0x10] sm:$0xff]
    %v3772 = vld [vmem:[#allocation4 + $0x18] sm:$0xff]
    %v3773 = vld [vmem:[#allocation4 + $0x20] sm:$0xff]
    %v3774 = vld [vmem:[#allocation4 + $0x28] sm:$0xff]
    %v3775 = vld [vmem:[#allocation4 + $0x30] sm:$0xff]
    %v3776 = vld [vmem:[#allocation4 + $0x38] sm:$0xff]
    %v3777 = vld [vmem:[#allocation4 + $0x40] sm:$0xff]
    %v3778 = vld [vmem:[#allocation4 + $0x48] sm:$0xff]
    %v3779 = vld [vmem:[#allocation4 + $0x50] sm:$0xff]
    %v3780 = vld [vmem:[#allocation4 + $0x58] sm:$0xff]
    %v3781 = vld [vmem:[#allocation4 + $0x60] sm:$0xff]
    %v3782 = vld [vmem:[#allocation4 + $0x68] sm:$0xff]
    %v3783 = vld [vmem:[#allocation4 + $0x70] sm:$0xff]
    %v3784 = vld [vmem:[#allocation4 + $0x78] sm:$0xff]
    %v3785 = vld [vmem:[#allocation4 + $0x80] sm:$0xff]
    %v3786 = vld [vmem:[#allocation4 + $0x88] sm:$0xff]
    %v3787 = vld [vmem:[#allocation4 + $0x90] sm:$0xff]
    %v3788 = vld [vmem:[#allocation4 + $0x98] sm:$0xff]
    %v3789 = vld [vmem:[#allocation4 + $0xa0] sm:$0xff]
    %v3790 = vld [vmem:[#allocation4 + $0xa8] sm:$0xff]
    %v3791 = vld [vmem:[#allocation4 + $0xb0] sm:$0xff]
    %v3792 = vld [vmem:[#allocation4 + $0xb8] sm:$0xff]
    %v3793 = vld [vmem:[#allocation4 + $0xc0] sm:$0xff]
    %v3794 = vld [vmem:[#allocation4 + $0xc8] sm:$0xff]
    %v3795 = vld [vmem:[#allocation4 + $0xd0] sm:$0xff]
    %v3796 = vld [vmem:[#allocation4 + $0xd8] sm:$0xff]
    %v3797 = vld [vmem:[#allocation4 + $0xe0] sm:$0xff]
    %v3798 = vld [vmem:[#allocation4 + $0xe8] sm:$0xff]
    %v3799 = vld [vmem:[#allocation4 + $0xf0] sm:$0xff]
    %v3800 = vld [vmem:[#allocation4 + $0xf8] sm:$0xff]
    %v3801 = vld [vmem:[#allocation4 + $0x100] sm:$0xff]
    %v3802 = vld [vmem:[#allocation4 + $0x108] sm:$0xff]
    %v3803 = vld [vmem:[#allocation4 + $0x110] sm:$0xff]
    %v3804 = vld [vmem:[#allocation4 + $0x118] sm:$0xff]
    %v3805 = vld [vmem:[#allocation4 + $0x120] sm:$0xff]
    %v3806 = vld [vmem:[#allocation4 + $0x128] sm:$0xff]
    %v3807 = vld [vmem:[#allocation4 + $0x130] sm:$0xff]
    %v3808 = vld [vmem:[#allocation4 + $0x138] sm:$0xff]
    %v3809 = vld [vmem:[#allocation4 + $0x140] sm:$0xff]
    %v3810 = vld [vmem:[#allocation4 + $0x148] sm:$0xff]
    %v3811 = vld [vmem:[#allocation4 + $0x150] sm:$0xff]
    %v3812 = vld [vmem:[#allocation4 + $0x158] sm:$0xff]
    %v3813 = vld [vmem:[#allocation4 + $0x160] sm:$0xff]
    %v3814 = vld [vmem:[#allocation4 + $0x168] sm:$0xff]
    %v3815 = vld [vmem:[#allocation4 + $0x170] sm:$0xff]
    %v3816 = vld [vmem:[#allocation4 + $0x178] sm:$0xff]
    %v3817 = vld [vmem:[#allocation4 + $0x180] sm:$0xff]
    %v3818 = vld [vmem:[#allocation4 + $0x188] sm:$0xff]
    %v3819 = vld [vmem:[#allocation4 + $0x190] sm:$0xff]
    %v3820 = vld [vmem:[#allocation4 + $0x198] sm:$0xff]
    %v3821 = vld [vmem:[#allocation4 + $0x1a0] sm:$0xff]
    %v3822 = vld [vmem:[#allocation4 + $0x1a8] sm:$0xff]
    %v3823 = vld [vmem:[#allocation4 + $0x1b0] sm:$0xff]
    %v3824 = vld [vmem:[#allocation4 + $0x1b8] sm:$0xff]
    %v3825 = vld [vmem:[#allocation4 + $0x1c0] sm:$0xff]
    %v3826 = vld [vmem:[#allocation4 + $0x1c8] sm:$0xff]
    %v3827 = vld [vmem:[#allocation4 + $0x1d0] sm:$0xff]
    %v3828 = vld [vmem:[#allocation4 + $0x1d8] sm:$0xff]
    %v3829 = vld [vmem:[#allocation4 + $0x1e0] sm:$0xff]
    %v3830 = vld [vmem:[#allocation4 + $0x1e8] sm:$0xff]
    %v3831 = vld [vmem:[#allocation4 + $0x1f0] sm:$0xff]
    %v3832 = vld [vmem:[#allocation4 + $0x1f8] sm:$0xff]
    %v3833 = vld [vmem:[#allocation4 + $0x200] sm:$0xff]
    %v3834 = vld [vmem:[#allocation4 + $0x208] sm:$0xff]
    %v3835 = vld [vmem:[#allocation4 + $0x210] sm:$0xff]
    %v3836 = vld [vmem:[#allocation4 + $0x218] sm:$0xff]
    %v3837 = vld [vmem:[#allocation4 + $0x220] sm:$0xff]
    %v3838 = vld [vmem:[#allocation4 + $0x228] sm:$0xff]
    %v3839 = vld [vmem:[#allocation4 + $0x230] sm:$0xff]
    %v3840 = vld [vmem:[#allocation4 + $0x238] sm:$0xff]
    %v3841 = vld [vmem:[#allocation4 + $0x240] sm:$0xff]
    %v3842 = vld [vmem:[#allocation4 + $0x248] sm:$0xff]
    %v3843 = vld [vmem:[#allocation4 + $0x250] sm:$0xff]
    %v3844 = vld [vmem:[#allocation4 + $0x258] sm:$0xff]
    %v3845 = vld [vmem:[#allocation4 + $0x260] sm:$0xff]
    %v3846 = vld [vmem:[#allocation4 + $0x268] sm:$0xff]
    %v3847 = vld [vmem:[#allocation4 + $0x270] sm:$0xff]
    %v3848 = vld [vmem:[#allocation4 + $0x278] sm:$0xff]
    %v3929 = vunpack.c.l.b16 %v3769
    %v3930 = vunpack.c.h.b16 %v3769
    %v3931 = vunpack.c.l.b16 %v3770
    %v3932 = vunpack.c.h.b16 %v3770
    %v3933 = vunpack.c.l.b16 %v3771
    %v3934 = vunpack.c.h.b16 %v3771
    %v3935 = vunpack.c.l.b16 %v3772
    %v3936 = vunpack.c.h.b16 %v3772
    %v3937 = vunpack.c.l.b16 %v3773
    %v3938 = vunpack.c.h.b16 %v3773
    %v3939 = vunpack.c.l.b16 %v3774
    %v3940 = vunpack.c.h.b16 %v3774
    %v3941 = vunpack.c.l.b16 %v3775
    %v3942 = vunpack.c.h.b16 %v3775
    %v3943 = vunpack.c.l.b16 %v3776
    %v3944 = vunpack.c.h.b16 %v3776
    %v3945 = vunpack.c.l.b16 %v3777
    %v3946 = vunpack.c.h.b16 %v3777
    %v3947 = vunpack.c.l.b16 %v3778
    %v3948 = vunpack.c.h.b16 %v3778
    %v3949 = vunpack.c.l.b16 %v3779
    %v3950 = vunpack.c.h.b16 %v3779
    %v3951 = vunpack.c.l.b16 %v3780
    %v3952 = vunpack.c.h.b16 %v3780
    %v3953 = vunpack.c.l.b16 %v3781
    %v3954 = vunpack.c.h.b16 %v3781
    %v3955 = vunpack.c.l.b16 %v3782
    %v3956 = vunpack.c.h.b16 %v3782
    %v3957 = vunpack.c.l.b16 %v3783
    %v3958 = vunpack.c.h.b16 %v3783
    %v3959 = vunpack.c.l.b16 %v3784
    %v3960 = vunpack.c.h.b16 %v3784
    %v3961 = vunpack.c.l.b16 %v3785
    %v3962 = vunpack.c.h.b16 %v3785
    %v3963 = vunpack.c.l.b16 %v3786
    %v3964 = vunpack.c.h.b16 %v3786
    %v3965 = vunpack.c.l.b16 %v3787
    %v3966 = vunpack.c.h.b16 %v3787
    %v3967 = vunpack.c.l.b16 %v3788
    %v3968 = vunpack.c.h.b16 %v3788
    %v3969 = vunpack.c.l.b16 %v3789
    %v3970 = vunpack.c.h.b16 %v3789
    %v3971 = vunpack.c.l.b16 %v3790
    %v3972 = vunpack.c.h.b16 %v3790
    %v3973 = vunpack.c.l.b16 %v3791
    %v3974 = vunpack.c.h.b16 %v3791
    %v3975 = vunpack.c.l.b16 %v3792
    %v3976 = vunpack.c.h.b16 %v3792
    %v3977 = vunpack.c.l.b16 %v3793
    %v3978 = vunpack.c.h.b16 %v3793
    %v3979 = vunpack.c.l.b16 %v3794
    %v3980 = vunpack.c.h.b16 %v3794
    %v3981 = vunpack.c.l.b16 %v3795
    %v3982 = vunpack.c.h.b16 %v3795
    %v3983 = vunpack.c.l.b16 %v3796
    %v3984 = vunpack.c.h.b16 %v3796
    %v3985 = vunpack.c.l.b16 %v3797
    %v3986 = vunpack.c.h.b16 %v3797
    %v3987 = vunpack.c.l.b16 %v3798
    %v3988 = vunpack.c.h.b16 %v3798
    %v3989 = vunpack.c.l.b16 %v3799
    %v3990 = vunpack.c.h.b16 %v3799
    %v3991 = vunpack.c.l.b16 %v3800
    %v3992 = vunpack.c.h.b16 %v3800
    %v3993 = vunpack.c.l.b16 %v3801
    %v3994 = vunpack.c.h.b16 %v3801
    %v3995 = vunpack.c.l.b16 %v3802
    %v3996 = vunpack.c.h.b16 %v3802
    %v3997 = vunpack.c.l.b16 %v3803
    %v3998 = vunpack.c.h.b16 %v3803
    %v3999 = vunpack.c.l.b16 %v3804
    %v4000 = vunpack.c.h.b16 %v3804
    %v4001 = vunpack.c.l.b16 %v3805
    %v4002 = vunpack.c.h.b16 %v3805
    %v4003 = vunpack.c.l.b16 %v3806
    %v4004 = vunpack.c.h.b16 %v3806
    %v4005 = vunpack.c.l.b16 %v3807
    %v4006 = vunpack.c.h.b16 %v3807
    %v4007 = vunpack.c.l.b16 %v3808
    %v4008 = vunpack.c.h.b16 %v3808
    %v4009 = vunpack.c.l.b16 %v3809
    %v4010 = vunpack.c.h.b16 %v3809
    %v4011 = vunpack.c.l.b16 %v3810
    %v4012 = vunpack.c.h.b16 %v3810
    %v4013 = vunpack.c.l.b16 %v3811
    %v4014 = vunpack.c.h.b16 %v3811
    %v4015 = vunpack.c.l.b16 %v3812
    %v4016 = vunpack.c.h.b16 %v3812
    %v4017 = vunpack.c.l.b16 %v3813
    %v4018 = vunpack.c.h.b16 %v3813
    %v4019 = vunpack.c.l.b16 %v3814
    %v4020 = vunpack.c.h.b16 %v3814
    %v4021 = vunpack.c.l.b16 %v3815
    %v4022 = vunpack.c.h.b16 %v3815
    %v4023 = vunpack.c.l.b16 %v3816
    %v4024 = vunpack.c.h.b16 %v3816
    %v4025 = vunpack.c.l.b16 %v3817
    %v4026 = vunpack.c.h.b16 %v3817
    %v4027 = vunpack.c.l.b16 %v3818
    %v4028 = vunpack.c.h.b16 %v3818
    %v4029 = vunpack.c.l.b16 %v3819
    %v4030 = vunpack.c.h.b16 %v3819
    %v4031 = vunpack.c.l.b16 %v3820
    %v4032 = vunpack.c.h.b16 %v3820
    %v4033 = vunpack.c.l.b16 %v3821
    %v4034 = vunpack.c.h.b16 %v3821
    %v4035 = vunpack.c.l.b16 %v3822
    %v4036 = vunpack.c.h.b16 %v3822
    %v4037 = vunpack.c.l.b16 %v3823
    %v4038 = vunpack.c.h.b16 %v3823
    %v4039 = vunpack.c.l.b16 %v3824
    %v4040 = vunpack.c.h.b16 %v3824
    %v4041 = vunpack.c.l.b16 %v3825
    %v4042 = vunpack.c.h.b16 %v3825
    %v4043 = vunpack.c.l.b16 %v3826
    %v4044 = vunpack.c.h.b16 %v3826
    %v4045 = vunpack.c.l.b16 %v3827
    %v4046 = vunpack.c.h.b16 %v3827
    %v4047 = vunpack.c.l.b16 %v3828
    %v4048 = vunpack.c.h.b16 %v3828
    %v4049 = vunpack.c.l.b16 %v3829
    %v4050 = vunpack.c.h.b16 %v3829
    %v4051 = vunpack.c.l.b16 %v3830
    %v4052 = vunpack.c.h.b16 %v3830
    %v4053 = vunpack.c.l.b16 %v3831
    %v4054 = vunpack.c.h.b16 %v3831
    %v4055 = vunpack.c.l.b16 %v3832
    %v4056 = vunpack.c.h.b16 %v3832
    %v4057 = vunpack.c.l.b16 %v3833
    %v4058 = vunpack.c.h.b16 %v3833
    %v4059 = vunpack.c.l.b16 %v3834
    %v4060 = vunpack.c.h.b16 %v3834
    %v4061 = vunpack.c.l.b16 %v3835
    %v4062 = vunpack.c.h.b16 %v3835
    %v4063 = vunpack.c.l.b16 %v3836
    %v4064 = vunpack.c.h.b16 %v3836
    %v4065 = vunpack.c.l.b16 %v3837
    %v4066 = vunpack.c.h.b16 %v3837
    %v4067 = vunpack.c.l.b16 %v3838
    %v4068 = vunpack.c.h.b16 %v3838
    %v4069 = vunpack.c.l.b16 %v3839
    %v4070 = vunpack.c.h.b16 %v3839
    %v4071 = vunpack.c.l.b16 %v3840
    %v4072 = vunpack.c.h.b16 %v3840
    %v4073 = vunpack.c.l.b16 %v3841
    %v4074 = vunpack.c.h.b16 %v3841
    %v4075 = vunpack.c.l.b16 %v3842
    %v4076 = vunpack.c.h.b16 %v3842
    %v4077 = vunpack.c.l.b16 %v3843
    %v4078 = vunpack.c.h.b16 %v3843
    %v4079 = vunpack.c.l.b16 %v3844
    %v4080 = vunpack.c.h.b16 %v3844
    %v4081 = vunpack.c.l.b16 %v3845
    %v4082 = vunpack.c.h.b16 %v3845
    %v4083 = vunpack.c.l.b16 %v3846
    %v4084 = vunpack.c.h.b16 %v3846
    %v4085 = vunpack.c.l.b16 %v3847
    %v4086 = vunpack.c.h.b16 %v3847
    %v4087 = vunpack.c.l.b16 %v3848
    %v4088 = vunpack.c.h.b16 %v3848
    %v4089 = vpack.c.b16 %v3931, %v3929
    %v4090 = vpack.c.b16 %v3932, %v3930
    %v4091 = vpack.c.b16 %v3935, %v3933
    %v4092 = vpack.c.b16 %v3936, %v3934
    %v4093 = vpack.c.b16 %v3939, %v3937
    %v4094 = vpack.c.b16 %v3940, %v3938
    %v4095 = vpack.c.b16 %v3943, %v3941
    %v4096 = vpack.c.b16 %v3944, %v3942
    %v4097 = vpack.c.b16 %v3947, %v3945
    %v4098 = vpack.c.b16 %v3948, %v3946
    %v4099 = vpack.c.b16 %v3951, %v3949
    %v4100 = vpack.c.b16 %v3952, %v3950
    %v4101 = vpack.c.b16 %v3955, %v3953
    %v4102 = vpack.c.b16 %v3956, %v3954
    %v4103 = vpack.c.b16 %v3959, %v3957
    %v4104 = vpack.c.b16 %v3960, %v3958
    %v4105 = vpack.c.b16 %v3963, %v3961
    %v4106 = vpack.c.b16 %v3964, %v3962
    %v4107 = vpack.c.b16 %v3967, %v3965
    %v4108 = vpack.c.b16 %v3968, %v3966
    %v4109 = vpack.c.b16 %v3971, %v3969
    %v4110 = vpack.c.b16 %v3972, %v3970
    %v4111 = vpack.c.b16 %v3975, %v3973
    %v4112 = vpack.c.b16 %v3976, %v3974
    %v4113 = vpack.c.b16 %v3979, %v3977
    %v4114 = vpack.c.b16 %v3980, %v3978
    %v4115 = vpack.c.b16 %v3983, %v3981
    %v4116 = vpack.c.b16 %v3984, %v3982
    %v4117 = vpack.c.b16 %v3987, %v3985
    %v4118 = vpack.c.b16 %v3988, %v3986
    %v4119 = vpack.c.b16 %v3991, %v3989
    %v4120 = vpack.c.b16 %v3992, %v3990
    %v4121 = vpack.c.b16 %v3995, %v3993
    %v4122 = vpack.c.b16 %v3996, %v3994
    %v4123 = vpack.c.b16 %v3999, %v3997
    %v4124 = vpack.c.b16 %v4000, %v3998
    %v4125 = vpack.c.b16 %v4003, %v4001
    %v4126 = vpack.c.b16 %v4004, %v4002
    %v4127 = vpack.c.b16 %v4007, %v4005
    %v4128 = vpack.c.b16 %v4008, %v4006
    %v4129 = vpack.c.b16 %v4011, %v4009
    %v4130 = vpack.c.b16 %v4012, %v4010
    %v4131 = vpack.c.b16 %v4015, %v4013
    %v4132 = vpack.c.b16 %v4016, %v4014
    %v4133 = vpack.c.b16 %v4019, %v4017
    %v4134 = vpack.c.b16 %v4020, %v4018
    %v4135 = vpack.c.b16 %v4023, %v4021
    %v4136 = vpack.c.b16 %v4024, %v4022
    %v4137 = vpack.c.b16 %v4027, %v4025
    %v4138 = vpack.c.b16 %v4028, %v4026
    %v4139 = vpack.c.b16 %v4031, %v4029
    %v4140 = vpack.c.b16 %v4032, %v4030
    %v4141 = vpack.c.b16 %v4035, %v4033
    %v4142 = vpack.c.b16 %v4036, %v4034
    %v4143 = vpack.c.b16 %v4039, %v4037
    %v4144 = vpack.c.b16 %v4040, %v4038
    %v4145 = vpack.c.b16 %v4043, %v4041
    %v4146 = vpack.c.b16 %v4044, %v4042
    %v4147 = vpack.c.b16 %v4047, %v4045
    %v4148 = vpack.c.b16 %v4048, %v4046
    %v4149 = vpack.c.b16 %v4051, %v4049
    %v4150 = vpack.c.b16 %v4052, %v4050
    %v4151 = vpack.c.b16 %v4055, %v4053
    %v4152 = vpack.c.b16 %v4056, %v4054
    %v4153 = vpack.c.b16 %v4059, %v4057
    %v4154 = vpack.c.b16 %v4060, %v4058
    %v4155 = vpack.c.b16 %v4063, %v4061
    %v4156 = vpack.c.b16 %v4064, %v4062
    %v4157 = vpack.c.b16 %v4067, %v4065
    %v4158 = vpack.c.b16 %v4068, %v4066
    %v4159 = vpack.c.b16 %v4071, %v4069
    %v4160 = vpack.c.b16 %v4072, %v4070
    %v4161 = vpack.c.b16 %v4075, %v4073
    %v4162 = vpack.c.b16 %v4076, %v4074
    %v4163 = vpack.c.b16 %v4079, %v4077
    %v4164 = vpack.c.b16 %v4080, %v4078
    %v4165 = vpack.c.b16 %v4083, %v4081
    %v4166 = vpack.c.b16 %v4084, %v4082
    %v4167 = vpack.c.b16 %v4087, %v4085
    %v4168 = vpack.c.b16 %v4088, %v4086
    %4249 = vmatpush.bf16.msra.mxu0 %v4103
    %4250 = vmatpush.bf16.msra.mxu0 %v4101
    %4251 = vmatpush.bf16.msra.mxu0 %v4099
    %4252 = vmatpush.bf16.msra.mxu0 %v4097
    %4253 = vmatpush.bf16.msra.mxu0 %v4095
    %4254 = vmatpush.bf16.msra.mxu0 %v4093
    %4255 = vmatpush.bf16.msra.mxu0 %v4091
    %4256 = vmatpush.bf16.msra.mxu0 %v4089
    %4257 = vmatmul.bf16.gmra.mxu0 %v3725
    %v4258 = vpop.f32.mrf.mxu0
    %v4259 = vadd.f32 0.0, %v4258
    %v4260 = vpop.f32.mrf.mxu0
    %v4261 = vadd.f32 0.0, %v4260
    %4262 = vmatmul.bf16.gmra.mxu0 %v3726
    %v4263 = vpop.f32.mrf.mxu0
    %v4264 = vadd.f32 0.0, %v4263
    %v4265 = vpop.f32.mrf.mxu0
    %v4266 = vadd.f32 0.0, %v4265
    %4267 = vmatmul.bf16.gmra.mxu0 %v3727
    %v4268 = vpop.f32.mrf.mxu0
    %v4269 = vadd.f32 0.0, %v4268
    %v4270 = vpop.f32.mrf.mxu0
    %v4271 = vadd.f32 0.0, %v4270
    %4272 = vmatmul.bf16.gmra.mxu0 %v3728
    %v4273 = vpop.f32.mrf.mxu0
    %v4274 = vadd.f32 0.0, %v4273
    %v4275 = vpop.f32.mrf.mxu0
    %v4276 = vadd.f32 0.0, %v4275
    %4277 = vmatmul.bf16.gmra.mxu0 %v3729
    %v4278 = vpop.f32.mrf.mxu0
    %v4279 = vadd.f32 0.0, %v4278
    %v4280 = vpop.f32.mrf.mxu0
    %v4281 = vadd.f32 0.0, %v4280
    %4282 = vmatmul.bf16.gmra.mxu0 %v3730
    %v4283 = vpop.f32.mrf.mxu0
    %v4284 = vadd.f32 0.0, %v4283
    %v4285 = vpop.f32.mrf.mxu0
    %v4286 = vadd.f32 0.0, %v4285
    %4287 = vmatmul.bf16.gmra.mxu0 %v3731
    %v4288 = vpop.f32.mrf.mxu0
    %v4289 = vadd.f32 0.0, %v4288
    %v4290 = vpop.f32.mrf.mxu0
    %v4291 = vadd.f32 0.0, %v4290
    %4292 = vmatmul.bf16.gmra.mxu0 %v3732
    %v4293 = vpop.f32.mrf.mxu0
    %v4294 = vadd.f32 0.0, %v4293
    %v4295 = vpop.f32.mrf.mxu0
    %v4296 = vadd.f32 0.0, %v4295
    %4297 = vmatmul.bf16.gmra.mxu0 %v3733
    %v4298 = vpop.f32.mrf.mxu0
    %v4299 = vadd.f32 0.0, %v4298
    %v4300 = vpop.f32.mrf.mxu0
    %v4301 = vadd.f32 0.0, %v4300
    %4302 = vmatmul.bf16.gmra.mxu0 %v3734
    %v4303 = vpop.f32.mrf.mxu0
    %v4304 = vadd.f32 0.0, %v4303
    %v4305 = vpop.f32.mrf.mxu0
    %v4306 = vadd.f32 0.0, %v4305
    %4307 = vdwg.mxu0
    %4308 = vmatpush.bf16.msra.mxu0 %v4119
    %4309 = vmatpush.bf16.msra.mxu0 %v4117
    %4310 = vmatpush.bf16.msra.mxu0 %v4115
    %4311 = vmatpush.bf16.msra.mxu0 %v4113
    %4312 = vmatpush.bf16.msra.mxu0 %v4111
    %4313 = vmatpush.bf16.msra.mxu0 %v4109
    %4314 = vmatpush.bf16.msra.mxu0 %v4107
    %4315 = vmatpush.bf16.msra.mxu0 %v4105
    %4316 = vmatmul.bf16.gmra.mxu0 %v3726
    %v4317 = vpop.f32.mrf.mxu0
    %v4318 = vadd.f32 %v4259, %v4317
    %v4319 = vpop.f32.mrf.mxu0
    %v4320 = vadd.f32 %v4261, %v4319
    %4321 = vmatmul.bf16.gmra.mxu0 %v3727
    %v4322 = vpop.f32.mrf.mxu0
    %v4323 = vadd.f32 %v4264, %v4322
    %v4324 = vpop.f32.mrf.mxu0
    %v4325 = vadd.f32 %v4266, %v4324
    %4326 = vmatmul.bf16.gmra.mxu0 %v3728
    %v4327 = vpop.f32.mrf.mxu0
    %v4328 = vadd.f32 %v4269, %v4327
    %v4329 = vpop.f32.mrf.mxu0
    %v4330 = vadd.f32 %v4271, %v4329
    %4331 = vmatmul.bf16.gmra.mxu0 %v3729
    %v4332 = vpop.f32.mrf.mxu0
    %v4333 = vadd.f32 %v4274, %v4332
    %v4334 = vpop.f32.mrf.mxu0
    %v4335 = vadd.f32 %v4276, %v4334
    %4336 = vmatmul.bf16.gmra.mxu0 %v3730
    %v4337 = vpop.f32.mrf.mxu0
    %v4338 = vadd.f32 %v4279, %v4337
    %v4339 = vpop.f32.mrf.mxu0
    %v4340 = vadd.f32 %v4281, %v4339
    %4341 = vmatmul.bf16.gmra.mxu0 %v3731
    %v4342 = vpop.f32.mrf.mxu0
    %v4343 = vadd.f32 %v4284, %v4342
    %v4344 = vpop.f32.mrf.mxu0
    %v4345 = vadd.f32 %v4286, %v4344
    %4346 = vmatmul.bf16.gmra.mxu0 %v3732
    %v4347 = vpop.f32.mrf.mxu0
    %v4348 = vadd.f32 %v4289, %v4347
    %v4349 = vpop.f32.mrf.mxu0
    %v4350 = vadd.f32 %v4291, %v4349
    %4351 = vmatmul.bf16.gmra.mxu0 %v3733
    %v4352 = vpop.f32.mrf.mxu0
    %v4353 = vadd.f32 %v4294, %v4352
    %v4354 = vpop.f32.mrf.mxu0
    %v4355 = vadd.f32 %v4296, %v4354
    %4356 = vmatmul.bf16.gmra.mxu0 %v3734
    %v4357 = vpop.f32.mrf.mxu0
    %v4358 = vadd.f32 %v4299, %v4357
    %v4359 = vpop.f32.mrf.mxu0
    %v4360 = vadd.f32 %v4301, %v4359
    %4361 = vmatmul.bf16.gmra.mxu0 %v3749
    %v4362 = vpop.f32.mrf.mxu0
    %v4363 = vadd.f32 %v4304, %v4362
    %v4364 = vpop.f32.mrf.mxu0
    %v4365 = vadd.f32 %v4306, %v4364
    %4366 = vdwg.mxu0
    %4367 = vmatpush.bf16.msra.mxu0 %v4135
    %4368 = vmatpush.bf16.msra.mxu0 %v4133
    %4369 = vmatpush.bf16.msra.mxu0 %v4131
    %4370 = vmatpush.bf16.msra.mxu0 %v4129
    %4371 = vmatpush.bf16.msra.mxu0 %v4127
    %4372 = vmatpush.bf16.msra.mxu0 %v4125
    %4373 = vmatpush.bf16.msra.mxu0 %v4123
    %4374 = vmatpush.bf16.msra.mxu0 %v4121
    %4375 = vmatmul.bf16.gmra.mxu0 %v3727
    %v4376 = vpop.f32.mrf.mxu0
    %v4377 = vadd.f32 %v4318, %v4376
    %v4378 = vpop.f32.mrf.mxu0
    %v4379 = vadd.f32 %v4320, %v4378
    %4380 = vmatmul.bf16.gmra.mxu0 %v3728
    %v4381 = vpop.f32.mrf.mxu0
    %v4382 = vadd.f32 %v4323, %v4381
    %v4383 = vpop.f32.mrf.mxu0
    %v4384 = vadd.f32 %v4325, %v4383
    %4385 = vmatmul.bf16.gmra.mxu0 %v3729
    %v4386 = vpop.f32.mrf.mxu0
    %v4387 = vadd.f32 %v4328, %v4386
    %v4388 = vpop.f32.mrf.mxu0
    %v4389 = vadd.f32 %v4330, %v4388
    %4390 = vmatmul.bf16.gmra.mxu0 %v3730
    %v4391 = vpop.f32.mrf.mxu0
    %v4392 = vadd.f32 %v4333, %v4391
    %v4393 = vpop.f32.mrf.mxu0
    %v4394 = vadd.f32 %v4335, %v4393
    %4395 = vmatmul.bf16.gmra.mxu0 %v3731
    %v4396 = vpop.f32.mrf.mxu0
    %v4397 = vadd.f32 %v4338, %v4396
    %v4398 = vpop.f32.mrf.mxu0
    %v4399 = vadd.f32 %v4340, %v4398
    %4400 = vmatmul.bf16.gmra.mxu0 %v3732
    %v4401 = vpop.f32.mrf.mxu0
    %v4402 = vadd.f32 %v4343, %v4401
    %v4403 = vpop.f32.mrf.mxu0
    %v4404 = vadd.f32 %v4345, %v4403
    %4405 = vmatmul.bf16.gmra.mxu0 %v3733
    %v4406 = vpop.f32.mrf.mxu0
    %v4407 = vadd.f32 %v4348, %v4406
    %v4408 = vpop.f32.mrf.mxu0
    %v4409 = vadd.f32 %v4350, %v4408
    %4410 = vmatmul.bf16.gmra.mxu0 %v3734
    %v4411 = vpop.f32.mrf.mxu0
    %v4412 = vadd.f32 %v4353, %v4411
    %v4413 = vpop.f32.mrf.mxu0
    %v4414 = vadd.f32 %v4355, %v4413
    %4415 = vmatmul.bf16.gmra.mxu0 %v3749
    %v4416 = vpop.f32.mrf.mxu0
    %v4417 = vadd.f32 %v4358, %v4416
    %v4418 = vpop.f32.mrf.mxu0
    %v4419 = vadd.f32 %v4360, %v4418
    %4420 = vmatmul.bf16.gmra.mxu0 %v3755
    %v4421 = vpop.f32.mrf.mxu0
    %v4422 = vadd.f32 %v4363, %v4421
    %v4423 = vpop.f32.mrf.mxu0
    %v4424 = vadd.f32 %v4365, %v4423
    %4425 = vdwg.mxu0
    %4426 = vmatpush.bf16.msra.mxu0 %v4151
    %4427 = vmatpush.bf16.msra.mxu0 %v4149
    %4428 = vmatpush.bf16.msra.mxu0 %v4147
    %4429 = vmatpush.bf16.msra.mxu0 %v4145
    %4430 = vmatpush.bf16.msra.mxu0 %v4143
    %4431 = vmatpush.bf16.msra.mxu0 %v4141
    %4432 = vmatpush.bf16.msra.mxu0 %v4139
    %4433 = vmatpush.bf16.msra.mxu0 %v4137
    %4434 = vmatmul.bf16.gmra.mxu0 %v3728
    %v4435 = vpop.f32.mrf.mxu0
    %v4436 = vadd.f32 %v4377, %v4435
    %v4437 = vpop.f32.mrf.mxu0
    %v4438 = vadd.f32 %v4379, %v4437
    %4439 = vmatmul.bf16.gmra.mxu0 %v3729
    %v4440 = vpop.f32.mrf.mxu0
    %v4441 = vadd.f32 %v4382, %v4440
    %v4442 = vpop.f32.mrf.mxu0
    %v4443 = vadd.f32 %v4384, %v4442
    %4444 = vmatmul.bf16.gmra.mxu0 %v3730
    %v4445 = vpop.f32.mrf.mxu0
    %v4446 = vadd.f32 %v4387, %v4445
    %v4447 = vpop.f32.mrf.mxu0
    %v4448 = vadd.f32 %v4389, %v4447
    %4449 = vmatmul.bf16.gmra.mxu0 %v3731
    %v4450 = vpop.f32.mrf.mxu0
    %v4451 = vadd.f32 %v4392, %v4450
    %v4452 = vpop.f32.mrf.mxu0
    %v4453 = vadd.f32 %v4394, %v4452
    %4454 = vmatmul.bf16.gmra.mxu0 %v3732
    %v4455 = vpop.f32.mrf.mxu0
    %v4456 = vadd.f32 %v4397, %v4455
    %v4457 = vpop.f32.mrf.mxu0
    %v4458 = vadd.f32 %v4399, %v4457
    %4459 = vmatmul.bf16.gmra.mxu0 %v3733
    %v4460 = vpop.f32.mrf.mxu0
    %v4461 = vadd.f32 %v4402, %v4460
    %v4462 = vpop.f32.mrf.mxu0
    %v4463 = vadd.f32 %v4404, %v4462
    %4464 = vmatmul.bf16.gmra.mxu0 %v3734
    %v4465 = vpop.f32.mrf.mxu0
    %v4466 = vadd.f32 %v4407, %v4465
    %v4467 = vpop.f32.mrf.mxu0
    %v4468 = vadd.f32 %v4409, %v4467
    %4469 = vmatmul.bf16.gmra.mxu0 %v3749
    %v4470 = vpop.f32.mrf.mxu0
    %v4471 = vadd.f32 %v4412, %v4470
    %v4472 = vpop.f32.mrf.mxu0
    %v4473 = vadd.f32 %v4414, %v4472
    %4474 = vmatmul.bf16.gmra.mxu0 %v3755
    %v4475 = vpop.f32.mrf.mxu0
    %v4476 = vadd.f32 %v4417, %v4475
    %v4477 = vpop.f32.mrf.mxu0
    %v4478 = vadd.f32 %v4419, %v4477
    %4479 = vmatmul.bf16.gmra.mxu0 %v3761
    %v4480 = vpop.f32.mrf.mxu0
    %v4481 = vadd.f32 %v4422, %v4480
    %v4482 = vpop.f32.mrf.mxu0
    %v4483 = vadd.f32 %v4424, %v4482
    %4484 = vdwg.mxu0
    %4485 = vmatpush.bf16.msra.mxu0 %v4167
    %4486 = vmatpush.bf16.msra.mxu0 %v4165
    %4487 = vmatpush.bf16.msra.mxu0 %v4163
    %4488 = vmatpush.bf16.msra.mxu0 %v4161
    %4489 = vmatpush.bf16.msra.mxu0 %v4159
    %4490 = vmatpush.bf16.msra.mxu0 %v4157
    %4491 = vmatpush.bf16.msra.mxu0 %v4155
    %4492 = vmatpush.bf16.msra.mxu0 %v4153
    %4493 = vmatmul.bf16.gmra.mxu0 %v3729
    %v4494 = vpop.f32.mrf.mxu0
    %v4495 = vadd.f32 %v4436, %v4494
    %v4496 = vpop.f32.mrf.mxu0
    %v4497 = vadd.f32 %v4438, %v4496
    %4498 = vmatmul.bf16.gmra.mxu0 %v3730
    %v4499 = vpop.f32.mrf.mxu0
    %v4500 = vadd.f32 %v4441, %v4499
    %v4501 = vpop.f32.mrf.mxu0
    %v4502 = vadd.f32 %v4443, %v4501
    %4503 = vmatmul.bf16.gmra.mxu0 %v3731
    %v4504 = vpop.f32.mrf.mxu0
    %v4505 = vadd.f32 %v4446, %v4504
    %v4506 = vpop.f32.mrf.mxu0
    %v4507 = vadd.f32 %v4448, %v4506
    %4508 = vmatmul.bf16.gmra.mxu0 %v3732
    %v4509 = vpop.f32.mrf.mxu0
    %v4510 = vadd.f32 %v4451, %v4509
    %v4511 = vpop.f32.mrf.mxu0
    %v4512 = vadd.f32 %v4453, %v4511
    %4513 = vmatmul.bf16.gmra.mxu0 %v3733
    %v4514 = vpop.f32.mrf.mxu0
    %v4515 = vadd.f32 %v4456, %v4514
    %v4516 = vpop.f32.mrf.mxu0
    %v4517 = vadd.f32 %v4458, %v4516
    %4518 = vmatmul.bf16.gmra.mxu0 %v3734
    %v4519 = vpop.f32.mrf.mxu0
    %v4520 = vadd.f32 %v4461, %v4519
    %v4521 = vpop.f32.mrf.mxu0
    %v4522 = vadd.f32 %v4463, %v4521
    %4523 = vmatmul.bf16.gmra.mxu0 %v3749
    %v4524 = vpop.f32.mrf.mxu0
    %v4525 = vadd.f32 %v4466, %v4524
    %v4526 = vpop.f32.mrf.mxu0
    %v4527 = vadd.f32 %v4468, %v4526
    %4528 = vmatmul.bf16.gmra.mxu0 %v3755
    %v4529 = vpop.f32.mrf.mxu0
    %v4530 = vadd.f32 %v4471, %v4529
    %v4531 = vpop.f32.mrf.mxu0
    %v4532 = vadd.f32 %v4473, %v4531
    %4533 = vmatmul.bf16.gmra.mxu0 %v3761
    %v4534 = vpop.f32.mrf.mxu0
    %v4535 = vadd.f32 %v4476, %v4534
    %v4536 = vpop.f32.mrf.mxu0
    %v4537 = vadd.f32 %v4478, %v4536
    %4538 = vmatmul.bf16.gmra.mxu0 %v3767
    %v4539 = vpop.f32.mrf.mxu0
    %v4540 = vadd.f32 %v4481, %v4539
    %v4541 = vpop.f32.mrf.mxu0
    %v4542 = vadd.f32 %v4483, %v4541
    %4543 = vdwg.mxu0
    %4544 = vmatpush.bf16.msra.mxu0 %v4104
    %4545 = vmatpush.bf16.msra.mxu0 %v4102
    %4546 = vmatpush.bf16.msra.mxu0 %v4100
    %4547 = vmatpush.bf16.msra.mxu0 %v4098
    %4548 = vmatpush.bf16.msra.mxu0 %v4096
    %4549 = vmatpush.bf16.msra.mxu0 %v4094
    %4550 = vmatpush.bf16.msra.mxu0 %v4092
    %4551 = vmatpush.bf16.msra.mxu0 %v4090
    %4552 = vmatmul.bf16.gmra.mxu0 %v3725
    %v4553 = vpop.f32.mrf.mxu0
    %v4554 = vadd.f32 0.0, %v4553
    %v4555 = vpop.f32.mrf.mxu0
    %v4556 = vadd.f32 0.0, %v4555
    %4557 = vmatmul.bf16.gmra.mxu0 %v3726
    %v4558 = vpop.f32.mrf.mxu0
    %v4559 = vadd.f32 0.0, %v4558
    %v4560 = vpop.f32.mrf.mxu0
    %v4561 = vadd.f32 0.0, %v4560
    %4562 = vmatmul.bf16.gmra.mxu0 %v3727
    %v4563 = vpop.f32.mrf.mxu0
    %v4564 = vadd.f32 0.0, %v4563
    %v4565 = vpop.f32.mrf.mxu0
    %v4566 = vadd.f32 0.0, %v4565
    %4567 = vmatmul.bf16.gmra.mxu0 %v3728
    %v4568 = vpop.f32.mrf.mxu0
    %v4569 = vadd.f32 0.0, %v4568
    %v4570 = vpop.f32.mrf.mxu0
    %v4571 = vadd.f32 0.0, %v4570
    %4572 = vmatmul.bf16.gmra.mxu0 %v3729
    %v4573 = vpop.f32.mrf.mxu0
    %v4574 = vadd.f32 0.0, %v4573
    %v4575 = vpop.f32.mrf.mxu0
    %v4576 = vadd.f32 0.0, %v4575
    %4577 = vmatmul.bf16.gmra.mxu0 %v3730
    %v4578 = vpop.f32.mrf.mxu0
    %v4579 = vadd.f32 0.0, %v4578
    %v4580 = vpop.f32.mrf.mxu0
    %v4581 = vadd.f32 0.0, %v4580
    %4582 = vmatmul.bf16.gmra.mxu0 %v3731
    %v4583 = vpop.f32.mrf.mxu0
    %v4584 = vadd.f32 0.0, %v4583
    %v4585 = vpop.f32.mrf.mxu0
    %v4586 = vadd.f32 0.0, %v4585
    %4587 = vmatmul.bf16.gmra.mxu0 %v3732
    %v4588 = vpop.f32.mrf.mxu0
    %v4589 = vadd.f32 0.0, %v4588
    %v4590 = vpop.f32.mrf.mxu0
    %v4591 = vadd.f32 0.0, %v4590
    %4592 = vmatmul.bf16.gmra.mxu0 %v3733
    %v4593 = vpop.f32.mrf.mxu0
    %v4594 = vadd.f32 0.0, %v4593
    %v4595 = vpop.f32.mrf.mxu0
    %v4596 = vadd.f32 0.0, %v4595
    %4597 = vmatmul.bf16.gmra.mxu0 %v3734
    %v4598 = vpop.f32.mrf.mxu0
    %v4599 = vadd.f32 0.0, %v4598
    %v4600 = vpop.f32.mrf.mxu0
    %v4601 = vadd.f32 0.0, %v4600
    %4602 = vdwg.mxu0
    %4603 = vmatpush.bf16.msra.mxu0 %v4120
    %4604 = vmatpush.bf16.msra.mxu0 %v4118
    %4605 = vmatpush.bf16.msra.mxu0 %v4116
    %4606 = vmatpush.bf16.msra.mxu0 %v4114
    %4607 = vmatpush.bf16.msra.mxu0 %v4112
    %4608 = vmatpush.bf16.msra.mxu0 %v4110
    %4609 = vmatpush.bf16.msra.mxu0 %v4108
    %4610 = vmatpush.bf16.msra.mxu0 %v4106
    %4611 = vmatmul.bf16.gmra.mxu0 %v3726
    %v4612 = vpop.f32.mrf.mxu0
    %v4613 = vadd.f32 %v4554, %v4612
    %v4614 = vpop.f32.mrf.mxu0
    %v4615 = vadd.f32 %v4556, %v4614
    %4616 = vmatmul.bf16.gmra.mxu0 %v3727
    %v4617 = vpop.f32.mrf.mxu0
    %v4618 = vadd.f32 %v4559, %v4617
    %v4619 = vpop.f32.mrf.mxu0
    %v4620 = vadd.f32 %v4561, %v4619
    %4621 = vmatmul.bf16.gmra.mxu0 %v3728
    %v4622 = vpop.f32.mrf.mxu0
    %v4623 = vadd.f32 %v4564, %v4622
    %v4624 = vpop.f32.mrf.mxu0
    %v4625 = vadd.f32 %v4566, %v4624
    %4626 = vmatmul.bf16.gmra.mxu0 %v3729
    %v4627 = vpop.f32.mrf.mxu0
    %v4628 = vadd.f32 %v4569, %v4627
    %v4629 = vpop.f32.mrf.mxu0
    %v4630 = vadd.f32 %v4571, %v4629
    %4631 = vmatmul.bf16.gmra.mxu0 %v3730
    %v4632 = vpop.f32.mrf.mxu0
    %v4633 = vadd.f32 %v4574, %v4632
    %v4634 = vpop.f32.mrf.mxu0
    %v4635 = vadd.f32 %v4576, %v4634
    %4636 = vmatmul.bf16.gmra.mxu0 %v3731
    %v4637 = vpop.f32.mrf.mxu0
    %v4638 = vadd.f32 %v4579, %v4637
    %v4639 = vpop.f32.mrf.mxu0
    %v4640 = vadd.f32 %v4581, %v4639
    %4641 = vmatmul.bf16.gmra.mxu0 %v3732
    %v4642 = vpop.f32.mrf.mxu0
    %v4643 = vadd.f32 %v4584, %v4642
    %v4644 = vpop.f32.mrf.mxu0
    %v4645 = vadd.f32 %v4586, %v4644
    %4646 = vmatmul.bf16.gmra.mxu0 %v3733
    %v4647 = vpop.f32.mrf.mxu0
    %v4648 = vadd.f32 %v4589, %v4647
    %v4649 = vpop.f32.mrf.mxu0
    %v4650 = vadd.f32 %v4591, %v4649
    %4651 = vmatmul.bf16.gmra.mxu0 %v3734
    %v4652 = vpop.f32.mrf.mxu0
    %v4653 = vadd.f32 %v4594, %v4652
    %v4654 = vpop.f32.mrf.mxu0
    %v4655 = vadd.f32 %v4596, %v4654
    %4656 = vmatmul.bf16.gmra.mxu0 %v3749
    %v4657 = vpop.f32.mrf.mxu0
    %v4658 = vadd.f32 %v4599, %v4657
    %v4659 = vpop.f32.mrf.mxu0
    %v4660 = vadd.f32 %v4601, %v4659
    %4661 = vdwg.mxu0
    %4662 = vmatpush.bf16.msra.mxu0 %v4136
    %4663 = vmatpush.bf16.msra.mxu0 %v4134
    %4664 = vmatpush.bf16.msra.mxu0 %v4132
    %4665 = vmatpush.bf16.msra.mxu0 %v4130
    %4666 = vmatpush.bf16.msra.mxu0 %v4128
    %4667 = vmatpush.bf16.msra.mxu0 %v4126
    %4668 = vmatpush.bf16.msra.mxu0 %v4124
    %4669 = vmatpush.bf16.msra.mxu0 %v4122
    %4670 = vmatmul.bf16.gmra.mxu0 %v3727
    %v4671 = vpop.f32.mrf.mxu0
    %v4672 = vadd.f32 %v4613, %v4671
    %v4673 = vpop.f32.mrf.mxu0
    %v4674 = vadd.f32 %v4615, %v4673
    %4675 = vmatmul.bf16.gmra.mxu0 %v3728
    %v4676 = vpop.f32.mrf.mxu0
    %v4677 = vadd.f32 %v4618, %v4676
    %v4678 = vpop.f32.mrf.mxu0
    %v4679 = vadd.f32 %v4620, %v4678
    %4680 = vmatmul.bf16.gmra.mxu0 %v3729
    %v4681 = vpop.f32.mrf.mxu0
    %v4682 = vadd.f32 %v4623, %v4681
    %v4683 = vpop.f32.mrf.mxu0
    %v4684 = vadd.f32 %v4625, %v4683
    %4685 = vmatmul.bf16.gmra.mxu0 %v3730
    %v4686 = vpop.f32.mrf.mxu0
    %v4687 = vadd.f32 %v4628, %v4686
    %v4688 = vpop.f32.mrf.mxu0
    %v4689 = vadd.f32 %v4630, %v4688
    %4690 = vmatmul.bf16.gmra.mxu0 %v3731
    %v4691 = vpop.f32.mrf.mxu0
    %v4692 = vadd.f32 %v4633, %v4691
    %v4693 = vpop.f32.mrf.mxu0
    %v4694 = vadd.f32 %v4635, %v4693
    %4695 = vmatmul.bf16.gmra.mxu0 %v3732
    %v4696 = vpop.f32.mrf.mxu0
    %v4697 = vadd.f32 %v4638, %v4696
    %v4698 = vpop.f32.mrf.mxu0
    %v4699 = vadd.f32 %v4640, %v4698
    %4700 = vmatmul.bf16.gmra.mxu0 %v3733
    %v4701 = vpop.f32.mrf.mxu0
    %v4702 = vadd.f32 %v4643, %v4701
    %v4703 = vpop.f32.mrf.mxu0
    %v4704 = vadd.f32 %v4645, %v4703
    %4705 = vmatmul.bf16.gmra.mxu0 %v3734
    %v4706 = vpop.f32.mrf.mxu0
    %v4707 = vadd.f32 %v4648, %v4706
    %v4708 = vpop.f32.mrf.mxu0
    %v4709 = vadd.f32 %v4650, %v4708
    %4710 = vmatmul.bf16.gmra.mxu0 %v3749
    %v4711 = vpop.f32.mrf.mxu0
    %v4712 = vadd.f32 %v4653, %v4711
    %v4713 = vpop.f32.mrf.mxu0
    %v4714 = vadd.f32 %v4655, %v4713
    %4715 = vmatmul.bf16.gmra.mxu0 %v3755
    %v4716 = vpop.f32.mrf.mxu0
    %v4717 = vadd.f32 %v4658, %v4716
    %v4718 = vpop.f32.mrf.mxu0
    %v4719 = vadd.f32 %v4660, %v4718
    %4720 = vdwg.mxu0
    %4721 = vmatpush.bf16.msra.mxu0 %v4152
    %4722 = vmatpush.bf16.msra.mxu0 %v4150
    %4723 = vmatpush.bf16.msra.mxu0 %v4148
    %4724 = vmatpush.bf16.msra.mxu0 %v4146
    %4725 = vmatpush.bf16.msra.mxu0 %v4144
    %4726 = vmatpush.bf16.msra.mxu0 %v4142
    %4727 = vmatpush.bf16.msra.mxu0 %v4140
    %4728 = vmatpush.bf16.msra.mxu0 %v4138
    %4729 = vmatmul.bf16.gmra.mxu0 %v3728
    %v4730 = vpop.f32.mrf.mxu0
    %v4731 = vadd.f32 %v4672, %v4730
    %v4732 = vpop.f32.mrf.mxu0
    %v4733 = vadd.f32 %v4674, %v4732
    %4734 = vmatmul.bf16.gmra.mxu0 %v3729
    %v4735 = vpop.f32.mrf.mxu0
    %v4736 = vadd.f32 %v4677, %v4735
    %v4737 = vpop.f32.mrf.mxu0
    %v4738 = vadd.f32 %v4679, %v4737
    %4739 = vmatmul.bf16.gmra.mxu0 %v3730
    %v4740 = vpop.f32.mrf.mxu0
    %v4741 = vadd.f32 %v4682, %v4740
    %v4742 = vpop.f32.mrf.mxu0
    %v4743 = vadd.f32 %v4684, %v4742
    %4744 = vmatmul.bf16.gmra.mxu0 %v3731
    %v4745 = vpop.f32.mrf.mxu0
    %v4746 = vadd.f32 %v4687, %v4745
    %v4747 = vpop.f32.mrf.mxu0
    %v4748 = vadd.f32 %v4689, %v4747
    %4749 = vmatmul.bf16.gmra.mxu0 %v3732
    %v4750 = vpop.f32.mrf.mxu0
    %v4751 = vadd.f32 %v4692, %v4750
    %v4752 = vpop.f32.mrf.mxu0
    %v4753 = vadd.f32 %v4694, %v4752
    %4754 = vmatmul.bf16.gmra.mxu0 %v3733
    %v4755 = vpop.f32.mrf.mxu0
    %v4756 = vadd.f32 %v4697, %v4755
    %v4757 = vpop.f32.mrf.mxu0
    %v4758 = vadd.f32 %v4699, %v4757
    %4759 = vmatmul.bf16.gmra.mxu0 %v3734
    %v4760 = vpop.f32.mrf.mxu0
    %v4761 = vadd.f32 %v4702, %v4760
    %v4762 = vpop.f32.mrf.mxu0
    %v4763 = vadd.f32 %v4704, %v4762
    %4764 = vmatmul.bf16.gmra.mxu0 %v3749
    %v4765 = vpop.f32.mrf.mxu0
    %v4766 = vadd.f32 %v4707, %v4765
    %v4767 = vpop.f32.mrf.mxu0
    %v4768 = vadd.f32 %v4709, %v4767
    %4769 = vmatmul.bf16.gmra.mxu0 %v3755
    %v4770 = vpop.f32.mrf.mxu0
    %v4771 = vadd.f32 %v4712, %v4770
    %v4772 = vpop.f32.mrf.mxu0
    %v4773 = vadd.f32 %v4714, %v4772
    %4774 = vmatmul.bf16.gmra.mxu0 %v3761
    %v4775 = vpop.f32.mrf.mxu0
    %v4776 = vadd.f32 %v4717, %v4775
    %v4777 = vpop.f32.mrf.mxu0
    %v4778 = vadd.f32 %v4719, %v4777
    %4779 = vdwg.mxu0
    %4780 = vmatpush.bf16.msra.mxu0 %v4168
    %4781 = vmatpush.bf16.msra.mxu0 %v4166
    %4782 = vmatpush.bf16.msra.mxu0 %v4164
    %4783 = vmatpush.bf16.msra.mxu0 %v4162
    %4784 = vmatpush.bf16.msra.mxu0 %v4160
    %4785 = vmatpush.bf16.msra.mxu0 %v4158
    %4786 = vmatpush.bf16.msra.mxu0 %v4156
    %4787 = vmatpush.bf16.msra.mxu0 %v4154
    %4788 = vmatmul.bf16.gmra.mxu0 %v3729
    %v4789 = vpop.f32.mrf.mxu0
    %v4790 = vadd.f32 %v4731, %v4789
    %v4791 = vpop.f32.mrf.mxu0
    %v4792 = vadd.f32 %v4733, %v4791
    %4793 = vmatmul.bf16.gmra.mxu0 %v3730
    %v4794 = vpop.f32.mrf.mxu0
    %v4795 = vadd.f32 %v4736, %v4794
    %v4796 = vpop.f32.mrf.mxu0
    %v4797 = vadd.f32 %v4738, %v4796
    %4798 = vmatmul.bf16.gmra.mxu0 %v3731
    %v4799 = vpop.f32.mrf.mxu0
    %v4800 = vadd.f32 %v4741, %v4799
    %v4801 = vpop.f32.mrf.mxu0
    %v4802 = vadd.f32 %v4743, %v4801
    %4803 = vmatmul.bf16.gmra.mxu0 %v3732
    %v4804 = vpop.f32.mrf.mxu0
    %v4805 = vadd.f32 %v4746, %v4804
    %v4806 = vpop.f32.mrf.mxu0
    %v4807 = vadd.f32 %v4748, %v4806
    %4808 = vmatmul.bf16.gmra.mxu0 %v3733
    %v4809 = vpop.f32.mrf.mxu0
    %v4810 = vadd.f32 %v4751, %v4809
    %v4811 = vpop.f32.mrf.mxu0
    %v4812 = vadd.f32 %v4753, %v4811
    %4813 = vmatmul.bf16.gmra.mxu0 %v3734
    %v4814 = vpop.f32.mrf.mxu0
    %v4815 = vadd.f32 %v4756, %v4814
    %v4816 = vpop.f32.mrf.mxu0
    %v4817 = vadd.f32 %v4758, %v4816
    %4818 = vmatmul.bf16.gmra.mxu0 %v3749
    %v4819 = vpop.f32.mrf.mxu0
    %v4820 = vadd.f32 %v4761, %v4819
    %v4821 = vpop.f32.mrf.mxu0
    %v4822 = vadd.f32 %v4763, %v4821
    %4823 = vmatmul.bf16.gmra.mxu0 %v3755
    %v4824 = vpop.f32.mrf.mxu0
    %v4825 = vadd.f32 %v4766, %v4824
    %v4826 = vpop.f32.mrf.mxu0
    %v4827 = vadd.f32 %v4768, %v4826
    %4828 = vmatmul.bf16.gmra.mxu0 %v3761
    %v4829 = vpop.f32.mrf.mxu0
    %v4830 = vadd.f32 %v4771, %v4829
    %v4831 = vpop.f32.mrf.mxu0
    %v4832 = vadd.f32 %v4773, %v4831
    %4833 = vmatmul.bf16.gmra.mxu0 %v3767
    %v4834 = vpop.f32.mrf.mxu0
    %v4835 = vadd.f32 %v4776, %v4834
    %v4836 = vpop.f32.mrf.mxu0
    %v4837 = vadd.f32 %v4778, %v4836
    %4838 = vdwg.mxu0
    %v4839 = vmax.f32 %v4495, %v4790
    %v4840 = vmax.f32 %v4497, %v4792
    %v4841 = vmax.f32 %v4500, %v4795
    %v4842 = vmax.f32 %v4502, %v4797
    %v4843 = vmax.f32 %v4505, %v4800
    %v4844 = vmax.f32 %v4507, %v4802
    %v4845 = vmax.f32 %v4510, %v4805
    %v4846 = vmax.f32 %v4512, %v4807
    %v4847 = vmax.f32 %v4515, %v4810
    %v4848 = vmax.f32 %v4517, %v4812
    %v4849 = vmax.f32 %v4520, %v4815
    %v4850 = vmax.f32 %v4522, %v4817
    %v4851 = vmax.f32 %v4525, %v4820
    %v4852 = vmax.f32 %v4527, %v4822
    %v4853 = vmax.f32 %v4530, %v4825
    %v4854 = vmax.f32 %v4532, %v4827
    %v4855 = vmax.f32 %v4535, %v4830
    %v4856 = vmax.f32 %v4537, %v4832
    %v4857 = vmax.f32 %v4540, %v4835
    %v4858 = vmax.f32 %v4542, %v4837
    %v4859 = vld [vmem:[%s4] sm:$0x1]
    %v4861 = vperm.slane %v4859, 0
    %v4863 = vadd.f32 %v4839, %v4861
    %v4864 = vadd.f32 %v4840, %v4861
    %v4865 = vadd.f32 %v4841, %v4861
    %v4866 = vadd.f32 %v4842, %v4861
    %v4867 = vadd.f32 %v4843, %v4861
    %v4868 = vadd.f32 %v4844, %v4861
    %v4869 = vadd.f32 %v4845, %v4861
    %v4870 = vadd.f32 %v4846, %v4861
    %v4871 = vadd.f32 %v4847, %v4861
    %v4872 = vadd.f32 %v4848, %v4861
    %v4873 = vadd.f32 %v4849, %v4861
    %v4874 = vadd.f32 %v4850, %v4861
    %v4875 = vadd.f32 %v4851, %v4861
    %v4876 = vadd.f32 %v4852, %v4861
    %v4877 = vadd.f32 %v4853, %v4861
    %v4878 = vadd.f32 %v4854, %v4861
    %v4879 = vadd.f32 %v4855, %v4861
    %v4880 = vadd.f32 %v4856, %v4861
    %v4881 = vadd.f32 %v4857, %v4861
    %v4882 = vadd.f32 %v4858, %v4861
    %v4883 = vmax.f32 %v4863, 0.0
    %v4884 = vmax.f32 %v4864, 0.0
    %v4885 = vmax.f32 %v4865, 0.0
    %v4886 = vmax.f32 %v4866, 0.0
    %v4887 = vmax.f32 %v4867, 0.0
    %v4888 = vmax.f32 %v4868, 0.0
    %v4889 = vmax.f32 %v4869, 0.0
    %v4890 = vmax.f32 %v4870, 0.0
    %v4891 = vmax.f32 %v4871, 0.0
    %v4892 = vmax.f32 %v4872, 0.0
    %v4893 = vmax.f32 %v4873, 0.0
    %v4894 = vmax.f32 %v4874, 0.0
    %v4895 = vmax.f32 %v4875, 0.0
    %v4896 = vmax.f32 %v4876, 0.0
    %v4897 = vmax.f32 %v4877, 0.0
    %v4898 = vmax.f32 %v4878, 0.0
    %v4899 = vmax.f32 %v4879, 0.0
    %v4900 = vmax.f32 %v4880, 0.0
    %v4901 = vmax.f32 %v4881, 0.0
    %v4902 = vmax.f32 %v4882, 0.0
    %v4903 = vmax.f32 %v4883, %v4885
    %v4904 = vmax.f32 %v4884, %v4886
    %v4905 = vpack.c.bf16 %v4903, %v4903
    %v4906 = vpack.c.bf16 %v4904, %v4904
    %v4907 = vmax.f32 %v4887, %v4889
    %v4908 = vmax.f32 %v4888, %v4890
    %v4909 = vpack.c.bf16 %v4907, %v4907
    %v4910 = vpack.c.bf16 %v4908, %v4908
    %v4911 = vmax.f32 %v4891, %v4893
    %v4912 = vmax.f32 %v4892, %v4894
    %v4913 = vpack.c.bf16 %v4911, %v4911
    %v4914 = vpack.c.bf16 %v4912, %v4912
    %v4915 = vmax.f32 %v4895, %v4897
    %v4916 = vmax.f32 %v4896, %v4898
    %v4917 = vpack.c.bf16 %v4915, %v4915
    %v4918 = vpack.c.bf16 %v4916, %v4916
    %v4919 = vmax.f32 %v4899, %v4901
    %v4920 = vmax.f32 %v4900, %v4902
    %v4921 = vpack.c.bf16 %v4919, %v4919
    %v4922 = vpack.c.bf16 %v4920, %v4920
    %v4925 = vunpack.c.l.b16 %v4905
    %v4926 = vunpack.c.l.b16 %v4906
    %v4927 = vpack.c.b16 %v4926, %v4925
    %v4931 = vunpack.c.l.b16 %v4909
    %v4932 = vunpack.c.l.b16 %v4910
    %v4933 = vpack.c.b16 %v4932, %v4931
    %v4937 = vunpack.c.l.b16 %v4913
    %v4938 = vunpack.c.l.b16 %v4914
    %v4939 = vpack.c.b16 %v4938, %v4937
    %v4943 = vunpack.c.l.b16 %v4917
    %v4944 = vunpack.c.l.b16 %v4918
    %v4945 = vpack.c.b16 %v4944, %v4943
    %v4949 = vunpack.c.l.b16 %v4921
    %v4950 = vunpack.c.l.b16 %v4922
    %v4951 = vpack.c.b16 %v4950, %v4949
    %v4953 = vld [vmem:[%s5] sm:$0xf]
    %v4954 = vld [vmem:[%s5 + $0x4] sm:$0xf]
    %v4955 = vld [vmem:[%s5 + $0x8] sm:$0xf]
    %v4956 = vld [vmem:[%s5 + $0xc] sm:$0xf]
    %v4957 = vld [vmem:[%s5 + $0x10] sm:$0xf]
    %v4958 = vld [vmem:[%s5 + $0x14] sm:$0xf]
    %v4959 = vld [vmem:[%s5 + $0x18] sm:$0xf]
    %v4960 = vld [vmem:[%s5 + $0x1c] sm:$0xf]
    %v4961 = vld [vmem:[%s5 + $0x20] sm:$0xf]
    %v4962 = vld [vmem:[%s5 + $0x24] sm:$0xf]
    %v4963 = vld [vmem:[%s5 + $0x28] sm:$0xf]
    %v4964 = vld [vmem:[%s5 + $0x2c] sm:$0xf]
    %v4965 = vld [vmem:[%s5 + $0x30] sm:$0xf]
    %v4966 = vld [vmem:[%s5 + $0x34] sm:$0xf]
    %v4967 = vld [vmem:[%s5 + $0x38] sm:$0xf]
    %v4968 = vld [vmem:[%s5 + $0x3c] sm:$0xf]
    %v4969 = vld [vmem:[%s5 + $0x40] sm:$0xf]
    %v4970 = vld [vmem:[%s5 + $0x44] sm:$0xf]
    %v4971 = vld [vmem:[%s5 + $0x48] sm:$0xf]
    %v4972 = vld [vmem:[%s5 + $0x4c] sm:$0xf]
    %v4973 = vld [vmem:[%s5 + $0x50] sm:$0xf]
    %v4974 = vld [vmem:[%s5 + $0x54] sm:$0xf]
    %v4975 = vld [vmem:[%s5 + $0x58] sm:$0xf]
    %v4976 = vld [vmem:[%s5 + $0x5c] sm:$0xf]
    %v4977 = vld [vmem:[%s5 + $0x60] sm:$0xf]
    %v4978 = vld [vmem:[%s5 + $0x64] sm:$0xf]
    %v4979 = vld [vmem:[%s5 + $0x68] sm:$0xf]
    %v4980 = vld [vmem:[%s5 + $0x6c] sm:$0xf]
    %v4981 = vld [vmem:[%s5 + $0x70] sm:$0xf]
    %v4982 = vld [vmem:[%s5 + $0x74] sm:$0xf]
    %v4983 = vld [vmem:[%s5 + $0x78] sm:$0xf]
    %v4984 = vld [vmem:[%s5 + $0x7c] sm:$0xf]
    %v4985 = vld [vmem:[%s5 + $0x80] sm:$0xf]
    %v4986 = vld [vmem:[%s5 + $0x84] sm:$0xf]
    %v4987 = vld [vmem:[%s5 + $0x88] sm:$0xf]
    %v4988 = vld [vmem:[%s5 + $0x8c] sm:$0xf]
    %v4989 = vld [vmem:[%s5 + $0x90] sm:$0xf]
    %v4990 = vld [vmem:[%s5 + $0x94] sm:$0xf]
    %v4991 = vld [vmem:[%s5 + $0x98] sm:$0xf]
    %v4992 = vld [vmem:[%s5 + $0x9c] sm:$0xf]
    %v4993 = vld [vmem:[%s5 + $0xa0] sm:$0xf]
    %v4994 = vld [vmem:[%s5 + $0xa4] sm:$0xf]
    %v4995 = vld [vmem:[%s5 + $0xa8] sm:$0xf]
    %v4996 = vld [vmem:[%s5 + $0xac] sm:$0xf]
    %v4997 = vld [vmem:[%s5 + $0xb0] sm:$0xf]
    %v4998 = vld [vmem:[%s5 + $0xb4] sm:$0xf]
    %v4999 = vld [vmem:[%s5 + $0xb8] sm:$0xf]
    %v5000 = vld [vmem:[%s5 + $0xbc] sm:$0xf]
    %v5001 = vld [vmem:[%s5 + $0xc0] sm:$0xf]
    %v5002 = vld [vmem:[%s5 + $0xc4] sm:$0xf]
    %v5003 = vld [vmem:[%s5 + $0xc8] sm:$0xf]
    %v5004 = vld [vmem:[%s5 + $0xcc] sm:$0xf]
    %v5005 = vld [vmem:[%s5 + $0xd0] sm:$0xf]
    %v5006 = vld [vmem:[%s5 + $0xd4] sm:$0xf]
    %v5007 = vld [vmem:[%s5 + $0xd8] sm:$0xf]
    %v5008 = vld [vmem:[%s5 + $0xdc] sm:$0xf]
    %v5009 = vld [vmem:[%s5 + $0xe0] sm:$0xf]
    %v5010 = vld [vmem:[%s5 + $0xe4] sm:$0xf]
    %v5011 = vld [vmem:[%s5 + $0xe8] sm:$0xf]
    %v5012 = vld [vmem:[%s5 + $0xec] sm:$0xf]
    %v5013 = vld [vmem:[%s5 + $0xf0] sm:$0xf]
    %v5014 = vld [vmem:[%s5 + $0xf4] sm:$0xf]
    %v5015 = vld [vmem:[%s5 + $0xf8] sm:$0xf]
    %v5016 = vld [vmem:[%s5 + $0xfc] sm:$0xf]
    %v5017 = vld [vmem:[%s5 + $0x100] sm:$0xf]
    %v5018 = vld [vmem:[%s5 + $0x104] sm:$0xf]
    %v5019 = vld [vmem:[%s5 + $0x108] sm:$0xf]
    %v5020 = vld [vmem:[%s5 + $0x10c] sm:$0xf]
    %v5021 = vld [vmem:[%s5 + $0x110] sm:$0xf]
    %v5022 = vld [vmem:[%s5 + $0x114] sm:$0xf]
    %v5023 = vld [vmem:[%s5 + $0x118] sm:$0xf]
    %v5024 = vld [vmem:[%s5 + $0x11c] sm:$0xf]
    %v5025 = vld [vmem:[%s5 + $0x120] sm:$0xf]
    %v5026 = vld [vmem:[%s5 + $0x124] sm:$0xf]
    %v5027 = vld [vmem:[%s5 + $0x128] sm:$0xf]
    %v5028 = vld [vmem:[%s5 + $0x12c] sm:$0xf]
    %v5029 = vld [vmem:[%s5 + $0x130] sm:$0xf]
    %v5030 = vld [vmem:[%s5 + $0x134] sm:$0xf]
    %v5031 = vld [vmem:[%s5 + $0x138] sm:$0xf]
    %v5032 = vld [vmem:[%s5 + $0x13c] sm:$0xf]
    %v5033 = vld [vmem:[%s6] sm:$0x1]
    %v5035 = vperm.slane %v5033, 0
    %v5117 = vunpack.c.l.b16 %v4953
    %v5118 = vunpack.c.l.b16 %v4954
    %v5119 = vunpack.c.l.b16 %v4955
    %v5120 = vunpack.c.l.b16 %v4956
    %v5121 = vunpack.c.l.b16 %v4957
    %v5122 = vunpack.c.l.b16 %v4958
    %v5123 = vunpack.c.l.b16 %v4959
    %v5124 = vunpack.c.l.b16 %v4960
    %v5125 = vunpack.c.l.b16 %v4961
    %v5126 = vunpack.c.l.b16 %v4962
    %v5127 = vunpack.c.l.b16 %v4963
    %v5128 = vunpack.c.l.b16 %v4964
    %v5129 = vunpack.c.l.b16 %v4965
    %v5130 = vunpack.c.l.b16 %v4966
    %v5131 = vunpack.c.l.b16 %v4967
    %v5132 = vunpack.c.l.b16 %v4968
    %v5133 = vunpack.c.l.b16 %v4969
    %v5134 = vunpack.c.l.b16 %v4970
    %v5135 = vunpack.c.l.b16 %v4971
    %v5136 = vunpack.c.l.b16 %v4972
    %v5137 = vunpack.c.l.b16 %v4973
    %v5138 = vunpack.c.l.b16 %v4974
    %v5139 = vunpack.c.l.b16 %v4975
    %v5140 = vunpack.c.l.b16 %v4976
    %v5141 = vunpack.c.l.b16 %v4977
    %v5142 = vunpack.c.l.b16 %v4978
    %v5143 = vunpack.c.l.b16 %v4979
    %v5144 = vunpack.c.l.b16 %v4980
    %v5145 = vunpack.c.l.b16 %v4981
    %v5146 = vunpack.c.l.b16 %v4982
    %v5147 = vunpack.c.l.b16 %v4983
    %v5148 = vunpack.c.l.b16 %v4984
    %v5149 = vunpack.c.l.b16 %v4985
    %v5150 = vunpack.c.l.b16 %v4986
    %v5151 = vunpack.c.l.b16 %v4987
    %v5152 = vunpack.c.l.b16 %v4988
    %v5153 = vunpack.c.l.b16 %v4989
    %v5154 = vunpack.c.l.b16 %v4990
    %v5155 = vunpack.c.l.b16 %v4991
    %v5156 = vunpack.c.l.b16 %v4992
    %v5157 = vunpack.c.l.b16 %v4993
    %v5158 = vunpack.c.l.b16 %v4994
    %v5159 = vunpack.c.l.b16 %v4995
    %v5160 = vunpack.c.l.b16 %v4996
    %v5161 = vunpack.c.l.b16 %v4997
    %v5162 = vunpack.c.l.b16 %v4998
    %v5163 = vunpack.c.l.b16 %v4999
    %v5164 = vunpack.c.l.b16 %v5000
    %v5165 = vunpack.c.l.b16 %v5001
    %v5166 = vunpack.c.l.b16 %v5002
    %v5167 = vunpack.c.l.b16 %v5003
    %v5168 = vunpack.c.l.b16 %v5004
    %v5169 = vunpack.c.l.b16 %v5005
    %v5170 = vunpack.c.l.b16 %v5006
    %v5171 = vunpack.c.l.b16 %v5007
    %v5172 = vunpack.c.l.b16 %v5008
    %v5173 = vunpack.c.l.b16 %v5009
    %v5174 = vunpack.c.l.b16 %v5010
    %v5175 = vunpack.c.l.b16 %v5011
    %v5176 = vunpack.c.l.b16 %v5012
    %v5177 = vunpack.c.l.b16 %v5013
    %v5178 = vunpack.c.l.b16 %v5014
    %v5179 = vunpack.c.l.b16 %v5015
    %v5180 = vunpack.c.l.b16 %v5016
    %v5181 = vunpack.c.l.b16 %v5017
    %v5182 = vunpack.c.l.b16 %v5018
    %v5183 = vunpack.c.l.b16 %v5019
    %v5184 = vunpack.c.l.b16 %v5020
    %v5185 = vunpack.c.l.b16 %v5021
    %v5186 = vunpack.c.l.b16 %v5022
    %v5187 = vunpack.c.l.b16 %v5023
    %v5188 = vunpack.c.l.b16 %v5024
    %v5189 = vunpack.c.l.b16 %v5025
    %v5190 = vunpack.c.l.b16 %v5026
    %v5191 = vunpack.c.l.b16 %v5027
    %v5192 = vunpack.c.l.b16 %v5028
    %v5193 = vunpack.c.l.b16 %v5029
    %v5194 = vunpack.c.l.b16 %v5030
    %v5195 = vunpack.c.l.b16 %v5031
    %v5196 = vunpack.c.l.b16 %v5032
    %v5197 = vpack.c.b16 %v5118, %v5117
    %v5198 = vpack.c.b16 %v5120, %v5119
    %v5199 = vpack.c.b16 %v5122, %v5121
    %v5200 = vpack.c.b16 %v5124, %v5123
    %v5201 = vpack.c.b16 %v5126, %v5125
    %v5202 = vpack.c.b16 %v5128, %v5127
    %v5203 = vpack.c.b16 %v5130, %v5129
    %v5204 = vpack.c.b16 %v5132, %v5131
    %v5205 = vpack.c.b16 %v5134, %v5133
    %v5206 = vpack.c.b16 %v5136, %v5135
    %v5207 = vpack.c.b16 %v5138, %v5137
    %v5208 = vpack.c.b16 %v5140, %v5139
    %v5209 = vpack.c.b16 %v5142, %v5141
    %v5210 = vpack.c.b16 %v5144, %v5143
    %v5211 = vpack.c.b16 %v5146, %v5145
    %v5212 = vpack.c.b16 %v5148, %v5147
    %v5213 = vpack.c.b16 %v5150, %v5149
    %v5214 = vpack.c.b16 %v5152, %v5151
    %v5215 = vpack.c.b16 %v5154, %v5153
    %v5216 = vpack.c.b16 %v5156, %v5155
    %v5217 = vpack.c.b16 %v5158, %v5157
    %v5218 = vpack.c.b16 %v5160, %v5159
    %v5219 = vpack.c.b16 %v5162, %v5161
    %v5220 = vpack.c.b16 %v5164, %v5163
    %v5221 = vpack.c.b16 %v5166, %v5165
    %v5222 = vpack.c.b16 %v5168, %v5167
    %v5223 = vpack.c.b16 %v5170, %v5169
    %v5224 = vpack.c.b16 %v5172, %v5171
    %v5225 = vpack.c.b16 %v5174, %v5173
    %v5226 = vpack.c.b16 %v5176, %v5175
    %v5227 = vpack.c.b16 %v5178, %v5177
    %v5228 = vpack.c.b16 %v5180, %v5179
    %v5229 = vpack.c.b16 %v5182, %v5181
    %v5230 = vpack.c.b16 %v5184, %v5183
    %v5231 = vpack.c.b16 %v5186, %v5185
    %v5232 = vpack.c.b16 %v5188, %v5187
    %v5233 = vpack.c.b16 %v5190, %v5189
    %v5234 = vpack.c.b16 %v5192, %v5191
    %v5235 = vpack.c.b16 %v5194, %v5193
    %v5236 = vpack.c.b16 %v5196, %v5195
    %5277 = vmatpush.bf16.msra.mxu0 %v5204
    %5278 = vmatpush.bf16.msra.mxu0 %v5203
    %5279 = vmatpush.bf16.msra.mxu0 %v5202
    %5280 = vmatpush.bf16.msra.mxu0 %v5201
    %5281 = vmatpush.bf16.msra.mxu0 %v5200
    %5282 = vmatpush.bf16.msra.mxu0 %v5199
    %5283 = vmatpush.bf16.msra.mxu0 %v5198
    %5284 = vmatpush.bf16.msra.mxu0 %v5197
    %5285 = vmatmul.bf16.gmra.mxu0 %v4927
    %v5286 = vpop.f32.mrf.mxu0
    %v5287 = vadd.f32 %v5035, %v5286
    %v5288 = vpop.f32.mrf.mxu0
    %v5289 = vadd.f32 %v5035, %v5288
    %5290 = vdwg.mxu0
    %5291 = vmatpush.bf16.msra.mxu0 %v5212
    %5292 = vmatpush.bf16.msra.mxu0 %v5211
    %5293 = vmatpush.bf16.msra.mxu0 %v5210
    %5294 = vmatpush.bf16.msra.mxu0 %v5209
    %5295 = vmatpush.bf16.msra.mxu0 %v5208
    %5296 = vmatpush.bf16.msra.mxu0 %v5207
    %5297 = vmatpush.bf16.msra.mxu0 %v5206
    %5298 = vmatpush.bf16.msra.mxu0 %v5205
    %5299 = vmatmul.bf16.gmra.mxu0 %v4933
    %v5300 = vpop.f32.mrf.mxu0
    %v5301 = vadd.f32 %v5287, %v5300
    %v5302 = vpop.f32.mrf.mxu0
    %v5303 = vadd.f32 %v5289, %v5302
    %5304 = vdwg.mxu0
    %5305 = vmatpush.bf16.msra.mxu0 %v5220
    %5306 = vmatpush.bf16.msra.mxu0 %v5219
    %5307 = vmatpush.bf16.msra.mxu0 %v5218
    %5308 = vmatpush.bf16.msra.mxu0 %v5217
    %5309 = vmatpush.bf16.msra.mxu0 %v5216
    %5310 = vmatpush.bf16.msra.mxu0 %v5215
    %5311 = vmatpush.bf16.msra.mxu0 %v5214
    %5312 = vmatpush.bf16.msra.mxu0 %v5213
    %5313 = vmatmul.bf16.gmra.mxu0 %v4939
    %v5314 = vpop.f32.mrf.mxu0
    %v5315 = vadd.f32 %v5301, %v5314
    %v5316 = vpop.f32.mrf.mxu0
    %v5317 = vadd.f32 %v5303, %v5316
    %5318 = vdwg.mxu0
    %5319 = vmatpush.bf16.msra.mxu0 %v5228
    %5320 = vmatpush.bf16.msra.mxu0 %v5227
    %5321 = vmatpush.bf16.msra.mxu0 %v5226
    %5322 = vmatpush.bf16.msra.mxu0 %v5225
    %5323 = vmatpush.bf16.msra.mxu0 %v5224
    %5324 = vmatpush.bf16.msra.mxu0 %v5223
    %5325 = vmatpush.bf16.msra.mxu0 %v5222
    %5326 = vmatpush.bf16.msra.mxu0 %v5221
    %5327 = vmatmul.bf16.gmra.mxu0 %v4945
    %v5328 = vpop.f32.mrf.mxu0
    %v5329 = vadd.f32 %v5315, %v5328
    %v5330 = vpop.f32.mrf.mxu0
    %v5331 = vadd.f32 %v5317, %v5330
    %5332 = vdwg.mxu0
    %5333 = vmatpush.bf16.msra.mxu0 %v5236
    %5334 = vmatpush.bf16.msra.mxu0 %v5235
    %5335 = vmatpush.bf16.msra.mxu0 %v5234
    %5336 = vmatpush.bf16.msra.mxu0 %v5233
    %5337 = vmatpush.bf16.msra.mxu0 %v5232
    %5338 = vmatpush.bf16.msra.mxu0 %v5231
    %5339 = vmatpush.bf16.msra.mxu0 %v5230
    %5340 = vmatpush.bf16.msra.mxu0 %v5229
    %5341 = vmatmul.bf16.gmra.mxu0 %v4951
    %v5342 = vpop.f32.mrf.mxu0
    %v5343 = vadd.f32 %v5329, %v5342
    %v5344 = vpop.f32.mrf.mxu0
    %v5345 = vadd.f32 %v5331, %v5344
    %5346 = vdwg.mxu0
    %v5347 = vmax.f32 %v5343, 0.0
    %v5348 = vmax.f32 %v5345, 0.0
    %v5349 = vpack.c.bf16 %v5348, %v5347
    %v5350 = vld [vmem:[#allocation6] sm:$0xf]
    %v5351 = vld [vmem:[#allocation6 + $0x4] sm:$0xf]
    %v5352 = vld [vmem:[#allocation6 + $0x8] sm:$0xf]
    %v5353 = vld [vmem:[#allocation6 + $0xc] sm:$0xf]
    %v5354 = vld [vmem:[#allocation6 + $0x10] sm:$0xf]
    %v5355 = vld [vmem:[#allocation6 + $0x14] sm:$0xf]
    %v5356 = vld [vmem:[#allocation6 + $0x18] sm:$0xf]
    %v5357 = vld [vmem:[#allocation6 + $0x1c] sm:$0xf]
    %v5358 = vld [vmem:[#allocation6 + $0x20] sm:$0xf]
    %v5359 = vld [vmem:[#allocation6 + $0x24] sm:$0xf]
    %v5360 = vld [vmem:[#allocation6 + $0x28] sm:$0xf]
    %v5361 = vld [vmem:[#allocation6 + $0x2c] sm:$0xf]
    %v5362 = vld [vmem:[#allocation6 + $0x30] sm:$0xf]
    %v5363 = vld [vmem:[#allocation6 + $0x34] sm:$0xf]
    %v5364 = vld [vmem:[#allocation6 + $0x38] sm:$0xf]
    %v5365 = vld [vmem:[#allocation6 + $0x3c] sm:$0xf]
    %v5366 = vld [vmem:[%s8] sm:$0x1]
    %v5368 = vperm.slane %v5366, 0
    %v5386 = vunpack.c.l.b16 %v5350
    %v5387 = vunpack.c.l.b16 %v5351
    %v5388 = vunpack.c.l.b16 %v5352
    %v5389 = vunpack.c.l.b16 %v5353
    %v5390 = vunpack.c.l.b16 %v5354
    %v5391 = vunpack.c.l.b16 %v5355
    %v5392 = vunpack.c.l.b16 %v5356
    %v5393 = vunpack.c.l.b16 %v5357
    %v5394 = vunpack.c.l.b16 %v5358
    %v5395 = vunpack.c.l.b16 %v5359
    %v5396 = vunpack.c.l.b16 %v5360
    %v5397 = vunpack.c.l.b16 %v5361
    %v5398 = vunpack.c.l.b16 %v5362
    %v5399 = vunpack.c.l.b16 %v5363
    %v5400 = vunpack.c.l.b16 %v5364
    %v5401 = vunpack.c.l.b16 %v5365
    %v5402 = vpack.c.b16 %v5387, %v5386
    %v5403 = vpack.c.b16 %v5389, %v5388
    %v5404 = vpack.c.b16 %v5391, %v5390
    %v5405 = vpack.c.b16 %v5393, %v5392
    %v5406 = vpack.c.b16 %v5395, %v5394
    %v5407 = vpack.c.b16 %v5397, %v5396
    %v5408 = vpack.c.b16 %v5399, %v5398
    %v5409 = vpack.c.b16 %v5401, %v5400
    %5418 = vmatpush.bf16.msra.mxu0 %v5409
    %5419 = vmatpush.bf16.msra.mxu0 %v5408
    %5420 = vmatpush.bf16.msra.mxu0 %v5407
    %5421 = vmatpush.bf16.msra.mxu0 %v5406
    %5422 = vmatpush.bf16.msra.mxu0 %v5405
    %5423 = vmatpush.bf16.msra.mxu0 %v5404
    %5424 = vmatpush.bf16.msra.mxu0 %v5403
    %5425 = vmatpush.bf16.msra.mxu0 %v5402
    %5426 = vmatmul.bf16.gmra.mxu0 %v5349
    %v5427 = vpop.f32.mrf.mxu0
    %v5428 = vadd.f32 %v5368, %v5427
    %v5429 = vpop.f32.mrf.mxu0
    %v5430 = vadd.f32 %v5368, %v5429
    %5431 = vdwg.mxu0
    %v5432 = vmax.f32 %v5428, 0.0
    %v5433 = vmax.f32 %v5430, 0.0
    %v5434 = vpack.c.bf16 %v5433, %v5432
    %v5435 = vld [vmem:[#allocation7] sm:$0xf]
    %v5436 = vld [vmem:[#allocation7 + $0x4] sm:$0xf]
    %v5437 = vld [vmem:[#allocation7 + $0x8] sm:$0xf]
    %v5438 = vld [vmem:[#allocation7 + $0xc] sm:$0xf]
    %v5439 = vld [vmem:[#allocation7 + $0x10] sm:$0xf]
    %v5440 = vld [vmem:[#allocation7 + $0x14] sm:$0xf]
    %v5441 = vld [vmem:[#allocation7 + $0x18] sm:$0xf]
    %v5442 = vld [vmem:[#allocation7 + $0x1c] sm:$0xf]
    %v5443 = vld [vmem:[#allocation7 + $0x20] sm:$0xf]
    %v5444 = vld [vmem:[#allocation7 + $0x24] sm:$0xf]
    %v5445 = vld [vmem:[#allocation7 + $0x28] sm:$0xf]
    %v5446 = vld [vmem:[#allocation7 + $0x2c] sm:$0xf]
    %v5447 = vld [vmem:[#allocation7 + $0x30] sm:$0xf]
    %v5448 = vld [vmem:[#allocation7 + $0x34] sm:$0xf]
    %v5449 = vld [vmem:[#allocation7 + $0x38] sm:$0xf]
    %v5450 = vld [vmem:[#allocation7 + $0x3c] sm:$0xf]
    %v5451 = vld [vmem:[%s10] sm:$0x1]
    %v5453 = vperm.slane %v5451, 0
    %v5471 = vunpack.c.l.b16 %v5435
    %v5472 = vunpack.c.l.b16 %v5436
    %v5473 = vunpack.c.l.b16 %v5437
    %v5474 = vunpack.c.l.b16 %v5438
    %v5475 = vunpack.c.l.b16 %v5439
    %v5476 = vunpack.c.l.b16 %v5440
    %v5477 = vunpack.c.l.b16 %v5441
    %v5478 = vunpack.c.l.b16 %v5442
    %v5479 = vunpack.c.l.b16 %v5443
    %v5480 = vunpack.c.l.b16 %v5444
    %v5481 = vunpack.c.l.b16 %v5445
    %v5482 = vunpack.c.l.b16 %v5446
    %v5483 = vunpack.c.l.b16 %v5447
    %v5484 = vunpack.c.l.b16 %v5448
    %v5485 = vunpack.c.l.b16 %v5449
    %v5486 = vunpack.c.l.b16 %v5450
    %v5487 = vpack.c.b16 %v5472, %v5471
    %v5488 = vpack.c.b16 %v5474, %v5473
    %v5489 = vpack.c.b16 %v5476, %v5475
    %v5490 = vpack.c.b16 %v5478, %v5477
    %v5491 = vpack.c.b16 %v5480, %v5479
    %v5492 = vpack.c.b16 %v5482, %v5481
    %v5493 = vpack.c.b16 %v5484, %v5483
    %v5494 = vpack.c.b16 %v5486, %v5485
    %5503 = vmatpush.bf16.msra.mxu0 %v5494
    %5504 = vmatpush.bf16.msra.mxu0 %v5493
    %5505 = vmatpush.bf16.msra.mxu0 %v5492
    %5506 = vmatpush.bf16.msra.mxu0 %v5491
    %5507 = vmatpush.bf16.msra.mxu0 %v5490
    %5508 = vmatpush.bf16.msra.mxu0 %v5489
    %5509 = vmatpush.bf16.msra.mxu0 %v5488
    %5510 = vmatpush.bf16.msra.mxu0 %v5487
    %5511 = vmatmul.bf16.gmra.mxu0 %v5434
    %v5512 = vpop.f32.mrf.mxu0
    %v5513 = vadd.f32 %v5453, %v5512
    %v5514 = vpop.f32.mrf.mxu0
    %v5515 = vadd.f32 %v5453, %v5514
    %5516 = vdwg.mxu0
    %5517 = vst [vmem:[%s11] sm:$0xff] %v5513
    %5518 = vst [vmem:[%s11 + $0x8] sm:$0xff] %v5515
    // Predicated region
    $region62: #{lenet_forward.1} parent=1 // pred_check
      _
    $region63: #{lenet_forward.1} parent=1 // pred_check_branch
      %5520 = sbr.rel (0) target = $region65
    $region64: #{lenet_forward.1} parent=1 // pred_region
      _
    $region65: #{lenet_forward.1} parent=1 // pred_fallthru
      _
    // Predicated region
    $region66: #{lenet_forward.1} parent=1 // pred_check
      _
    $region67: #{lenet_forward.1} parent=1 // pred_check_branch
      %5522 = sbr.rel (0) target = $region69
    $region68: #{lenet_forward.1} parent=1 // pred_region
      _
    $region69: #{lenet_forward.1} parent=1 // pred_fallthru
      _
    %5523 = vsyncpa [#allocation3], 1
    %5524 = vsyncpa [#allocation5], 1
    %5525 = vsyncpa [#allocation8], 1

</llo_original>
